<compile_context>
chip_gen: v6e
topology: v6e:2x2x1
jax: 0.10.0
libtpu: 0.0.40
codegen_flags: <defaults>
</compile_context>

<pallas_src>
import math

import jax
import jax.numpy as jnp
import numpy as np
from jax.experimental import pallas as pl
from jax.experimental.pallas import tpu as pltpu

IN_F = 2          # input coordinates (x, y)
HIDDEN = 30       # true hidden width
OUT_F = 2         # output fields (u, v)
F_PAD = 32        # hidden width padded to a sublane multiple
OUT_PAD = 8       # output rows padded to one sublane tile
N_HID_MM = 4      # hidden layers computed on the MXU (layers 2..5)
CHUNK = 512       # lanes per in-kernel chunk (keeps activations near vreg-resident)

_MM_KW = dict(preferred_element_type=jnp.float32,
              precision=jax.lax.Precision.HIGHEST)


def mlp_kernel(x_ref, w1_ref, b1_ref, wh_ref, bh_ref, wo_ref, bo_ref, o_ref):
    """All activations are (features, batch): features on sublanes, batch on lanes."""
    w1 = w1_ref[...]                                  # (F_PAD, 2)
    b1 = b1_ref[...]                                  # (F_PAD, 1)
    wh = wh_ref[...]                                  # (4, F_PAD, F_PAD)
    bh = bh_ref[...]                                  # (4, F_PAD, 1)
    wo = wo_ref[...]                                  # (OUT_PAD, F_PAD)
    bo = bo_ref[...]                                  # (OUT_PAD, 1)

    tm = x_ref.shape[1]
    ch = min(CHUNK, tm)
    # Static chunk loop with static slices (no dynamic lane addressing needed).
    for c0 in range(0, tm, ch):
        x = x_ref[:, c0:c0 + ch]                      # (2, ch)
        # Layer 1 on the VPU: contraction over only 2 inputs (no MXU / no K padding).
        h = jnp.tanh(w1[:, 0:1] * x[0:1, :] + w1[:, 1:2] * x[1:2, :] + b1)
        # Layers 2..5 on the MXU: (32,32) @ (32, ch), f32 operands + f32 accumulation.
        for li in range(N_HID_MM):
            h = jnp.tanh(jnp.dot(wh[li], h, **_MM_KW) + bh[li])
        # Output layer: (8,32) @ (32, ch); only the 2 useful rows are stored.
        y = jnp.dot(wo, h, **_MM_KW) + bo
        o_ref[:, c0:c0 + ch] = y[:OUT_F, :]


def _tensorcores_per_chip():
    """v7x has 2 TensorCores per chip (megacore grid split); v5e/v6e have 1."""
    try:
        kind = jax.devices()[0].device_kind.lower()
        if "v7" in kind:
            return 2
    except Exception:
        pass
    return 1


def _pick_tile(n, tm_pref, n_tc):
    """Batch tile: multiple of 128 lanes, big enough to amortize the ~0.35 us
    per-grid-step overhead; keep >= 2 grid steps only where megacore can use them."""
    n128 = pl.cdiv(n, 128) * 128
    tm = max(128, (min(tm_pref, n128) // 128) * 128)
    if n_tc >= 2 and n128 >= 256:
        # v7x: at least 2 (roughly equal) steps so both TensorCores get work.
        tm = min(tm, max(128, ((n128 // 2) // 128) * 128))
    return tm


def mlp_forward_lanes(x_t, packed, *, tm_pref=4096):
    """x_t: (2, N) lane-dense f32 coordinates. Returns (2, N) lane-dense outputs."""
    w1, b1, wh, bh, wo, bo = packed
    n = x_t.shape[1]
    tm = _pick_tile(n, tm_pref, _tensorcores_per_chip())
    n_pad = math.ceil(n / tm) * tm

    x_t = x_t.astype(jnp.float32)
    if n_pad != n:  # pad only when needed (single cheap pass; exact after slicing)
        x_t = jnp.pad(x_t, ((0, 0), (0, n_pad - n)))

    grid = (n_pad // tm,)

    in_specs = [
        pl.BlockSpec((IN_F, tm), lambda i: (0, i)),                   # x (2, tm)
        pl.BlockSpec((F_PAD, IN_F), lambda i: (0, 0)),                # w1
        pl.BlockSpec((F_PAD, 1), lambda i: (0, 0)),                   # b1
        pl.BlockSpec((N_HID_MM, F_PAD, F_PAD), lambda i: (0, 0, 0)),  # stacked hidden W
        pl.BlockSpec((N_HID_MM, F_PAD, 1), lambda i: (0, 0, 0)),      # stacked hidden b
        pl.BlockSpec((OUT_PAD, F_PAD), lambda i: (0, 0)),             # wo
        pl.BlockSpec((OUT_PAD, 1), lambda i: (0, 0)),                 # bo
    ]

    # Advisory cost hint so XLA can overlap surrounding ops (and later grad passes).
    weight_bytes = 4 * (F_PAD * IN_F + F_PAD + N_HID_MM * F_PAD * (F_PAD + 1)
                        + OUT_PAD * (F_PAD + 1))
    cost = pl.CostEstimate(
        flops=2 * n_pad * (IN_F * HIDDEN + N_HID_MM * HIDDEN * HIDDEN + HIDDEN * OUT_F),
        transcendentals=5 * HIDDEN * n_pad,
        bytes_accessed=4 * (IN_F + OUT_F) * n_pad + weight_bytes,
    )

    out_t = pl.pallas_call(
        mlp_kernel,
        out_shape=jax.ShapeDtypeStruct((OUT_F, n_pad), jnp.float32),
        grid_spec=pltpu.PrefetchScalarGridSpec(
            num_scalar_prefetch=0,
            grid=grid,
            in_specs=in_specs,
            out_specs=pl.BlockSpec((OUT_F, tm), lambda i: (0, i)),
        ),
        compiler_params=pltpu.CompilerParams(
            dimension_semantics=("parallel",),
        ),
        cost_estimate=cost,
    )(x_t, w1, b1, wh, bh, wo, bo)

    return out_t if n_pad == n else out_t[:, :n]


def mlp_forward(x, packed, *, tm_pref=4096):
    """Compatibility wrapper for (N, 2) inputs -> (N, 2) outputs.
    Prefer mlp_forward_lanes() to avoid the two extra transpose passes."""
    return mlp_forward_lanes(x.T, packed, tm_pref=tm_pref).T


def init_params(key):
    """Deterministic init mimicking torch.nn.Linear defaults:
    U(-1/sqrt(fan_in), 1/sqrt(fan_in)) for weight and bias.  Weights are kept in
    torch layout (out_features, in_features), exactly what the kernel wants."""
    dims = [IN_F] + [HIDDEN] * 5 + [OUT_F]
    ws, bs = [], []
    for li in range(6):
        fan_in, fan_out = dims[li], dims[li + 1]
        key, kw, kb = jax.random.split(key, 3)
        bound = 1.0 / float(np.sqrt(fan_in))
        ws.append(jax.random.uniform(kw, (fan_out, fan_in), jnp.float32, -bound, bound))
        bs.append(jax.random.uniform(kb, (fan_out,), jnp.float32, -bound, bound))
    return ws, bs


def pack_params(ws, bs):
    """Zero-pad params to the kernel layout (exact: tanh(0)=0, padded rows stay 0)."""
    w1 = jnp.zeros((F_PAD, IN_F), jnp.float32).at[:HIDDEN, :].set(ws[0])
    b1 = jnp.zeros((F_PAD, 1), jnp.float32).at[:HIDDEN, 0].set(bs[0])
    wh = jnp.zeros((N_HID_MM, F_PAD, F_PAD), jnp.float32)
    bh = jnp.zeros((N_HID_MM, F_PAD, 1), jnp.float32)
    for li in range(N_HID_MM):
        wh = wh.at[li, :HIDDEN, :HIDDEN].set(ws[li + 1])
        bh = bh.at[li, :HIDDEN, 0].set(bs[li + 1])
    wo = jnp.zeros((OUT_PAD, F_PAD), jnp.float32).at[:OUT_F, :HIDDEN].set(ws[5])
    bo = jnp.zeros((OUT_PAD, 1), jnp.float32).at[:OUT_F, 0].set(bs[5])
    return (w1, b1, wh, bh, wo, bo)


def mlp_reference(x, ws, bs):
    """Plain-JAX reference of the same forward pass (un-padded, torch weight layout)."""
    h = x.astype(jnp.float32)
    for li in range(6):
        h = h @ ws[li].T + bs[li]
        if li < 5:
            h = jnp.tanh(h)
    return h


if __name__ == "__main__":
    key = jax.random.PRNGKey(0)
    kx, kp = jax.random.split(key)

    # Collocation-style points in [0,1]^2 (like interior_test / boundary_test),
    # generated directly as a lane-dense (2, N) slab -> no wrapper transpose pass.
    N = 256
    x_t = jax.random.uniform(kx, (IN_F, N), jnp.float32)

    ws, bs = init_params(kp)
    packed = pack_params(ws, bs)

    y_t = jax.block_until_ready(mlp_forward_lanes(x_t, packed))
    y_ref = jax.block_until_ready(mlp_reference(x_t.T, ws, bs))

    assert y_t.shape == (OUT_F, N)
    np.testing.assert_allclose(np.asarray(y_t.T), np.asarray(y_ref), rtol=1e-5, atol=1e-5)

    # TODO(synk): Model.loss() needs autograd of the network outputs w.r.t. the inputs
    # (torch.autograd.grad) for the PDE residual; in JAX that is taken with jax.grad /
    # jax.jacfwd around this forward function and is not part of the Pallas kernel.
    print("KERNEL_OK")
</pallas_src>

<mosaic_0001>
module attributes {stable_mosaic.version = 11 : i64} {
  func.func @mlp_kernel(%arg0: i32, %arg1: memref<2x256xf32, #tpu.memory_space<vmem>>, %arg2: memref<32x2xf32, #tpu.memory_space<vmem>>, %arg3: memref<32x1xf32, #tpu.memory_space<vmem>>, %arg4: memref<4x32x32xf32, #tpu.memory_space<vmem>>, %arg5: memref<4x32x1xf32, #tpu.memory_space<vmem>>, %arg6: memref<8x32xf32, #tpu.memory_space<vmem>>, %arg7: memref<8x1xf32, #tpu.memory_space<vmem>>, %arg8: memref<2x256xf32, #tpu.memory_space<vmem>>) attributes {dimension_semantics = [#tpu.dimension_semantics<parallel>], iteration_bounds = array<i64: 1>, scalar_prefetch = 0 : i64, scratch_operands = 0 : i64, tpu.core_type = #tpu.core_type<tc>, window_params = [{transform_indices = @transform_0, window_bounds = array<i64: 2, 256>}, {pipeline_mode = #tpu.pipeline_mode<synchronous>, transform_indices = @transform_1, window_bounds = array<i64: 32, 2>}, {pipeline_mode = #tpu.pipeline_mode<synchronous>, transform_indices = @transform_2, window_bounds = array<i64: 32, 1>}, {pipeline_mode = #tpu.pipeline_mode<synchronous>, transform_indices = @transform_3, window_bounds = array<i64: 4, 32, 32>}, {pipeline_mode = #tpu.pipeline_mode<synchronous>, transform_indices = @transform_4, window_bounds = array<i64: 4, 32, 1>}, {pipeline_mode = #tpu.pipeline_mode<synchronous>, transform_indices = @transform_5, window_bounds = array<i64: 8, 32>}, {pipeline_mode = #tpu.pipeline_mode<synchronous>, transform_indices = @transform_6, window_bounds = array<i64: 8, 1>}, {transform_indices = @transform_7, window_bounds = array<i64: 2, 256>}]} {
    %c0 = arith.constant 0 : index
    %c0_0 = arith.constant 0 : index
    %0 = vector.load %arg2[%c0, %c0_0] : memref<32x2xf32, #tpu.memory_space<vmem>>, vector<32x2xf32>
    %c0_1 = arith.constant 0 : index
    %c0_2 = arith.constant 0 : index
    %1 = vector.load %arg3[%c0_1, %c0_2] : memref<32x1xf32, #tpu.memory_space<vmem>>, vector<32x1xf32>
    %c0_3 = arith.constant 0 : index
    %c0_4 = arith.constant 0 : index
    %c0_5 = arith.constant 0 : index
    %2 = vector.load %arg4[%c0_3, %c0_4, %c0_5] : memref<4x32x32xf32, #tpu.memory_space<vmem>>, vector<4x32x32xf32>
    %c0_6 = arith.constant 0 : index
    %c0_7 = arith.constant 0 : index
    %c0_8 = arith.constant 0 : index
    %3 = vector.load %arg5[%c0_6, %c0_7, %c0_8] : memref<4x32x1xf32, #tpu.memory_space<vmem>>, vector<4x32x1xf32>
    %c0_9 = arith.constant 0 : index
    %c0_10 = arith.constant 0 : index
    %4 = vector.load %arg6[%c0_9, %c0_10] : memref<8x32xf32, #tpu.memory_space<vmem>>, vector<8x32xf32>
    %c0_11 = arith.constant 0 : index
    %c0_12 = arith.constant 0 : index
    %5 = vector.load %arg7[%c0_11, %c0_12] : memref<8x1xf32, #tpu.memory_space<vmem>>, vector<8x1xf32>
    %c0_13 = arith.constant 0 : index
    %c0_14 = arith.constant 0 : index
    %6 = vector.load %arg1[%c0_13, %c0_14] : memref<2x256xf32, #tpu.memory_space<vmem>>, vector<2x256xf32>
    %7 = vector.extract_strided_slice %0 {offsets = [0, 0], sizes = [32, 1], strides = [1, 1]} : vector<32x2xf32> to vector<32x1xf32>
    %8 = vector.extract_strided_slice %6 {offsets = [0, 0], sizes = [1, 256], strides = [1, 1]} : vector<2x256xf32> to vector<1x256xf32>
    %9 = vector.broadcast %7 : vector<32x1xf32> to vector<32x256xf32>
    %10 = vector.broadcast %8 : vector<1x256xf32> to vector<32x256xf32>
    %11 = arith.mulf %9, %10 : vector<32x256xf32>
    %12 = vector.extract_strided_slice %0 {offsets = [0, 1], sizes = [32, 1], strides = [1, 1]} : vector<32x2xf32> to vector<32x1xf32>
    %13 = vector.extract_strided_slice %6 {offsets = [1, 0], sizes = [1, 256], strides = [1, 1]} : vector<2x256xf32> to vector<1x256xf32>
    %14 = vector.broadcast %12 : vector<32x1xf32> to vector<32x256xf32>
    %15 = vector.broadcast %13 : vector<1x256xf32> to vector<32x256xf32>
    %16 = arith.mulf %14, %15 : vector<32x256xf32>
    %17 = arith.addf %11, %16 : vector<32x256xf32>
    %18 = vector.broadcast %1 : vector<32x1xf32> to vector<32x256xf32>
    %19 = arith.addf %17, %18 : vector<32x256xf32>
    %20 = math.tanh %19 : vector<32x256xf32>
    %21 = vector.extract_strided_slice %2 {offsets = [0, 0, 0], sizes = [1, 32, 32], strides = [1, 1, 1]} : vector<4x32x32xf32> to vector<1x32x32xf32>
    %22 = vector.shape_cast %21 : vector<1x32x32xf32> to vector<32x32xf32>
    %cst = arith.constant dense<0.000000e+00> : vector<32x256xf32>
    %23 = tpu.matmul %22, %20, %cst {dimension_numbers = #tpu.dot_dimension_numbers<[1], [0], [0], [1], [0, 0, 1, 1], [], []>, precision = #tpu.contract_precision<fp32>} : vector<32x32xf32>, vector<32x256xf32>, vector<32x256xf32> -> vector<32x256xf32>
    %24 = vector.extract_strided_slice %3 {offsets = [0, 0, 0], sizes = [1, 32, 1], strides = [1, 1, 1]} : vector<4x32x1xf32> to vector<1x32x1xf32>
    %25 = vector.shape_cast %24 : vector<1x32x1xf32> to vector<32x1xf32>
    %26 = vector.broadcast %25 : vector<32x1xf32> to vector<32x256xf32>
    %27 = arith.addf %23, %26 : vector<32x256xf32>
    %28 = math.tanh %27 : vector<32x256xf32>
    %29 = vector.extract_strided_slice %2 {offsets = [1, 0, 0], sizes = [1, 32, 32], strides = [1, 1, 1]} : vector<4x32x32xf32> to vector<1x32x32xf32>
    %30 = vector.shape_cast %29 : vector<1x32x32xf32> to vector<32x32xf32>
    %cst_15 = arith.constant dense<0.000000e+00> : vector<32x256xf32>
    %31 = tpu.matmul %30, %28, %cst_15 {dimension_numbers = #tpu.dot_dimension_numbers<[1], [0], [0], [1], [0, 0, 1, 1], [], []>, precision = #tpu.contract_precision<fp32>} : vector<32x32xf32>, vector<32x256xf32>, vector<32x256xf32> -> vector<32x256xf32>
    %32 = vector.extract_strided_slice %3 {offsets = [1, 0, 0], sizes = [1, 32, 1], strides = [1, 1, 1]} : vector<4x32x1xf32> to vector<1x32x1xf32>
    %33 = vector.shape_cast %32 : vector<1x32x1xf32> to vector<32x1xf32>
    %34 = vector.broadcast %33 : vector<32x1xf32> to vector<32x256xf32>
    %35 = arith.addf %31, %34 : vector<32x256xf32>
    %36 = math.tanh %35 : vector<32x256xf32>
    %37 = vector.extract_strided_slice %2 {offsets = [2, 0, 0], sizes = [1, 32, 32], strides = [1, 1, 1]} : vector<4x32x32xf32> to vector<1x32x32xf32>
    %38 = vector.shape_cast %37 : vector<1x32x32xf32> to vector<32x32xf32>
    %cst_16 = arith.constant dense<0.000000e+00> : vector<32x256xf32>
    %39 = tpu.matmul %38, %36, %cst_16 {dimension_numbers = #tpu.dot_dimension_numbers<[1], [0], [0], [1], [0, 0, 1, 1], [], []>, precision = #tpu.contract_precision<fp32>} : vector<32x32xf32>, vector<32x256xf32>, vector<32x256xf32> -> vector<32x256xf32>
    %40 = vector.extract_strided_slice %3 {offsets = [2, 0, 0], sizes = [1, 32, 1], strides = [1, 1, 1]} : vector<4x32x1xf32> to vector<1x32x1xf32>
    %41 = vector.shape_cast %40 : vector<1x32x1xf32> to vector<32x1xf32>
    %42 = vector.broadcast %41 : vector<32x1xf32> to vector<32x256xf32>
    %43 = arith.addf %39, %42 : vector<32x256xf32>
    %44 = math.tanh %43 : vector<32x256xf32>
    %45 = vector.extract_strided_slice %2 {offsets = [3, 0, 0], sizes = [1, 32, 32], strides = [1, 1, 1]} : vector<4x32x32xf32> to vector<1x32x32xf32>
    %46 = vector.shape_cast %45 : vector<1x32x32xf32> to vector<32x32xf32>
    %cst_17 = arith.constant dense<0.000000e+00> : vector<32x256xf32>
    %47 = tpu.matmul %46, %44, %cst_17 {dimension_numbers = #tpu.dot_dimension_numbers<[1], [0], [0], [1], [0, 0, 1, 1], [], []>, precision = #tpu.contract_precision<fp32>} : vector<32x32xf32>, vector<32x256xf32>, vector<32x256xf32> -> vector<32x256xf32>
    %48 = vector.extract_strided_slice %3 {offsets = [3, 0, 0], sizes = [1, 32, 1], strides = [1, 1, 1]} : vector<4x32x1xf32> to vector<1x32x1xf32>
    %49 = vector.shape_cast %48 : vector<1x32x1xf32> to vector<32x1xf32>
    %50 = vector.broadcast %49 : vector<32x1xf32> to vector<32x256xf32>
    %51 = arith.addf %47, %50 : vector<32x256xf32>
    %52 = math.tanh %51 : vector<32x256xf32>
    %cst_18 = arith.constant dense<0.000000e+00> : vector<8x256xf32>
    %53 = tpu.matmul %4, %52, %cst_18 {dimension_numbers = #tpu.dot_dimension_numbers<[1], [0], [0], [1], [0, 0, 1, 1], [], []>, precision = #tpu.contract_precision<fp32>} : vector<8x32xf32>, vector<32x256xf32>, vector<8x256xf32> -> vector<8x256xf32>
    %54 = vector.broadcast %5 : vector<8x1xf32> to vector<8x256xf32>
    %55 = arith.addf %53, %54 : vector<8x256xf32>
    %56 = vector.extract_strided_slice %55 {offsets = [0, 0], sizes = [2, 256], strides = [1, 1]} : vector<8x256xf32> to vector<2x256xf32>
    %c0_19 = arith.constant 0 : index
    %c0_20 = arith.constant 0 : index
    %57 = vector.load %arg8[%c0_19, %c0_20] : memref<2x256xf32, #tpu.memory_space<vmem>>, vector<2x256xf32>
    tpu.vector_store %arg8[%c0_19, %c0_20], %56 {strides = array<i32>} : memref<2x256xf32, #tpu.memory_space<vmem>>, vector<2x256xf32>,
    return
  }
  func.func @transform_0(%arg0: i32) -> (i32, i32) {
    %c0_i32 = arith.constant 0 : i32
    %c0_i32_0 = arith.constant 0 : i32
    return %c0_i32, %arg0 : i32, i32
  }
  func.func @transform_1(%arg0: i32) -> (i32, i32) {
    %c0_i32 = arith.constant 0 : i32
    %c0_i32_0 = arith.constant 0 : i32
    %c0_i32_1 = arith.constant 0 : i32
    return %c0_i32, %c0_i32_0 : i32, i32
  }
  func.func @transform_2(%arg0: i32) -> (i32, i32) {
    %c0_i32 = arith.constant 0 : i32
    %c0_i32_0 = arith.constant 0 : i32
    %c0_i32_1 = arith.constant 0 : i32
    return %c0_i32, %c0_i32_0 : i32, i32
  }
  func.func @transform_3(%arg0: i32) -> (i32, i32, i32) {
    %c0_i32 = arith.constant 0 : i32
    %c0_i32_0 = arith.constant 0 : i32
    %c0_i32_1 = arith.constant 0 : i32
    %c0_i32_2 = arith.constant 0 : i32
    return %c0_i32, %c0_i32_0, %c0_i32_1 : i32, i32, i32
  }
  func.func @transform_4(%arg0: i32) -> (i32, i32, i32) {
    %c0_i32 = arith.constant 0 : i32
    %c0_i32_0 = arith.constant 0 : i32
    %c0_i32_1 = arith.constant 0 : i32
    %c0_i32_2 = arith.constant 0 : i32
    return %c0_i32, %c0_i32_0, %c0_i32_1 : i32, i32, i32
  }
  func.func @transform_5(%arg0: i32) -> (i32, i32) {
    %c0_i32 = arith.constant 0 : i32
    %c0_i32_0 = arith.constant 0 : i32
    %c0_i32_1 = arith.constant 0 : i32
    return %c0_i32, %c0_i32_0 : i32, i32
  }
  func.func @transform_6(%arg0: i32) -> (i32, i32) {
    %c0_i32 = arith.constant 0 : i32
    %c0_i32_0 = arith.constant 0 : i32
    %c0_i32_1 = arith.constant 0 : i32
    return %c0_i32, %c0_i32_0 : i32, i32
  }
  func.func @transform_7(%arg0: i32) -> (i32, i32) {
    %c0_i32 = arith.constant 0 : i32
    %c0_i32_0 = arith.constant 0 : i32
    return %c0_i32, %arg0 : i32, i32
  }
}

</mosaic_0001>

<llo_original>
// kernel: tpu_custom_call.1
$region0: #{tpu_custom_call.1}
  #allocation0 [shape = 'u32[]', space=smem, size = 0x4, offset = 0x4, fixed_abs, tag = 'smem constant byte address 0x4 - core index']
  #allocation1 [shape = 'u32[144,128]{1,0:T(1,128)}', space=vmem, size = 0x12000, scoped, tag = 'internal scratch']
  %s0 = inlined_call_operand.vmem [shape: f32[2,256], index: 0, kind: input, shape index: {}]
  %s1 = inlined_call_operand.vmem [shape: f32[32,2], index: 1, kind: input, shape index: {}]
  %s2 = inlined_call_operand.vmem [shape: f32[32,1], index: 2, kind: input, shape index: {}]
  %s3 = inlined_call_operand.vmem [shape: f32[4,32,32], index: 3, kind: input, shape index: {}]
  %s4 = inlined_call_operand.vmem [shape: f32[4,32,1], index: 4, kind: input, shape index: {}]
  %s5 = inlined_call_operand.vmem [shape: f32[8,32], index: 5, kind: input, shape index: {}]
  %s6 = inlined_call_operand.vmem [shape: f32[8,1], index: 6, kind: input, shape index: {}]
  %s7 = inlined_call_operand.hbm [shape: f32[2,256], index: 7, kind: output, shape index: {}]
  %s8 = sld [smem:[#allocation0]]
  $region38: #{tpu_custom_call.1} parent=0
    _
  %s10 = ssub.s32 1, %s8
  %s11 = scalar_select 0, %s10, %s8
  $region1: #{tpu_custom_call.1} parent=0
    #allocation2 [shape = 'u8[2048]{0}', space=vmem, size = 0x800, scoped, tag = 'output window, operand 0, single buffered']
    #allocation3 [shape = 's32[1]{0}', space=sflag, size = 0x4, scoped, tag = 'scoped memory for tpu_custom_call.1']
    %12 = vsyncpa [#allocation3], 0
    // Predicated region
    $region2: #{tpu_custom_call.1} parent=1 // pred_check
      _
    $region3: #{tpu_custom_call.1} parent=1 // pred_check_branch
      %14 = sbr.rel (0) target = $region5
    $region4: #{tpu_custom_call.1} parent=1 // pred_region
      _
    $region5: #{tpu_custom_call.1} parent=1 // pred_fallthru
      _
    // Predicated region
    $region6: #{tpu_custom_call.1} parent=1 // pred_check
      _
    $region7: #{tpu_custom_call.1} parent=1 // pred_check_branch
      %16 = sbr.rel (0) target = $region9
    $region8: #{tpu_custom_call.1} parent=1 // pred_region
      _
    $region9: #{tpu_custom_call.1} parent=1 // pred_fallthru
      _
    // Predicated region
    $region10: #{tpu_custom_call.1} parent=1 // pred_check
      _
    $region11: #{tpu_custom_call.1} parent=1 // pred_check_branch
      %18 = sbr.rel (0) target = $region13
    $region12: #{tpu_custom_call.1} parent=1 // pred_region
      _
    $region13: #{tpu_custom_call.1} parent=1 // pred_fallthru
      _
    // Predicated region
    $region14: #{tpu_custom_call.1} parent=1 // pred_check
      _
    $region15: #{tpu_custom_call.1} parent=1 // pred_check_branch
      %20 = sbr.rel (0) target = $region17
    $region16: #{tpu_custom_call.1} parent=1 // pred_region
      _
    $region17: #{tpu_custom_call.1} parent=1 // pred_fallthru
      _
    // Predicated region
    $region18: #{tpu_custom_call.1} parent=1 // pred_check
      _
    $region19: #{tpu_custom_call.1} parent=1 // pred_check_branch
      %22 = sbr.rel (0) target = $region21
    $region20: #{tpu_custom_call.1} parent=1 // pred_region
      _
    $region21: #{tpu_custom_call.1} parent=1 // pred_fallthru
      _
    // Predicated region
    $region22: #{tpu_custom_call.1} parent=1 // pred_check
      _
    $region23: #{tpu_custom_call.1} parent=1 // pred_check_branch
      %24 = sbr.rel (0) target = $region25
    $region24: #{tpu_custom_call.1} parent=1 // pred_region
      _
    $region25: #{tpu_custom_call.1} parent=1 // pred_fallthru
      _
    // Predicated region
    $region26: #{tpu_custom_call.1} parent=1 // pred_check
      _
    $region27: #{tpu_custom_call.1} parent=1 // pred_check_branch
      %26 = sbr.rel (0) target = $region29
    $region28: #{tpu_custom_call.1} parent=1 // pred_region
      _
    $region29: #{tpu_custom_call.1} parent=1 // pred_fallthru
      _
    %v27 = vld [vmem:[%s1] sm:$0xff]
    %v28 = vld [vmem:[%s1 + $0x8] sm:$0xff]
    %v29 = vld [vmem:[%s1 + $0x10] sm:$0xff]
    %v30 = vld [vmem:[%s1 + $0x18] sm:$0xff]
    %v31 = vld [vmem:[%s2] sm:$0xff]
    %v32 = vld [vmem:[%s2 + $0x8] sm:$0xff]
    %v33 = vld [vmem:[%s2 + $0x10] sm:$0xff]
    %v34 = vld [vmem:[%s2 + $0x18] sm:$0xff]
    %v35 = vld [vmem:[%s3] sm:$0xff]
    %v36 = vld [vmem:[%s3 + $0x8] sm:$0xff]
    %v37 = vld [vmem:[%s3 + $0x10] sm:$0xff]
    %v38 = vld [vmem:[%s3 + $0x18] sm:$0xff]
    %v39 = vld [vmem:[%s3 + $0x20] sm:$0xff]
    %v40 = vld [vmem:[%s3 + $0x28] sm:$0xff]
    %v41 = vld [vmem:[%s3 + $0x30] sm:$0xff]
    %v42 = vld [vmem:[%s3 + $0x38] sm:$0xff]
    %v43 = vld [vmem:[%s3 + $0x40] sm:$0xff]
    %v44 = vld [vmem:[%s3 + $0x48] sm:$0xff]
    %v45 = vld [vmem:[%s3 + $0x50] sm:$0xff]
    %v46 = vld [vmem:[%s3 + $0x58] sm:$0xff]
    %v47 = vld [vmem:[%s3 + $0x60] sm:$0xff]
    %v48 = vld [vmem:[%s3 + $0x68] sm:$0xff]
    %v49 = vld [vmem:[%s3 + $0x70] sm:$0xff]
    %v50 = vld [vmem:[%s3 + $0x78] sm:$0xff]
    %v51 = vld [vmem:[%s4] sm:$0xff]
    %v52 = vld [vmem:[%s4 + $0x8] sm:$0xff]
    %v53 = vld [vmem:[%s4 + $0x10] sm:$0xff]
    %v54 = vld [vmem:[%s4 + $0x18] sm:$0xff]
    %v55 = vld [vmem:[%s4 + $0x20] sm:$0xff]
    %v56 = vld [vmem:[%s4 + $0x28] sm:$0xff]
    %v57 = vld [vmem:[%s4 + $0x30] sm:$0xff]
    %v58 = vld [vmem:[%s4 + $0x38] sm:$0xff]
    %v59 = vld [vmem:[%s4 + $0x40] sm:$0xff]
    %v60 = vld [vmem:[%s4 + $0x48] sm:$0xff]
    %v61 = vld [vmem:[%s4 + $0x50] sm:$0xff]
    %v62 = vld [vmem:[%s4 + $0x58] sm:$0xff]
    %v63 = vld [vmem:[%s4 + $0x60] sm:$0xff]
    %v64 = vld [vmem:[%s4 + $0x68] sm:$0xff]
    %v65 = vld [vmem:[%s4 + $0x70] sm:$0xff]
    %v66 = vld [vmem:[%s4 + $0x78] sm:$0xff]
    %v67 = vld [vmem:[%s5] sm:$0xff]
    %v68 = vld [vmem:[%s6] sm:$0xff]
    %v69 = vld [vmem:[%s0] sm:$0xf]
    %71 = vset.pattern.permute.xlu0 0
    %72 = vperm.xlu0 %71, %v27
    %v73 = vpop.permute.xlu0 %72
    %76 = vset.pattern.permute.xlu0 0
    %77 = vperm.xlu0 %76, %v28
    %v78 = vpop.permute.xlu0 %77
    %81 = vset.pattern.permute.xlu0 0
    %82 = vperm.xlu0 %81, %v29
    %v83 = vpop.permute.xlu0 %82
    %86 = vset.pattern.permute.xlu0 0
    %87 = vperm.xlu0 %86, %v30
    %v88 = vpop.permute.xlu0 %87
    %v91 = vlaneseq
    %v92 = vshrl.u32 %v91, 7
    %v93 = vsub.s32 0, %v92
    %v94 = vrot.slane %v69, %v93
    %v95 = vlaneseq
    %v96 = vshrl.u32 %v95, 7
    %v97 = vsub.s32 2, %v96
    %v98 = vrot.slane %v69, %v97
    %v101 = vlaneseq
    %v102 = vshrl.u32 %v101, 7
    %v103 = vsub.s32 0, %v102
    %v104 = vrot.slane %v94, %v103
    %v105 = vlaneseq
    %v106 = vshrl.u32 %v105, 7
    %v107 = vsub.s32 0, %v106
    %v108 = vrot.slane %v98, %v107
    %v109 = vmul.f32 %v73, %v104
    %v110 = vmul.f32 %v73, %v108
    %v111 = vmul.f32 %v78, %v104
    %v112 = vmul.f32 %v78, %v108
    %v113 = vmul.f32 %v83, %v104
    %v114 = vmul.f32 %v83, %v108
    %v115 = vmul.f32 %v88, %v104
    %v116 = vmul.f32 %v88, %v108
    %117 = vset.pattern.permute.xlu0 1
    %118 = vperm.xlu0 %117, %v27
    %v119 = vpop.permute.xlu0 %118
    %121 = vset.pattern.permute.xlu0 1
    %122 = vperm.xlu0 %121, %v28
    %v123 = vpop.permute.xlu0 %122
    %125 = vset.pattern.permute.xlu0 1
    %126 = vperm.xlu0 %125, %v29
    %v127 = vpop.permute.xlu0 %126
    %129 = vset.pattern.permute.xlu0 1
    %130 = vperm.xlu0 %129, %v30
    %v131 = vpop.permute.xlu0 %130
    %v133 = vlaneseq
    %v134 = vshrl.u32 %v133, 7
    %v135 = vsub.s32 1, %v134
    %v136 = vrot.slane %v69, %v135
    %v137 = vlaneseq
    %v138 = vshrl.u32 %v137, 7
    %v139 = vsub.s32 3, %v138
    %v140 = vrot.slane %v69, %v139
    %v143 = vlaneseq
    %v144 = vshrl.u32 %v143, 7
    %v145 = vsub.s32 1, %v144
    %v146 = vrot.slane %v136, %v145
    %v147 = vlaneseq
    %v148 = vshrl.u32 %v147, 7
    %v149 = vsub.s32 1, %v148
    %v150 = vrot.slane %v140, %v149
    %v151 = vmul.f32 %v119, %v146
    %v152 = vmul.f32 %v119, %v150
    %v153 = vmul.f32 %v123, %v146
    %v154 = vmul.f32 %v123, %v150
    %v155 = vmul.f32 %v127, %v146
    %v156 = vmul.f32 %v127, %v150
    %v157 = vmul.f32 %v131, %v146
    %v158 = vmul.f32 %v131, %v150
    %v159 = vadd.f32 %v109, %v151
    %v160 = vadd.f32 %v110, %v152
    %v161 = vadd.f32 %v111, %v153
    %v162 = vadd.f32 %v112, %v154
    %v163 = vadd.f32 %v113, %v155
    %v164 = vadd.f32 %v114, %v156
    %v165 = vadd.f32 %v115, %v157
    %v166 = vadd.f32 %v116, %v158
    %168 = vset.pattern.permute.xlu0 0
    %169 = vperm.xlu0 %168, %v31
    %v170 = vpop.permute.xlu0 %169
    %173 = vset.pattern.permute.xlu0 0
    %174 = vperm.xlu0 %173, %v32
    %v175 = vpop.permute.xlu0 %174
    %178 = vset.pattern.permute.xlu0 0
    %179 = vperm.xlu0 %178, %v33
    %v180 = vpop.permute.xlu0 %179
    %183 = vset.pattern.permute.xlu0 0
    %184 = vperm.xlu0 %183, %v34
    %v185 = vpop.permute.xlu0 %184
    %v187 = vadd.f32 %v159, %v170
    %v188 = vadd.f32 %v160, %v170
    %v189 = vadd.f32 %v161, %v175
    %v190 = vadd.f32 %v162, %v175
    %v191 = vadd.f32 %v163, %v180
    %v192 = vadd.f32 %v164, %v180
    %v193 = vadd.f32 %v165, %v185
    %v194 = vadd.f32 %v166, %v185
    %v195 = vtanh.pop %v187
    %v196 = vtanh.pop %v188
    %v197 = vtanh.pop %v189
    %v198 = vtanh.pop %v190
    %v199 = vtanh.pop %v191
    %v200 = vtanh.pop %v192
    %v201 = vtanh.pop %v193
    %v202 = vtanh.pop %v194
    %204 = vset.pattern.permute.xlu0 0
    %205 = vperm.xlu0 %204, %v51
    %v206 = vpop.permute.xlu0 %205
    %209 = vset.pattern.permute.xlu0 0
    %210 = vperm.xlu0 %209, %v52
    %v211 = vpop.permute.xlu0 %210
    %214 = vset.pattern.permute.xlu0 0
    %215 = vperm.xlu0 %214, %v53
    %v216 = vpop.permute.xlu0 %215
    %219 = vset.pattern.permute.xlu0 0
    %220 = vperm.xlu0 %219, %v54
    %v221 = vpop.permute.xlu0 %220
    %vm223 = vcmask 261120
    %v225 = vsel %vm223, %v35, 0
    %v228 = vsel %vm223, %v36, 0
    %v231 = vsel %vm223, %v37, 0
    %v234 = vsel %vm223, %v38, 0
    %236 = vmatprep.subr.mxu0 0.0
    %237 = vmatpush1.msra.mxu0 0.0
    %238 = vmatprep.subr.mxu0 0.0
    %239 = vmatpush1.msra.mxu0 0.0
    %240 = vmatprep.subr.mxu0 0.0
    %241 = vmatpush1.msra.mxu0 0.0
    %242 = vmatprep.subr.mxu0 0.0
    %243 = vmatpush1.msra.mxu0 0.0
    %244 = vmatprep.subr.mxu0 0.0
    %245 = vmatpush1.msra.mxu0 0.0
    %246 = vmatprep.subr.mxu0 0.0
    %247 = vmatpush1.msra.mxu0 0.0
    %248 = vmatprep.subr.mxu0 0.0
    %249 = vmatpush1.msra.mxu0 0.0
    %250 = vmatprep.subr.mxu0 0.0
    %251 = vmatpush1.msra.mxu0 0.0
    %252 = vmatprep.subr.mxu0 0.0
    %253 = vmatpush1.msra.mxu0 0.0
    %254 = vmatprep.subr.mxu0 0.0
    %255 = vmatpush1.msra.mxu0 0.0
    %256 = vmatprep.subr.mxu0 0.0
    %257 = vmatpush1.msra.mxu0 0.0
    %258 = vmatprep.subr.mxu0 0.0
    %259 = vmatpush1.msra.mxu0 0.0
    %v260 = vand.u32 %v202, 4294901760
    %261 = vmatprep.subr.mxu0 %v260
    %v262 = vand.u32 %v201, 4294901760
    %263 = vmatpush1.msra.mxu0 %v262
    %v264 = vand.u32 %v200, 4294901760
    %265 = vmatprep.subr.mxu0 %v264
    %v266 = vand.u32 %v199, 4294901760
    %267 = vmatpush1.msra.mxu0 %v266
    %v268 = vand.u32 %v198, 4294901760
    %269 = vmatprep.subr.mxu0 %v268
    %v270 = vand.u32 %v197, 4294901760
    %271 = vmatpush1.msra.mxu0 %v270
    %v272 = vand.u32 %v196, 4294901760
    %273 = vmatprep.subr.mxu0 %v272
    %v274 = vand.u32 %v195, 4294901760
    %275 = vmatpush1.msra.mxu0 %v274
    %276 = vmatprep.subr.mxu0 0.0
    %277 = vmatpush2.msra.mxu0 0.0
    %278 = vmatprep.subr.mxu0 0.0
    %279 = vmatpush2.msra.mxu0 0.0
    %280 = vmatprep.subr.mxu0 0.0
    %281 = vmatpush2.msra.mxu0 0.0
    %282 = vmatprep.subr.mxu0 0.0
    %283 = vmatpush2.msra.mxu0 0.0
    %284 = vmatprep.subr.mxu0 0.0
    %285 = vmatpush2.msra.mxu0 0.0
    %286 = vmatprep.subr.mxu0 0.0
    %287 = vmatpush2.msra.mxu0 0.0
    %288 = vmatprep.subr.mxu0 0.0
    %289 = vmatpush2.msra.mxu0 0.0
    %290 = vmatprep.subr.mxu0 0.0
    %291 = vmatpush2.msra.mxu0 0.0
    %292 = vmatprep.subr.mxu0 0.0
    %293 = vmatpush2.msra.mxu0 0.0
    %294 = vmatprep.subr.mxu0 0.0
    %295 = vmatpush2.msra.mxu0 0.0
    %296 = vmatprep.subr.mxu0 0.0
    %297 = vmatpush2.msra.mxu0 0.0
    %298 = vmatprep.subr.mxu0 0.0
    %299 = vmatpush2.msra.mxu0 0.0
    %300 = vmatprep.subr.mxu0 0.0
    %301 = vmatpush2.msra.mxu0 0.0
    %302 = vmatprep.subr.mxu0 0.0
    %303 = vmatpush2.msra.mxu0 0.0
    %304 = vmatprep.subr.mxu0 0.0
    %305 = vmatpush2.msra.mxu0 0.0
    %306 = vmatprep.subr.mxu0 0.0
    %307 = vmatpush2.msra.mxu0 0.0
    %308 = vmatprep.mubr.f32.mxu0 0.0
    %v309 = vand.u32 %v225, 4294901760
    %v310 = vsub.f32 %v225, %v309
    %v311 = vand.u32 %v310, 4294901760
    %v312 = vsub.f32 %v310, %v311
    %v313 = vand.u32 %v312, 4294901760
    %314 = vmatmul.mubr.f32.gmra.mxu0 %v313
    %v315 = vpop.f32.mrf.mxu0
    %v316 = vadd.f32 %v206, %v315
    %v317 = vpop.f32.mrf.mxu0
    %v318 = vadd.f32 %v206, %v317
    %319 = vmatprep.mubr.f32.mxu0 0.0
    %v320 = vand.u32 %v228, 4294901760
    %v321 = vsub.f32 %v228, %v320
    %v322 = vand.u32 %v321, 4294901760
    %v323 = vsub.f32 %v321, %v322
    %v324 = vand.u32 %v323, 4294901760
    %325 = vmatmul.mubr.f32.gmra.mxu0 %v324
    %v326 = vpop.f32.mrf.mxu0
    %v327 = vadd.f32 %v211, %v326
    %v328 = vpop.f32.mrf.mxu0
    %v329 = vadd.f32 %v211, %v328
    %330 = vmatprep.mubr.f32.mxu0 0.0
    %v331 = vand.u32 %v231, 4294901760
    %v332 = vsub.f32 %v231, %v331
    %v333 = vand.u32 %v332, 4294901760
    %v334 = vsub.f32 %v332, %v333
    %v335 = vand.u32 %v334, 4294901760
    %336 = vmatmul.mubr.f32.gmra.mxu0 %v335
    %v337 = vpop.f32.mrf.mxu0
    %v338 = vadd.f32 %v216, %v337
    %v339 = vpop.f32.mrf.mxu0
    %v340 = vadd.f32 %v216, %v339
    %341 = vmatprep.mubr.f32.mxu0 0.0
    %v342 = vand.u32 %v234, 4294901760
    %v343 = vsub.f32 %v234, %v342
    %v344 = vand.u32 %v343, 4294901760
    %v345 = vsub.f32 %v343, %v344
    %v346 = vand.u32 %v345, 4294901760
    %347 = vmatmul.mubr.f32.gmra.mxu0 %v346
    %v348 = vpop.f32.mrf.mxu0
    %v349 = vadd.f32 %v221, %v348
    %v350 = vpop.f32.mrf.mxu0
    %v351 = vadd.f32 %v221, %v350
    %352 = vdwg.mxu0
    %353 = vmatprep.subr.mxu0 0.0
    %354 = vmatpush1.msra.mxu0 0.0
    %355 = vmatprep.subr.mxu0 0.0
    %356 = vmatpush1.msra.mxu0 0.0
    %357 = vmatprep.subr.mxu0 0.0
    %358 = vmatpush1.msra.mxu0 0.0
    %359 = vmatprep.subr.mxu0 0.0
    %360 = vmatpush1.msra.mxu0 0.0
    %361 = vmatprep.subr.mxu0 0.0
    %362 = vmatpush1.msra.mxu0 0.0
    %363 = vmatprep.subr.mxu0 0.0
    %364 = vmatpush1.msra.mxu0 0.0
    %365 = vmatprep.subr.mxu0 0.0
    %366 = vmatpush1.msra.mxu0 0.0
    %367 = vmatprep.subr.mxu0 0.0
    %368 = vmatpush1.msra.mxu0 0.0
    %369 = vmatprep.subr.mxu0 0.0
    %370 = vmatpush1.msra.mxu0 0.0
    %371 = vmatprep.subr.mxu0 0.0
    %372 = vmatpush1.msra.mxu0 0.0
    %373 = vmatprep.subr.mxu0 0.0
    %374 = vmatpush1.msra.mxu0 0.0
    %375 = vmatprep.subr.mxu0 0.0
    %376 = vmatpush1.msra.mxu0 0.0
    %v377 = vand.u32 %v202, 4294901760
    %v378 = vsub.f32 %v202, %v377
    %v379 = vand.u32 %v378, 4294901760
    %v380 = vsub.f32 %v378, %v379
    %v381 = vand.u32 %v380, 4294901760
    %382 = vmatprep.subr.mxu0 %v381
    %v383 = vand.u32 %v201, 4294901760
    %v384 = vsub.f32 %v201, %v383
    %v385 = vand.u32 %v384, 4294901760
    %v386 = vsub.f32 %v384, %v385
    %v387 = vand.u32 %v386, 4294901760
    %388 = vmatpush1.msra.mxu0 %v387
    %v389 = vand.u32 %v200, 4294901760
    %v390 = vsub.f32 %v200, %v389
    %v391 = vand.u32 %v390, 4294901760
    %v392 = vsub.f32 %v390, %v391
    %v393 = vand.u32 %v392, 4294901760
    %394 = vmatprep.subr.mxu0 %v393
    %v395 = vand.u32 %v199, 4294901760
    %v396 = vsub.f32 %v199, %v395
    %v397 = vand.u32 %v396, 4294901760
    %v398 = vsub.f32 %v396, %v397
    %v399 = vand.u32 %v398, 4294901760
    %400 = vmatpush1.msra.mxu0 %v399
    %v401 = vand.u32 %v198, 4294901760
    %v402 = vsub.f32 %v198, %v401
    %v403 = vand.u32 %v402, 4294901760
    %v404 = vsub.f32 %v402, %v403
    %v405 = vand.u32 %v404, 4294901760
    %406 = vmatprep.subr.mxu0 %v405
    %v407 = vand.u32 %v197, 4294901760
    %v408 = vsub.f32 %v197, %v407
    %v409 = vand.u32 %v408, 4294901760
    %v410 = vsub.f32 %v408, %v409
    %v411 = vand.u32 %v410, 4294901760
    %412 = vmatpush1.msra.mxu0 %v411
    %v413 = vand.u32 %v196, 4294901760
    %v414 = vsub.f32 %v196, %v413
    %v415 = vand.u32 %v414, 4294901760
    %v416 = vsub.f32 %v414, %v415
    %v417 = vand.u32 %v416, 4294901760
    %418 = vmatprep.subr.mxu0 %v417
    %v419 = vand.u32 %v195, 4294901760
    %v420 = vsub.f32 %v195, %v419
    %v421 = vand.u32 %v420, 4294901760
    %v422 = vsub.f32 %v420, %v421
    %v423 = vand.u32 %v422, 4294901760
    %424 = vmatpush1.msra.mxu0 %v423
    %425 = vmatprep.subr.mxu0 0.0
    %426 = vmatpush2.msra.mxu0 0.0
    %427 = vmatprep.subr.mxu0 0.0
    %428 = vmatpush2.msra.mxu0 0.0
    %429 = vmatprep.subr.mxu0 0.0
    %430 = vmatpush2.msra.mxu0 0.0
    %431 = vmatprep.subr.mxu0 0.0
    %432 = vmatpush2.msra.mxu0 0.0
    %433 = vmatprep.subr.mxu0 0.0
    %434 = vmatpush2.msra.mxu0 0.0
    %435 = vmatprep.subr.mxu0 0.0
    %436 = vmatpush2.msra.mxu0 0.0
    %437 = vmatprep.subr.mxu0 0.0
    %438 = vmatpush2.msra.mxu0 0.0
    %439 = vmatprep.subr.mxu0 0.0
    %440 = vmatpush2.msra.mxu0 0.0
    %441 = vmatprep.subr.mxu0 0.0
    %442 = vmatpush2.msra.mxu0 0.0
    %443 = vmatprep.subr.mxu0 0.0
    %444 = vmatpush2.msra.mxu0 0.0
    %445 = vmatprep.subr.mxu0 0.0
    %446 = vmatpush2.msra.mxu0 0.0
    %447 = vmatprep.subr.mxu0 0.0
    %448 = vmatpush2.msra.mxu0 0.0
    %449 = vmatprep.subr.mxu0 0.0
    %450 = vmatpush2.msra.mxu0 0.0
    %451 = vmatprep.subr.mxu0 0.0
    %452 = vmatpush2.msra.mxu0 0.0
    %453 = vmatprep.subr.mxu0 0.0
    %454 = vmatpush2.msra.mxu0 0.0
    %455 = vmatprep.subr.mxu0 0.0
    %456 = vmatpush2.msra.mxu0 0.0
    %457 = vmatprep.mubr.f32.mxu0 0.0
    %v458 = vand.u32 %v225, 4294901760
    %459 = vmatmul.mubr.f32.gmra.mxu0 %v458
    %v460 = vpop.f32.mrf.mxu0
    %v461 = vadd.f32 %v316, %v460
    %v462 = vpop.f32.mrf.mxu0
    %v463 = vadd.f32 %v318, %v462
    %464 = vmatprep.mubr.f32.mxu0 0.0
    %v465 = vand.u32 %v228, 4294901760
    %466 = vmatmul.mubr.f32.gmra.mxu0 %v465
    %v467 = vpop.f32.mrf.mxu0
    %v468 = vadd.f32 %v327, %v467
    %v469 = vpop.f32.mrf.mxu0
    %v470 = vadd.f32 %v329, %v469
    %471 = vmatprep.mubr.f32.mxu0 0.0
    %v472 = vand.u32 %v231, 4294901760
    %473 = vmatmul.mubr.f32.gmra.mxu0 %v472
    %v474 = vpop.f32.mrf.mxu0
    %v475 = vadd.f32 %v338, %v474
    %v476 = vpop.f32.mrf.mxu0
    %v477 = vadd.f32 %v340, %v476
    %478 = vmatprep.mubr.f32.mxu0 0.0
    %v479 = vand.u32 %v234, 4294901760
    %480 = vmatmul.mubr.f32.gmra.mxu0 %v479
    %v481 = vpop.f32.mrf.mxu0
    %v482 = vadd.f32 %v349, %v481
    %v483 = vpop.f32.mrf.mxu0
    %v484 = vadd.f32 %v351, %v483
    %485 = vdwg.mxu0
    %486 = vmatprep.subr.mxu0 0.0
    %487 = vmatpush1.msra.mxu0 0.0
    %488 = vmatprep.subr.mxu0 0.0
    %489 = vmatpush1.msra.mxu0 0.0
    %490 = vmatprep.subr.mxu0 0.0
    %491 = vmatpush1.msra.mxu0 0.0
    %492 = vmatprep.subr.mxu0 0.0
    %493 = vmatpush1.msra.mxu0 0.0
    %494 = vmatprep.subr.mxu0 0.0
    %495 = vmatpush1.msra.mxu0 0.0
    %496 = vmatprep.subr.mxu0 0.0
    %497 = vmatpush1.msra.mxu0 0.0
    %498 = vmatprep.subr.mxu0 0.0
    %499 = vmatpush1.msra.mxu0 0.0
    %500 = vmatprep.subr.mxu0 0.0
    %501 = vmatpush1.msra.mxu0 0.0
    %502 = vmatprep.subr.mxu0 0.0
    %503 = vmatpush1.msra.mxu0 0.0
    %504 = vmatprep.subr.mxu0 0.0
    %505 = vmatpush1.msra.mxu0 0.0
    %506 = vmatprep.subr.mxu0 0.0
    %507 = vmatpush1.msra.mxu0 0.0
    %508 = vmatprep.subr.mxu0 0.0
    %509 = vmatpush1.msra.mxu0 0.0
    %v510 = vand.u32 %v202, 4294901760
    %v511 = vsub.f32 %v202, %v510
    %512 = vmatprep.subr.mxu0 %v511
    %v513 = vand.u32 %v201, 4294901760
    %v514 = vsub.f32 %v201, %v513
    %515 = vmatpush1.msra.mxu0 %v514
    %v516 = vand.u32 %v200, 4294901760
    %v517 = vsub.f32 %v200, %v516
    %518 = vmatprep.subr.mxu0 %v517
    %v519 = vand.u32 %v199, 4294901760
    %v520 = vsub.f32 %v199, %v519
    %521 = vmatpush1.msra.mxu0 %v520
    %v522 = vand.u32 %v198, 4294901760
    %v523 = vsub.f32 %v198, %v522
    %524 = vmatprep.subr.mxu0 %v523
    %v525 = vand.u32 %v197, 4294901760
    %v526 = vsub.f32 %v197, %v525
    %527 = vmatpush1.msra.mxu0 %v526
    %v528 = vand.u32 %v196, 4294901760
    %v529 = vsub.f32 %v196, %v528
    %530 = vmatprep.subr.mxu0 %v529
    %v531 = vand.u32 %v195, 4294901760
    %v532 = vsub.f32 %v195, %v531
    %533 = vmatpush1.msra.mxu0 %v532
    %534 = vmatprep.subr.mxu0 0.0
    %535 = vmatpush2.msra.mxu0 0.0
    %536 = vmatprep.subr.mxu0 0.0
    %537 = vmatpush2.msra.mxu0 0.0
    %538 = vmatprep.subr.mxu0 0.0
    %539 = vmatpush2.msra.mxu0 0.0
    %540 = vmatprep.subr.mxu0 0.0
    %541 = vmatpush2.msra.mxu0 0.0
    %542 = vmatprep.subr.mxu0 0.0
    %543 = vmatpush2.msra.mxu0 0.0
    %544 = vmatprep.subr.mxu0 0.0
    %545 = vmatpush2.msra.mxu0 0.0
    %546 = vmatprep.subr.mxu0 0.0
    %547 = vmatpush2.msra.mxu0 0.0
    %548 = vmatprep.subr.mxu0 0.0
    %549 = vmatpush2.msra.mxu0 0.0
    %550 = vmatprep.subr.mxu0 0.0
    %551 = vmatpush2.msra.mxu0 0.0
    %552 = vmatprep.subr.mxu0 0.0
    %553 = vmatpush2.msra.mxu0 0.0
    %554 = vmatprep.subr.mxu0 0.0
    %555 = vmatpush2.msra.mxu0 0.0
    %556 = vmatprep.subr.mxu0 0.0
    %557 = vmatpush2.msra.mxu0 0.0
    %558 = vmatprep.subr.mxu0 0.0
    %559 = vmatpush2.msra.mxu0 0.0
    %560 = vmatprep.subr.mxu0 0.0
    %561 = vmatpush2.msra.mxu0 0.0
    %562 = vmatprep.subr.mxu0 0.0
    %563 = vmatpush2.msra.mxu0 0.0
    %564 = vmatprep.subr.mxu0 0.0
    %565 = vmatpush2.msra.mxu0 0.0
    %566 = vmatprep.mubr.f32.mxu0 0.0
    %v567 = vand.u32 %v225, 4294901760
    %v568 = vsub.f32 %v225, %v567
    %569 = vmatmul.mubr.f32.gmra.mxu0 %v568
    %v570 = vpop.f32.mrf.mxu0
    %v571 = vadd.f32 %v461, %v570
    %v572 = vpop.f32.mrf.mxu0
    %v573 = vadd.f32 %v463, %v572
    %574 = vmatprep.mubr.f32.mxu0 0.0
    %v575 = vand.u32 %v228, 4294901760
    %v576 = vsub.f32 %v228, %v575
    %577 = vmatmul.mubr.f32.gmra.mxu0 %v576
    %v578 = vpop.f32.mrf.mxu0
    %v579 = vadd.f32 %v468, %v578
    %v580 = vpop.f32.mrf.mxu0
    %v581 = vadd.f32 %v470, %v580
    %582 = vmatprep.mubr.f32.mxu0 0.0
    %v583 = vand.u32 %v231, 4294901760
    %v584 = vsub.f32 %v231, %v583
    %585 = vmatmul.mubr.f32.gmra.mxu0 %v584
    %v586 = vpop.f32.mrf.mxu0
    %v587 = vadd.f32 %v475, %v586
    %v588 = vpop.f32.mrf.mxu0
    %v589 = vadd.f32 %v477, %v588
    %590 = vmatprep.mubr.f32.mxu0 0.0
    %v591 = vand.u32 %v234, 4294901760
    %v592 = vsub.f32 %v234, %v591
    %593 = vmatmul.mubr.f32.gmra.mxu0 %v592
    %v594 = vpop.f32.mrf.mxu0
    %v595 = vadd.f32 %v482, %v594
    %v596 = vpop.f32.mrf.mxu0
    %v597 = vadd.f32 %v484, %v596
    %598 = vdwg.mxu0
    %599 = vmatprep.subr.mxu0 0.0
    %600 = vmatpush1.msra.mxu0 0.0
    %601 = vmatprep.subr.mxu0 0.0
    %602 = vmatpush1.msra.mxu0 0.0
    %603 = vmatprep.subr.mxu0 0.0
    %604 = vmatpush1.msra.mxu0 0.0
    %605 = vmatprep.subr.mxu0 0.0
    %606 = vmatpush1.msra.mxu0 0.0
    %607 = vmatprep.subr.mxu0 0.0
    %608 = vmatpush1.msra.mxu0 0.0
    %609 = vmatprep.subr.mxu0 0.0
    %610 = vmatpush1.msra.mxu0 0.0
    %611 = vmatprep.subr.mxu0 0.0
    %612 = vmatpush1.msra.mxu0 0.0
    %613 = vmatprep.subr.mxu0 0.0
    %614 = vmatpush1.msra.mxu0 0.0
    %615 = vmatprep.subr.mxu0 0.0
    %616 = vmatpush1.msra.mxu0 0.0
    %617 = vmatprep.subr.mxu0 0.0
    %618 = vmatpush1.msra.mxu0 0.0
    %619 = vmatprep.subr.mxu0 0.0
    %620 = vmatpush1.msra.mxu0 0.0
    %621 = vmatprep.subr.mxu0 0.0
    %622 = vmatpush1.msra.mxu0 0.0
    %v623 = vand.u32 %v202, 4294901760
    %624 = vmatprep.subr.mxu0 %v623
    %v625 = vand.u32 %v201, 4294901760
    %626 = vmatpush1.msra.mxu0 %v625
    %v627 = vand.u32 %v200, 4294901760
    %628 = vmatprep.subr.mxu0 %v627
    %v629 = vand.u32 %v199, 4294901760
    %630 = vmatpush1.msra.mxu0 %v629
    %v631 = vand.u32 %v198, 4294901760
    %632 = vmatprep.subr.mxu0 %v631
    %v633 = vand.u32 %v197, 4294901760
    %634 = vmatpush1.msra.mxu0 %v633
    %v635 = vand.u32 %v196, 4294901760
    %636 = vmatprep.subr.mxu0 %v635
    %v637 = vand.u32 %v195, 4294901760
    %638 = vmatpush1.msra.mxu0 %v637
    %639 = vmatprep.subr.mxu0 0.0
    %640 = vmatpush2.msra.mxu0 0.0
    %641 = vmatprep.subr.mxu0 0.0
    %642 = vmatpush2.msra.mxu0 0.0
    %643 = vmatprep.subr.mxu0 0.0
    %644 = vmatpush2.msra.mxu0 0.0
    %645 = vmatprep.subr.mxu0 0.0
    %646 = vmatpush2.msra.mxu0 0.0
    %647 = vmatprep.subr.mxu0 0.0
    %648 = vmatpush2.msra.mxu0 0.0
    %649 = vmatprep.subr.mxu0 0.0
    %650 = vmatpush2.msra.mxu0 0.0
    %651 = vmatprep.subr.mxu0 0.0
    %652 = vmatpush2.msra.mxu0 0.0
    %653 = vmatprep.subr.mxu0 0.0
    %654 = vmatpush2.msra.mxu0 0.0
    %655 = vmatprep.subr.mxu0 0.0
    %656 = vmatpush2.msra.mxu0 0.0
    %657 = vmatprep.subr.mxu0 0.0
    %658 = vmatpush2.msra.mxu0 0.0
    %659 = vmatprep.subr.mxu0 0.0
    %660 = vmatpush2.msra.mxu0 0.0
    %661 = vmatprep.subr.mxu0 0.0
    %662 = vmatpush2.msra.mxu0 0.0
    %663 = vmatprep.subr.mxu0 0.0
    %664 = vmatpush2.msra.mxu0 0.0
    %665 = vmatprep.subr.mxu0 0.0
    %666 = vmatpush2.msra.mxu0 0.0
    %667 = vmatprep.subr.mxu0 0.0
    %668 = vmatpush2.msra.mxu0 0.0
    %669 = vmatprep.subr.mxu0 0.0
    %670 = vmatpush2.msra.mxu0 0.0
    %671 = vmatprep.mubr.f32.mxu0 0.0
    %v672 = vand.u32 %v225, 4294901760
    %v673 = vsub.f32 %v225, %v672
    %v674 = vand.u32 %v673, 4294901760
    %675 = vmatmul.mubr.f32.gmra.mxu0 %v674
    %v676 = vpop.f32.mrf.mxu0
    %v677 = vadd.f32 %v571, %v676
    %v678 = vpop.f32.mrf.mxu0
    %v679 = vadd.f32 %v573, %v678
    %680 = vmatprep.mubr.f32.mxu0 0.0
    %v681 = vand.u32 %v228, 4294901760
    %v682 = vsub.f32 %v228, %v681
    %v683 = vand.u32 %v682, 4294901760
    %684 = vmatmul.mubr.f32.gmra.mxu0 %v683
    %v685 = vpop.f32.mrf.mxu0
    %v686 = vadd.f32 %v579, %v685
    %v687 = vpop.f32.mrf.mxu0
    %v688 = vadd.f32 %v581, %v687
    %689 = vmatprep.mubr.f32.mxu0 0.0
    %v690 = vand.u32 %v231, 4294901760
    %v691 = vsub.f32 %v231, %v690
    %v692 = vand.u32 %v691, 4294901760
    %693 = vmatmul.mubr.f32.gmra.mxu0 %v692
    %v694 = vpop.f32.mrf.mxu0
    %v695 = vadd.f32 %v587, %v694
    %v696 = vpop.f32.mrf.mxu0
    %v697 = vadd.f32 %v589, %v696
    %698 = vmatprep.mubr.f32.mxu0 0.0
    %v699 = vand.u32 %v234, 4294901760
    %v700 = vsub.f32 %v234, %v699
    %v701 = vand.u32 %v700, 4294901760
    %702 = vmatmul.mubr.f32.gmra.mxu0 %v701
    %v703 = vpop.f32.mrf.mxu0
    %v704 = vadd.f32 %v595, %v703
    %v705 = vpop.f32.mrf.mxu0
    %v706 = vadd.f32 %v597, %v705
    %707 = vdwg.mxu0
    %708 = vmatprep.subr.mxu0 0.0
    %709 = vmatpush1.msra.mxu0 0.0
    %710 = vmatprep.subr.mxu0 0.0
    %711 = vmatpush1.msra.mxu0 0.0
    %712 = vmatprep.subr.mxu0 0.0
    %713 = vmatpush1.msra.mxu0 0.0
    %714 = vmatprep.subr.mxu0 0.0
    %715 = vmatpush1.msra.mxu0 0.0
    %716 = vmatprep.subr.mxu0 0.0
    %717 = vmatpush1.msra.mxu0 0.0
    %718 = vmatprep.subr.mxu0 0.0
    %719 = vmatpush1.msra.mxu0 0.0
    %720 = vmatprep.subr.mxu0 0.0
    %721 = vmatpush1.msra.mxu0 0.0
    %722 = vmatprep.subr.mxu0 0.0
    %723 = vmatpush1.msra.mxu0 0.0
    %724 = vmatprep.subr.mxu0 0.0
    %725 = vmatpush1.msra.mxu0 0.0
    %726 = vmatprep.subr.mxu0 0.0
    %727 = vmatpush1.msra.mxu0 0.0
    %728 = vmatprep.subr.mxu0 0.0
    %729 = vmatpush1.msra.mxu0 0.0
    %730 = vmatprep.subr.mxu0 0.0
    %731 = vmatpush1.msra.mxu0 0.0
    %v732 = vand.u32 %v202, 4294901760
    %v733 = vsub.f32 %v202, %v732
    %v734 = vand.u32 %v733, 4294901760
    %735 = vmatprep.subr.mxu0 %v734
    %v736 = vand.u32 %v201, 4294901760
    %v737 = vsub.f32 %v201, %v736
    %v738 = vand.u32 %v737, 4294901760
    %739 = vmatpush1.msra.mxu0 %v738
    %v740 = vand.u32 %v200, 4294901760
    %v741 = vsub.f32 %v200, %v740
    %v742 = vand.u32 %v741, 4294901760
    %743 = vmatprep.subr.mxu0 %v742
    %v744 = vand.u32 %v199, 4294901760
    %v745 = vsub.f32 %v199, %v744
    %v746 = vand.u32 %v745, 4294901760
    %747 = vmatpush1.msra.mxu0 %v746
    %v748 = vand.u32 %v198, 4294901760
    %v749 = vsub.f32 %v198, %v748
    %v750 = vand.u32 %v749, 4294901760
    %751 = vmatprep.subr.mxu0 %v750
    %v752 = vand.u32 %v197, 4294901760
    %v753 = vsub.f32 %v197, %v752
    %v754 = vand.u32 %v753, 4294901760
    %755 = vmatpush1.msra.mxu0 %v754
    %v756 = vand.u32 %v196, 4294901760
    %v757 = vsub.f32 %v196, %v756
    %v758 = vand.u32 %v757, 4294901760
    %759 = vmatprep.subr.mxu0 %v758
    %v760 = vand.u32 %v195, 4294901760
    %v761 = vsub.f32 %v195, %v760
    %v762 = vand.u32 %v761, 4294901760
    %763 = vmatpush1.msra.mxu0 %v762
    %764 = vmatprep.subr.mxu0 0.0
    %765 = vmatpush2.msra.mxu0 0.0
    %766 = vmatprep.subr.mxu0 0.0
    %767 = vmatpush2.msra.mxu0 0.0
    %768 = vmatprep.subr.mxu0 0.0
    %769 = vmatpush2.msra.mxu0 0.0
    %770 = vmatprep.subr.mxu0 0.0
    %771 = vmatpush2.msra.mxu0 0.0
    %772 = vmatprep.subr.mxu0 0.0
    %773 = vmatpush2.msra.mxu0 0.0
    %774 = vmatprep.subr.mxu0 0.0
    %775 = vmatpush2.msra.mxu0 0.0
    %776 = vmatprep.subr.mxu0 0.0
    %777 = vmatpush2.msra.mxu0 0.0
    %778 = vmatprep.subr.mxu0 0.0
    %779 = vmatpush2.msra.mxu0 0.0
    %780 = vmatprep.subr.mxu0 0.0
    %781 = vmatpush2.msra.mxu0 0.0
    %782 = vmatprep.subr.mxu0 0.0
    %783 = vmatpush2.msra.mxu0 0.0
    %784 = vmatprep.subr.mxu0 0.0
    %785 = vmatpush2.msra.mxu0 0.0
    %786 = vmatprep.subr.mxu0 0.0
    %787 = vmatpush2.msra.mxu0 0.0
    %788 = vmatprep.subr.mxu0 0.0
    %789 = vmatpush2.msra.mxu0 0.0
    %790 = vmatprep.subr.mxu0 0.0
    %791 = vmatpush2.msra.mxu0 0.0
    %792 = vmatprep.subr.mxu0 0.0
    %793 = vmatpush2.msra.mxu0 0.0
    %794 = vmatprep.subr.mxu0 0.0
    %795 = vmatpush2.msra.mxu0 0.0
    %796 = vmatprep.mubr.f32.mxu0 0.0
    %v797 = vand.u32 %v225, 4294901760
    %798 = vmatmul.mubr.f32.gmra.mxu0 %v797
    %v799 = vpop.f32.mrf.mxu0
    %v800 = vadd.f32 %v677, %v799
    %v801 = vpop.f32.mrf.mxu0
    %v802 = vadd.f32 %v679, %v801
    %803 = vmatprep.mubr.f32.mxu0 0.0
    %v804 = vand.u32 %v228, 4294901760
    %805 = vmatmul.mubr.f32.gmra.mxu0 %v804
    %v806 = vpop.f32.mrf.mxu0
    %v807 = vadd.f32 %v686, %v806
    %v808 = vpop.f32.mrf.mxu0
    %v809 = vadd.f32 %v688, %v808
    %810 = vmatprep.mubr.f32.mxu0 0.0
    %v811 = vand.u32 %v231, 4294901760
    %812 = vmatmul.mubr.f32.gmra.mxu0 %v811
    %v813 = vpop.f32.mrf.mxu0
    %v814 = vadd.f32 %v695, %v813
    %v815 = vpop.f32.mrf.mxu0
    %v816 = vadd.f32 %v697, %v815
    %817 = vmatprep.mubr.f32.mxu0 0.0
    %v818 = vand.u32 %v234, 4294901760
    %819 = vmatmul.mubr.f32.gmra.mxu0 %v818
    %v820 = vpop.f32.mrf.mxu0
    %v821 = vadd.f32 %v704, %v820
    %v822 = vpop.f32.mrf.mxu0
    %v823 = vadd.f32 %v706, %v822
    %824 = vdwg.mxu0
    %825 = vmatprep.subr.mxu0 0.0
    %826 = vmatpush1.msra.mxu0 0.0
    %827 = vmatprep.subr.mxu0 0.0
    %828 = vmatpush1.msra.mxu0 0.0
    %829 = vmatprep.subr.mxu0 0.0
    %830 = vmatpush1.msra.mxu0 0.0
    %831 = vmatprep.subr.mxu0 0.0
    %832 = vmatpush1.msra.mxu0 0.0
    %833 = vmatprep.subr.mxu0 0.0
    %834 = vmatpush1.msra.mxu0 0.0
    %835 = vmatprep.subr.mxu0 0.0
    %836 = vmatpush1.msra.mxu0 0.0
    %837 = vmatprep.subr.mxu0 0.0
    %838 = vmatpush1.msra.mxu0 0.0
    %839 = vmatprep.subr.mxu0 0.0
    %840 = vmatpush1.msra.mxu0 0.0
    %841 = vmatprep.subr.mxu0 0.0
    %842 = vmatpush1.msra.mxu0 0.0
    %843 = vmatprep.subr.mxu0 0.0
    %844 = vmatpush1.msra.mxu0 0.0
    %845 = vmatprep.subr.mxu0 0.0
    %846 = vmatpush1.msra.mxu0 0.0
    %847 = vmatprep.subr.mxu0 0.0
    %848 = vmatpush1.msra.mxu0 0.0
    %v849 = vand.u32 %v202, 4294901760
    %850 = vmatprep.subr.mxu0 %v849
    %v851 = vand.u32 %v201, 4294901760
    %852 = vmatpush1.msra.mxu0 %v851
    %v853 = vand.u32 %v200, 4294901760
    %854 = vmatprep.subr.mxu0 %v853
    %v855 = vand.u32 %v199, 4294901760
    %856 = vmatpush1.msra.mxu0 %v855
    %v857 = vand.u32 %v198, 4294901760
    %858 = vmatprep.subr.mxu0 %v857
    %v859 = vand.u32 %v197, 4294901760
    %860 = vmatpush1.msra.mxu0 %v859
    %v861 = vand.u32 %v196, 4294901760
    %862 = vmatprep.subr.mxu0 %v861
    %v863 = vand.u32 %v195, 4294901760
    %864 = vmatpush1.msra.mxu0 %v863
    %865 = vmatprep.subr.mxu0 0.0
    %866 = vmatpush2.msra.mxu0 0.0
    %867 = vmatprep.subr.mxu0 0.0
    %868 = vmatpush2.msra.mxu0 0.0
    %869 = vmatprep.subr.mxu0 0.0
    %870 = vmatpush2.msra.mxu0 0.0
    %871 = vmatprep.subr.mxu0 0.0
    %872 = vmatpush2.msra.mxu0 0.0
    %873 = vmatprep.subr.mxu0 0.0
    %874 = vmatpush2.msra.mxu0 0.0
    %875 = vmatprep.subr.mxu0 0.0
    %876 = vmatpush2.msra.mxu0 0.0
    %877 = vmatprep.subr.mxu0 0.0
    %878 = vmatpush2.msra.mxu0 0.0
    %879 = vmatprep.subr.mxu0 0.0
    %880 = vmatpush2.msra.mxu0 0.0
    %881 = vmatprep.subr.mxu0 0.0
    %882 = vmatpush2.msra.mxu0 0.0
    %883 = vmatprep.subr.mxu0 0.0
    %884 = vmatpush2.msra.mxu0 0.0
    %885 = vmatprep.subr.mxu0 0.0
    %886 = vmatpush2.msra.mxu0 0.0
    %887 = vmatprep.subr.mxu0 0.0
    %888 = vmatpush2.msra.mxu0 0.0
    %889 = vmatprep.subr.mxu0 0.0
    %890 = vmatpush2.msra.mxu0 0.0
    %891 = vmatprep.subr.mxu0 0.0
    %892 = vmatpush2.msra.mxu0 0.0
    %893 = vmatprep.subr.mxu0 0.0
    %894 = vmatpush2.msra.mxu0 0.0
    %895 = vmatprep.subr.mxu0 0.0
    %896 = vmatpush2.msra.mxu0 0.0
    %897 = vmatprep.mubr.f32.mxu0 0.0
    %v898 = vand.u32 %v225, 4294901760
    %899 = vmatmul.mubr.f32.gmra.mxu0 %v898
    %v900 = vpop.f32.mrf.mxu0
    %v901 = vadd.f32 %v800, %v900
    %v902 = vpop.f32.mrf.mxu0
    %v903 = vadd.f32 %v802, %v902
    %904 = vmatprep.mubr.f32.mxu0 0.0
    %v905 = vand.u32 %v228, 4294901760
    %906 = vmatmul.mubr.f32.gmra.mxu0 %v905
    %v907 = vpop.f32.mrf.mxu0
    %v908 = vadd.f32 %v807, %v907
    %v909 = vpop.f32.mrf.mxu0
    %v910 = vadd.f32 %v809, %v909
    %911 = vmatprep.mubr.f32.mxu0 0.0
    %v912 = vand.u32 %v231, 4294901760
    %913 = vmatmul.mubr.f32.gmra.mxu0 %v912
    %v914 = vpop.f32.mrf.mxu0
    %v915 = vadd.f32 %v814, %v914
    %v916 = vpop.f32.mrf.mxu0
    %v917 = vadd.f32 %v816, %v916
    %918 = vmatprep.mubr.f32.mxu0 0.0
    %v919 = vand.u32 %v234, 4294901760
    %920 = vmatmul.mubr.f32.gmra.mxu0 %v919
    %v921 = vpop.f32.mrf.mxu0
    %v922 = vadd.f32 %v821, %v921
    %v923 = vpop.f32.mrf.mxu0
    %v924 = vadd.f32 %v823, %v923
    %925 = vdwg.mxu0
    %v926 = vtanh.pop %v901
    %v927 = vtanh.pop %v903
    %v928 = vtanh.pop %v908
    %v929 = vtanh.pop %v910
    %v930 = vtanh.pop %v915
    %v931 = vtanh.pop %v917
    %v932 = vtanh.pop %v922
    %v933 = vtanh.pop %v924
    %935 = vset.pattern.permute.xlu0 0
    %936 = vperm.xlu0 %935, %v55
    %v937 = vpop.permute.xlu0 %936
    %940 = vset.pattern.permute.xlu0 0
    %941 = vperm.xlu0 %940, %v56
    %v942 = vpop.permute.xlu0 %941
    %945 = vset.pattern.permute.xlu0 0
    %946 = vperm.xlu0 %945, %v57
    %v947 = vpop.permute.xlu0 %946
    %950 = vset.pattern.permute.xlu0 0
    %951 = vperm.xlu0 %950, %v58
    %v952 = vpop.permute.xlu0 %951
    %v955 = vsel %vm223, %v39, 0
    %v958 = vsel %vm223, %v40, 0
    %v961 = vsel %vm223, %v41, 0
    %v964 = vsel %vm223, %v42, 0
    %966 = vmatprep.subr.mxu0 0.0
    %967 = vmatpush1.msra.mxu0 0.0
    %968 = vmatprep.subr.mxu0 0.0
    %969 = vmatpush1.msra.mxu0 0.0
    %970 = vmatprep.subr.mxu0 0.0
    %971 = vmatpush1.msra.mxu0 0.0
    %972 = vmatprep.subr.mxu0 0.0
    %973 = vmatpush1.msra.mxu0 0.0
    %974 = vmatprep.subr.mxu0 0.0
    %975 = vmatpush1.msra.mxu0 0.0
    %976 = vmatprep.subr.mxu0 0.0
    %977 = vmatpush1.msra.mxu0 0.0
    %978 = vmatprep.subr.mxu0 0.0
    %979 = vmatpush1.msra.mxu0 0.0
    %980 = vmatprep.subr.mxu0 0.0
    %981 = vmatpush1.msra.mxu0 0.0
    %982 = vmatprep.subr.mxu0 0.0
    %983 = vmatpush1.msra.mxu0 0.0
    %984 = vmatprep.subr.mxu0 0.0
    %985 = vmatpush1.msra.mxu0 0.0
    %986 = vmatprep.subr.mxu0 0.0
    %987 = vmatpush1.msra.mxu0 0.0
    %988 = vmatprep.subr.mxu0 0.0
    %989 = vmatpush1.msra.mxu0 0.0
    %v990 = vand.u32 %v933, 4294901760
    %991 = vmatprep.subr.mxu0 %v990
    %v992 = vand.u32 %v932, 4294901760
    %993 = vmatpush1.msra.mxu0 %v992
    %v994 = vand.u32 %v931, 4294901760
    %995 = vmatprep.subr.mxu0 %v994
    %v996 = vand.u32 %v930, 4294901760
    %997 = vmatpush1.msra.mxu0 %v996
    %v998 = vand.u32 %v929, 4294901760
    %999 = vmatprep.subr.mxu0 %v998
    %v1000 = vand.u32 %v928, 4294901760
    %1001 = vmatpush1.msra.mxu0 %v1000
    %v1002 = vand.u32 %v927, 4294901760
    %1003 = vmatprep.subr.mxu0 %v1002
    %v1004 = vand.u32 %v926, 4294901760
    %1005 = vmatpush1.msra.mxu0 %v1004
    %1006 = vmatprep.subr.mxu0 0.0
    %1007 = vmatpush2.msra.mxu0 0.0
    %1008 = vmatprep.subr.mxu0 0.0
    %1009 = vmatpush2.msra.mxu0 0.0
    %1010 = vmatprep.subr.mxu0 0.0
    %1011 = vmatpush2.msra.mxu0 0.0
    %1012 = vmatprep.subr.mxu0 0.0
    %1013 = vmatpush2.msra.mxu0 0.0
    %1014 = vmatprep.subr.mxu0 0.0
    %1015 = vmatpush2.msra.mxu0 0.0
    %1016 = vmatprep.subr.mxu0 0.0
    %1017 = vmatpush2.msra.mxu0 0.0
    %1018 = vmatprep.subr.mxu0 0.0
    %1019 = vmatpush2.msra.mxu0 0.0
    %1020 = vmatprep.subr.mxu0 0.0
    %1021 = vmatpush2.msra.mxu0 0.0
    %1022 = vmatprep.subr.mxu0 0.0
    %1023 = vmatpush2.msra.mxu0 0.0
    %1024 = vmatprep.subr.mxu0 0.0
    %1025 = vmatpush2.msra.mxu0 0.0
    %1026 = vmatprep.subr.mxu0 0.0
    %1027 = vmatpush2.msra.mxu0 0.0
    %1028 = vmatprep.subr.mxu0 0.0
    %1029 = vmatpush2.msra.mxu0 0.0
    %1030 = vmatprep.subr.mxu0 0.0
    %1031 = vmatpush2.msra.mxu0 0.0
    %1032 = vmatprep.subr.mxu0 0.0
    %1033 = vmatpush2.msra.mxu0 0.0
    %1034 = vmatprep.subr.mxu0 0.0
    %1035 = vmatpush2.msra.mxu0 0.0
    %1036 = vmatprep.subr.mxu0 0.0
    %1037 = vmatpush2.msra.mxu0 0.0
    %1038 = vmatprep.mubr.f32.mxu0 0.0
    %v1039 = vand.u32 %v955, 4294901760
    %v1040 = vsub.f32 %v955, %v1039
    %v1041 = vand.u32 %v1040, 4294901760
    %v1042 = vsub.f32 %v1040, %v1041
    %v1043 = vand.u32 %v1042, 4294901760
    %1044 = vmatmul.mubr.f32.gmra.mxu0 %v1043
    %v1045 = vpop.f32.mrf.mxu0
    %v1046 = vadd.f32 %v937, %v1045
    %v1047 = vpop.f32.mrf.mxu0
    %v1048 = vadd.f32 %v937, %v1047
    %1049 = vmatprep.mubr.f32.mxu0 0.0
    %v1050 = vand.u32 %v958, 4294901760
    %v1051 = vsub.f32 %v958, %v1050
    %v1052 = vand.u32 %v1051, 4294901760
    %v1053 = vsub.f32 %v1051, %v1052
    %v1054 = vand.u32 %v1053, 4294901760
    %1055 = vmatmul.mubr.f32.gmra.mxu0 %v1054
    %v1056 = vpop.f32.mrf.mxu0
    %v1057 = vadd.f32 %v942, %v1056
    %v1058 = vpop.f32.mrf.mxu0
    %v1059 = vadd.f32 %v942, %v1058
    %1060 = vmatprep.mubr.f32.mxu0 0.0
    %v1061 = vand.u32 %v961, 4294901760
    %v1062 = vsub.f32 %v961, %v1061
    %v1063 = vand.u32 %v1062, 4294901760
    %v1064 = vsub.f32 %v1062, %v1063
    %v1065 = vand.u32 %v1064, 4294901760
    %1066 = vmatmul.mubr.f32.gmra.mxu0 %v1065
    %v1067 = vpop.f32.mrf.mxu0
    %v1068 = vadd.f32 %v947, %v1067
    %v1069 = vpop.f32.mrf.mxu0
    %v1070 = vadd.f32 %v947, %v1069
    %1071 = vmatprep.mubr.f32.mxu0 0.0
    %v1072 = vand.u32 %v964, 4294901760
    %v1073 = vsub.f32 %v964, %v1072
    %v1074 = vand.u32 %v1073, 4294901760
    %v1075 = vsub.f32 %v1073, %v1074
    %v1076 = vand.u32 %v1075, 4294901760
    %1077 = vmatmul.mubr.f32.gmra.mxu0 %v1076
    %v1078 = vpop.f32.mrf.mxu0
    %v1079 = vadd.f32 %v952, %v1078
    %v1080 = vpop.f32.mrf.mxu0
    %v1081 = vadd.f32 %v952, %v1080
    %1082 = vdwg.mxu0
    %1083 = vmatprep.subr.mxu0 0.0
    %1084 = vmatpush1.msra.mxu0 0.0
    %1085 = vmatprep.subr.mxu0 0.0
    %1086 = vmatpush1.msra.mxu0 0.0
    %1087 = vmatprep.subr.mxu0 0.0
    %1088 = vmatpush1.msra.mxu0 0.0
    %1089 = vmatprep.subr.mxu0 0.0
    %1090 = vmatpush1.msra.mxu0 0.0
    %1091 = vmatprep.subr.mxu0 0.0
    %1092 = vmatpush1.msra.mxu0 0.0
    %1093 = vmatprep.subr.mxu0 0.0
    %1094 = vmatpush1.msra.mxu0 0.0
    %1095 = vmatprep.subr.mxu0 0.0
    %1096 = vmatpush1.msra.mxu0 0.0
    %1097 = vmatprep.subr.mxu0 0.0
    %1098 = vmatpush1.msra.mxu0 0.0
    %1099 = vmatprep.subr.mxu0 0.0
    %1100 = vmatpush1.msra.mxu0 0.0
    %1101 = vmatprep.subr.mxu0 0.0
    %1102 = vmatpush1.msra.mxu0 0.0
    %1103 = vmatprep.subr.mxu0 0.0
    %1104 = vmatpush1.msra.mxu0 0.0
    %1105 = vmatprep.subr.mxu0 0.0
    %1106 = vmatpush1.msra.mxu0 0.0
    %v1107 = vand.u32 %v933, 4294901760
    %v1108 = vsub.f32 %v933, %v1107
    %v1109 = vand.u32 %v1108, 4294901760
    %v1110 = vsub.f32 %v1108, %v1109
    %v1111 = vand.u32 %v1110, 4294901760
    %1112 = vmatprep.subr.mxu0 %v1111
    %v1113 = vand.u32 %v932, 4294901760
    %v1114 = vsub.f32 %v932, %v1113
    %v1115 = vand.u32 %v1114, 4294901760
    %v1116 = vsub.f32 %v1114, %v1115
    %v1117 = vand.u32 %v1116, 4294901760
    %1118 = vmatpush1.msra.mxu0 %v1117
    %v1119 = vand.u32 %v931, 4294901760
    %v1120 = vsub.f32 %v931, %v1119
    %v1121 = vand.u32 %v1120, 4294901760
    %v1122 = vsub.f32 %v1120, %v1121
    %v1123 = vand.u32 %v1122, 4294901760
    %1124 = vmatprep.subr.mxu0 %v1123
    %v1125 = vand.u32 %v930, 4294901760
    %v1126 = vsub.f32 %v930, %v1125
    %v1127 = vand.u32 %v1126, 4294901760
    %v1128 = vsub.f32 %v1126, %v1127
    %v1129 = vand.u32 %v1128, 4294901760
    %1130 = vmatpush1.msra.mxu0 %v1129
    %v1131 = vand.u32 %v929, 4294901760
    %v1132 = vsub.f32 %v929, %v1131
    %v1133 = vand.u32 %v1132, 4294901760
    %v1134 = vsub.f32 %v1132, %v1133
    %v1135 = vand.u32 %v1134, 4294901760
    %1136 = vmatprep.subr.mxu0 %v1135
    %v1137 = vand.u32 %v928, 4294901760
    %v1138 = vsub.f32 %v928, %v1137
    %v1139 = vand.u32 %v1138, 4294901760
    %v1140 = vsub.f32 %v1138, %v1139
    %v1141 = vand.u32 %v1140, 4294901760
    %1142 = vmatpush1.msra.mxu0 %v1141
    %v1143 = vand.u32 %v927, 4294901760
    %v1144 = vsub.f32 %v927, %v1143
    %v1145 = vand.u32 %v1144, 4294901760
    %v1146 = vsub.f32 %v1144, %v1145
    %v1147 = vand.u32 %v1146, 4294901760
    %1148 = vmatprep.subr.mxu0 %v1147
    %v1149 = vand.u32 %v926, 4294901760
    %v1150 = vsub.f32 %v926, %v1149
    %v1151 = vand.u32 %v1150, 4294901760
    %v1152 = vsub.f32 %v1150, %v1151
    %v1153 = vand.u32 %v1152, 4294901760
    %1154 = vmatpush1.msra.mxu0 %v1153
    %1155 = vmatprep.subr.mxu0 0.0
    %1156 = vmatpush2.msra.mxu0 0.0
    %1157 = vmatprep.subr.mxu0 0.0
    %1158 = vmatpush2.msra.mxu0 0.0
    %1159 = vmatprep.subr.mxu0 0.0
    %1160 = vmatpush2.msra.mxu0 0.0
    %1161 = vmatprep.subr.mxu0 0.0
    %1162 = vmatpush2.msra.mxu0 0.0
    %1163 = vmatprep.subr.mxu0 0.0
    %1164 = vmatpush2.msra.mxu0 0.0
    %1165 = vmatprep.subr.mxu0 0.0
    %1166 = vmatpush2.msra.mxu0 0.0
    %1167 = vmatprep.subr.mxu0 0.0
    %1168 = vmatpush2.msra.mxu0 0.0
    %1169 = vmatprep.subr.mxu0 0.0
    %1170 = vmatpush2.msra.mxu0 0.0
    %1171 = vmatprep.subr.mxu0 0.0
    %1172 = vmatpush2.msra.mxu0 0.0
    %1173 = vmatprep.subr.mxu0 0.0
    %1174 = vmatpush2.msra.mxu0 0.0
    %1175 = vmatprep.subr.mxu0 0.0
    %1176 = vmatpush2.msra.mxu0 0.0
    %1177 = vmatprep.subr.mxu0 0.0
    %1178 = vmatpush2.msra.mxu0 0.0
    %1179 = vmatprep.subr.mxu0 0.0
    %1180 = vmatpush2.msra.mxu0 0.0
    %1181 = vmatprep.subr.mxu0 0.0
    %1182 = vmatpush2.msra.mxu0 0.0
    %1183 = vmatprep.subr.mxu0 0.0
    %1184 = vmatpush2.msra.mxu0 0.0
    %1185 = vmatprep.subr.mxu0 0.0
    %1186 = vmatpush2.msra.mxu0 0.0
    %1187 = vmatprep.mubr.f32.mxu0 0.0
    %v1188 = vand.u32 %v955, 4294901760
    %1189 = vmatmul.mubr.f32.gmra.mxu0 %v1188
    %v1190 = vpop.f32.mrf.mxu0
    %v1191 = vadd.f32 %v1046, %v1190
    %v1192 = vpop.f32.mrf.mxu0
    %v1193 = vadd.f32 %v1048, %v1192
    %1194 = vmatprep.mubr.f32.mxu0 0.0
    %v1195 = vand.u32 %v958, 4294901760
    %1196 = vmatmul.mubr.f32.gmra.mxu0 %v1195
    %v1197 = vpop.f32.mrf.mxu0
    %v1198 = vadd.f32 %v1057, %v1197
    %v1199 = vpop.f32.mrf.mxu0
    %v1200 = vadd.f32 %v1059, %v1199
    %1201 = vmatprep.mubr.f32.mxu0 0.0
    %v1202 = vand.u32 %v961, 4294901760
    %1203 = vmatmul.mubr.f32.gmra.mxu0 %v1202
    %v1204 = vpop.f32.mrf.mxu0
    %v1205 = vadd.f32 %v1068, %v1204
    %v1206 = vpop.f32.mrf.mxu0
    %v1207 = vadd.f32 %v1070, %v1206
    %1208 = vmatprep.mubr.f32.mxu0 0.0
    %v1209 = vand.u32 %v964, 4294901760
    %1210 = vmatmul.mubr.f32.gmra.mxu0 %v1209
    %v1211 = vpop.f32.mrf.mxu0
    %v1212 = vadd.f32 %v1079, %v1211
    %v1213 = vpop.f32.mrf.mxu0
    %v1214 = vadd.f32 %v1081, %v1213
    %1215 = vdwg.mxu0
    %1216 = vmatprep.subr.mxu0 0.0
    %1217 = vmatpush1.msra.mxu0 0.0
    %1218 = vmatprep.subr.mxu0 0.0
    %1219 = vmatpush1.msra.mxu0 0.0
    %1220 = vmatprep.subr.mxu0 0.0
    %1221 = vmatpush1.msra.mxu0 0.0
    %1222 = vmatprep.subr.mxu0 0.0
    %1223 = vmatpush1.msra.mxu0 0.0
    %1224 = vmatprep.subr.mxu0 0.0
    %1225 = vmatpush1.msra.mxu0 0.0
    %1226 = vmatprep.subr.mxu0 0.0
    %1227 = vmatpush1.msra.mxu0 0.0
    %1228 = vmatprep.subr.mxu0 0.0
    %1229 = vmatpush1.msra.mxu0 0.0
    %1230 = vmatprep.subr.mxu0 0.0
    %1231 = vmatpush1.msra.mxu0 0.0
    %1232 = vmatprep.subr.mxu0 0.0
    %1233 = vmatpush1.msra.mxu0 0.0
    %1234 = vmatprep.subr.mxu0 0.0
    %1235 = vmatpush1.msra.mxu0 0.0
    %1236 = vmatprep.subr.mxu0 0.0
    %1237 = vmatpush1.msra.mxu0 0.0
    %1238 = vmatprep.subr.mxu0 0.0
    %1239 = vmatpush1.msra.mxu0 0.0
    %v1240 = vand.u32 %v933, 4294901760
    %v1241 = vsub.f32 %v933, %v1240
    %1242 = vmatprep.subr.mxu0 %v1241
    %v1243 = vand.u32 %v932, 4294901760
    %v1244 = vsub.f32 %v932, %v1243
    %1245 = vmatpush1.msra.mxu0 %v1244
    %v1246 = vand.u32 %v931, 4294901760
    %v1247 = vsub.f32 %v931, %v1246
    %1248 = vmatprep.subr.mxu0 %v1247
    %v1249 = vand.u32 %v930, 4294901760
    %v1250 = vsub.f32 %v930, %v1249
    %1251 = vmatpush1.msra.mxu0 %v1250
    %v1252 = vand.u32 %v929, 4294901760
    %v1253 = vsub.f32 %v929, %v1252
    %1254 = vmatprep.subr.mxu0 %v1253
    %v1255 = vand.u32 %v928, 4294901760
    %v1256 = vsub.f32 %v928, %v1255
    %1257 = vmatpush1.msra.mxu0 %v1256
    %v1258 = vand.u32 %v927, 4294901760
    %v1259 = vsub.f32 %v927, %v1258
    %1260 = vmatprep.subr.mxu0 %v1259
    %v1261 = vand.u32 %v926, 4294901760
    %v1262 = vsub.f32 %v926, %v1261
    %1263 = vmatpush1.msra.mxu0 %v1262
    %1264 = vmatprep.subr.mxu0 0.0
    %1265 = vmatpush2.msra.mxu0 0.0
    %1266 = vmatprep.subr.mxu0 0.0
    %1267 = vmatpush2.msra.mxu0 0.0
    %1268 = vmatprep.subr.mxu0 0.0
    %1269 = vmatpush2.msra.mxu0 0.0
    %1270 = vmatprep.subr.mxu0 0.0
    %1271 = vmatpush2.msra.mxu0 0.0
    %1272 = vmatprep.subr.mxu0 0.0
    %1273 = vmatpush2.msra.mxu0 0.0
    %1274 = vmatprep.subr.mxu0 0.0
    %1275 = vmatpush2.msra.mxu0 0.0
    %1276 = vmatprep.subr.mxu0 0.0
    %1277 = vmatpush2.msra.mxu0 0.0
    %1278 = vmatprep.subr.mxu0 0.0
    %1279 = vmatpush2.msra.mxu0 0.0
    %1280 = vmatprep.subr.mxu0 0.0
    %1281 = vmatpush2.msra.mxu0 0.0
    %1282 = vmatprep.subr.mxu0 0.0
    %1283 = vmatpush2.msra.mxu0 0.0
    %1284 = vmatprep.subr.mxu0 0.0
    %1285 = vmatpush2.msra.mxu0 0.0
    %1286 = vmatprep.subr.mxu0 0.0
    %1287 = vmatpush2.msra.mxu0 0.0
    %1288 = vmatprep.subr.mxu0 0.0
    %1289 = vmatpush2.msra.mxu0 0.0
    %1290 = vmatprep.subr.mxu0 0.0
    %1291 = vmatpush2.msra.mxu0 0.0
    %1292 = vmatprep.subr.mxu0 0.0
    %1293 = vmatpush2.msra.mxu0 0.0
    %1294 = vmatprep.subr.mxu0 0.0
    %1295 = vmatpush2.msra.mxu0 0.0
    %1296 = vmatprep.mubr.f32.mxu0 0.0
    %v1297 = vand.u32 %v955, 4294901760
    %v1298 = vsub.f32 %v955, %v1297
    %1299 = vmatmul.mubr.f32.gmra.mxu0 %v1298
    %v1300 = vpop.f32.mrf.mxu0
    %v1301 = vadd.f32 %v1191, %v1300
    %v1302 = vpop.f32.mrf.mxu0
    %v1303 = vadd.f32 %v1193, %v1302
    %1304 = vmatprep.mubr.f32.mxu0 0.0
    %v1305 = vand.u32 %v958, 4294901760
    %v1306 = vsub.f32 %v958, %v1305
    %1307 = vmatmul.mubr.f32.gmra.mxu0 %v1306
    %v1308 = vpop.f32.mrf.mxu0
    %v1309 = vadd.f32 %v1198, %v1308
    %v1310 = vpop.f32.mrf.mxu0
    %v1311 = vadd.f32 %v1200, %v1310
    %1312 = vmatprep.mubr.f32.mxu0 0.0
    %v1313 = vand.u32 %v961, 4294901760
    %v1314 = vsub.f32 %v961, %v1313
    %1315 = vmatmul.mubr.f32.gmra.mxu0 %v1314
    %v1316 = vpop.f32.mrf.mxu0
    %v1317 = vadd.f32 %v1205, %v1316
    %v1318 = vpop.f32.mrf.mxu0
    %v1319 = vadd.f32 %v1207, %v1318
    %1320 = vmatprep.mubr.f32.mxu0 0.0
    %v1321 = vand.u32 %v964, 4294901760
    %v1322 = vsub.f32 %v964, %v1321
    %1323 = vmatmul.mubr.f32.gmra.mxu0 %v1322
    %v1324 = vpop.f32.mrf.mxu0
    %v1325 = vadd.f32 %v1212, %v1324
    %v1326 = vpop.f32.mrf.mxu0
    %v1327 = vadd.f32 %v1214, %v1326
    %1328 = vdwg.mxu0
    %1329 = vmatprep.subr.mxu0 0.0
    %1330 = vmatpush1.msra.mxu0 0.0
    %1331 = vmatprep.subr.mxu0 0.0
    %1332 = vmatpush1.msra.mxu0 0.0
    %1333 = vmatprep.subr.mxu0 0.0
    %1334 = vmatpush1.msra.mxu0 0.0
    %1335 = vmatprep.subr.mxu0 0.0
    %1336 = vmatpush1.msra.mxu0 0.0
    %1337 = vmatprep.subr.mxu0 0.0
    %1338 = vmatpush1.msra.mxu0 0.0
    %1339 = vmatprep.subr.mxu0 0.0
    %1340 = vmatpush1.msra.mxu0 0.0
    %1341 = vmatprep.subr.mxu0 0.0
    %1342 = vmatpush1.msra.mxu0 0.0
    %1343 = vmatprep.subr.mxu0 0.0
    %1344 = vmatpush1.msra.mxu0 0.0
    %1345 = vmatprep.subr.mxu0 0.0
    %1346 = vmatpush1.msra.mxu0 0.0
    %1347 = vmatprep.subr.mxu0 0.0
    %1348 = vmatpush1.msra.mxu0 0.0
    %1349 = vmatprep.subr.mxu0 0.0
    %1350 = vmatpush1.msra.mxu0 0.0
    %1351 = vmatprep.subr.mxu0 0.0
    %1352 = vmatpush1.msra.mxu0 0.0
    %v1353 = vand.u32 %v933, 4294901760
    %1354 = vmatprep.subr.mxu0 %v1353
    %v1355 = vand.u32 %v932, 4294901760
    %1356 = vmatpush1.msra.mxu0 %v1355
    %v1357 = vand.u32 %v931, 4294901760
    %1358 = vmatprep.subr.mxu0 %v1357
    %v1359 = vand.u32 %v930, 4294901760
    %1360 = vmatpush1.msra.mxu0 %v1359
    %v1361 = vand.u32 %v929, 4294901760
    %1362 = vmatprep.subr.mxu0 %v1361
    %v1363 = vand.u32 %v928, 4294901760
    %1364 = vmatpush1.msra.mxu0 %v1363
    %v1365 = vand.u32 %v927, 4294901760
    %1366 = vmatprep.subr.mxu0 %v1365
    %v1367 = vand.u32 %v926, 4294901760
    %1368 = vmatpush1.msra.mxu0 %v1367
    %1369 = vmatprep.subr.mxu0 0.0
    %1370 = vmatpush2.msra.mxu0 0.0
    %1371 = vmatprep.subr.mxu0 0.0
    %1372 = vmatpush2.msra.mxu0 0.0
    %1373 = vmatprep.subr.mxu0 0.0
    %1374 = vmatpush2.msra.mxu0 0.0
    %1375 = vmatprep.subr.mxu0 0.0
    %1376 = vmatpush2.msra.mxu0 0.0
    %1377 = vmatprep.subr.mxu0 0.0
    %1378 = vmatpush2.msra.mxu0 0.0
    %1379 = vmatprep.subr.mxu0 0.0
    %1380 = vmatpush2.msra.mxu0 0.0
    %1381 = vmatprep.subr.mxu0 0.0
    %1382 = vmatpush2.msra.mxu0 0.0
    %1383 = vmatprep.subr.mxu0 0.0
    %1384 = vmatpush2.msra.mxu0 0.0
    %1385 = vmatprep.subr.mxu0 0.0
    %1386 = vmatpush2.msra.mxu0 0.0
    %1387 = vmatprep.subr.mxu0 0.0
    %1388 = vmatpush2.msra.mxu0 0.0
    %1389 = vmatprep.subr.mxu0 0.0
    %1390 = vmatpush2.msra.mxu0 0.0
    %1391 = vmatprep.subr.mxu0 0.0
    %1392 = vmatpush2.msra.mxu0 0.0
    %1393 = vmatprep.subr.mxu0 0.0
    %1394 = vmatpush2.msra.mxu0 0.0
    %1395 = vmatprep.subr.mxu0 0.0
    %1396 = vmatpush2.msra.mxu0 0.0
    %1397 = vmatprep.subr.mxu0 0.0
    %1398 = vmatpush2.msra.mxu0 0.0
    %1399 = vmatprep.subr.mxu0 0.0
    %1400 = vmatpush2.msra.mxu0 0.0
    %1401 = vmatprep.mubr.f32.mxu0 0.0
    %v1402 = vand.u32 %v955, 4294901760
    %v1403 = vsub.f32 %v955, %v1402
    %v1404 = vand.u32 %v1403, 4294901760
    %1405 = vmatmul.mubr.f32.gmra.mxu0 %v1404
    %v1406 = vpop.f32.mrf.mxu0
    %v1407 = vadd.f32 %v1301, %v1406
    %v1408 = vpop.f32.mrf.mxu0
    %v1409 = vadd.f32 %v1303, %v1408
    %1410 = vmatprep.mubr.f32.mxu0 0.0
    %v1411 = vand.u32 %v958, 4294901760
    %v1412 = vsub.f32 %v958, %v1411
    %v1413 = vand.u32 %v1412, 4294901760
    %1414 = vmatmul.mubr.f32.gmra.mxu0 %v1413
    %v1415 = vpop.f32.mrf.mxu0
    %v1416 = vadd.f32 %v1309, %v1415
    %v1417 = vpop.f32.mrf.mxu0
    %v1418 = vadd.f32 %v1311, %v1417
    %1419 = vmatprep.mubr.f32.mxu0 0.0
    %v1420 = vand.u32 %v961, 4294901760
    %v1421 = vsub.f32 %v961, %v1420
    %v1422 = vand.u32 %v1421, 4294901760
    %1423 = vmatmul.mubr.f32.gmra.mxu0 %v1422
    %v1424 = vpop.f32.mrf.mxu0
    %v1425 = vadd.f32 %v1317, %v1424
    %v1426 = vpop.f32.mrf.mxu0
    %v1427 = vadd.f32 %v1319, %v1426
    %1428 = vmatprep.mubr.f32.mxu0 0.0
    %v1429 = vand.u32 %v964, 4294901760
    %v1430 = vsub.f32 %v964, %v1429
    %v1431 = vand.u32 %v1430, 4294901760
    %1432 = vmatmul.mubr.f32.gmra.mxu0 %v1431
    %v1433 = vpop.f32.mrf.mxu0
    %v1434 = vadd.f32 %v1325, %v1433
    %v1435 = vpop.f32.mrf.mxu0
    %v1436 = vadd.f32 %v1327, %v1435
    %1437 = vdwg.mxu0
    %1438 = vmatprep.subr.mxu0 0.0
    %1439 = vmatpush1.msra.mxu0 0.0
    %1440 = vmatprep.subr.mxu0 0.0
    %1441 = vmatpush1.msra.mxu0 0.0
    %1442 = vmatprep.subr.mxu0 0.0
    %1443 = vmatpush1.msra.mxu0 0.0
    %1444 = vmatprep.subr.mxu0 0.0
    %1445 = vmatpush1.msra.mxu0 0.0
    %1446 = vmatprep.subr.mxu0 0.0
    %1447 = vmatpush1.msra.mxu0 0.0
    %1448 = vmatprep.subr.mxu0 0.0
    %1449 = vmatpush1.msra.mxu0 0.0
    %1450 = vmatprep.subr.mxu0 0.0
    %1451 = vmatpush1.msra.mxu0 0.0
    %1452 = vmatprep.subr.mxu0 0.0
    %1453 = vmatpush1.msra.mxu0 0.0
    %1454 = vmatprep.subr.mxu0 0.0
    %1455 = vmatpush1.msra.mxu0 0.0
    %1456 = vmatprep.subr.mxu0 0.0
    %1457 = vmatpush1.msra.mxu0 0.0
    %1458 = vmatprep.subr.mxu0 0.0
    %1459 = vmatpush1.msra.mxu0 0.0
    %1460 = vmatprep.subr.mxu0 0.0
    %1461 = vmatpush1.msra.mxu0 0.0
    %v1462 = vand.u32 %v933, 4294901760
    %v1463 = vsub.f32 %v933, %v1462
    %v1464 = vand.u32 %v1463, 4294901760
    %1465 = vmatprep.subr.mxu0 %v1464
    %v1466 = vand.u32 %v932, 4294901760
    %v1467 = vsub.f32 %v932, %v1466
    %v1468 = vand.u32 %v1467, 4294901760
    %1469 = vmatpush1.msra.mxu0 %v1468
    %v1470 = vand.u32 %v931, 4294901760
    %v1471 = vsub.f32 %v931, %v1470
    %v1472 = vand.u32 %v1471, 4294901760
    %1473 = vmatprep.subr.mxu0 %v1472
    %v1474 = vand.u32 %v930, 4294901760
    %v1475 = vsub.f32 %v930, %v1474
    %v1476 = vand.u32 %v1475, 4294901760
    %1477 = vmatpush1.msra.mxu0 %v1476
    %v1478 = vand.u32 %v929, 4294901760
    %v1479 = vsub.f32 %v929, %v1478
    %v1480 = vand.u32 %v1479, 4294901760
    %1481 = vmatprep.subr.mxu0 %v1480
    %v1482 = vand.u32 %v928, 4294901760
    %v1483 = vsub.f32 %v928, %v1482
    %v1484 = vand.u32 %v1483, 4294901760
    %1485 = vmatpush1.msra.mxu0 %v1484
    %v1486 = vand.u32 %v927, 4294901760
    %v1487 = vsub.f32 %v927, %v1486
    %v1488 = vand.u32 %v1487, 4294901760
    %1489 = vmatprep.subr.mxu0 %v1488
    %v1490 = vand.u32 %v926, 4294901760
    %v1491 = vsub.f32 %v926, %v1490
    %v1492 = vand.u32 %v1491, 4294901760
    %1493 = vmatpush1.msra.mxu0 %v1492
    %1494 = vmatprep.subr.mxu0 0.0
    %1495 = vmatpush2.msra.mxu0 0.0
    %1496 = vmatprep.subr.mxu0 0.0
    %1497 = vmatpush2.msra.mxu0 0.0
    %1498 = vmatprep.subr.mxu0 0.0
    %1499 = vmatpush2.msra.mxu0 0.0
    %1500 = vmatprep.subr.mxu0 0.0
    %1501 = vmatpush2.msra.mxu0 0.0
    %1502 = vmatprep.subr.mxu0 0.0
    %1503 = vmatpush2.msra.mxu0 0.0
    %1504 = vmatprep.subr.mxu0 0.0
    %1505 = vmatpush2.msra.mxu0 0.0
    %1506 = vmatprep.subr.mxu0 0.0
    %1507 = vmatpush2.msra.mxu0 0.0
    %1508 = vmatprep.subr.mxu0 0.0
    %1509 = vmatpush2.msra.mxu0 0.0
    %1510 = vmatprep.subr.mxu0 0.0
    %1511 = vmatpush2.msra.mxu0 0.0
    %1512 = vmatprep.subr.mxu0 0.0
    %1513 = vmatpush2.msra.mxu0 0.0
    %1514 = vmatprep.subr.mxu0 0.0
    %1515 = vmatpush2.msra.mxu0 0.0
    %1516 = vmatprep.subr.mxu0 0.0
    %1517 = vmatpush2.msra.mxu0 0.0
    %1518 = vmatprep.subr.mxu0 0.0
    %1519 = vmatpush2.msra.mxu0 0.0
    %1520 = vmatprep.subr.mxu0 0.0
    %1521 = vmatpush2.msra.mxu0 0.0
    %1522 = vmatprep.subr.mxu0 0.0
    %1523 = vmatpush2.msra.mxu0 0.0
    %1524 = vmatprep.subr.mxu0 0.0
    %1525 = vmatpush2.msra.mxu0 0.0
    %1526 = vmatprep.mubr.f32.mxu0 0.0
    %v1527 = vand.u32 %v955, 4294901760
    %1528 = vmatmul.mubr.f32.gmra.mxu0 %v1527
    %v1529 = vpop.f32.mrf.mxu0
    %v1530 = vadd.f32 %v1407, %v1529
    %v1531 = vpop.f32.mrf.mxu0
    %v1532 = vadd.f32 %v1409, %v1531
    %1533 = vmatprep.mubr.f32.mxu0 0.0
    %v1534 = vand.u32 %v958, 4294901760
    %1535 = vmatmul.mubr.f32.gmra.mxu0 %v1534
    %v1536 = vpop.f32.mrf.mxu0
    %v1537 = vadd.f32 %v1416, %v1536
    %v1538 = vpop.f32.mrf.mxu0
    %v1539 = vadd.f32 %v1418, %v1538
    %1540 = vmatprep.mubr.f32.mxu0 0.0
    %v1541 = vand.u32 %v961, 4294901760
    %1542 = vmatmul.mubr.f32.gmra.mxu0 %v1541
    %v1543 = vpop.f32.mrf.mxu0
    %v1544 = vadd.f32 %v1425, %v1543
    %v1545 = vpop.f32.mrf.mxu0
    %v1546 = vadd.f32 %v1427, %v1545
    %1547 = vmatprep.mubr.f32.mxu0 0.0
    %v1548 = vand.u32 %v964, 4294901760
    %1549 = vmatmul.mubr.f32.gmra.mxu0 %v1548
    %v1550 = vpop.f32.mrf.mxu0
    %v1551 = vadd.f32 %v1434, %v1550
    %v1552 = vpop.f32.mrf.mxu0
    %v1553 = vadd.f32 %v1436, %v1552
    %1554 = vdwg.mxu0
    %1555 = vmatprep.subr.mxu0 0.0
    %1556 = vmatpush1.msra.mxu0 0.0
    %1557 = vmatprep.subr.mxu0 0.0
    %1558 = vmatpush1.msra.mxu0 0.0
    %1559 = vmatprep.subr.mxu0 0.0
    %1560 = vmatpush1.msra.mxu0 0.0
    %1561 = vmatprep.subr.mxu0 0.0
    %1562 = vmatpush1.msra.mxu0 0.0
    %1563 = vmatprep.subr.mxu0 0.0
    %1564 = vmatpush1.msra.mxu0 0.0
    %1565 = vmatprep.subr.mxu0 0.0
    %1566 = vmatpush1.msra.mxu0 0.0
    %1567 = vmatprep.subr.mxu0 0.0
    %1568 = vmatpush1.msra.mxu0 0.0
    %1569 = vmatprep.subr.mxu0 0.0
    %1570 = vmatpush1.msra.mxu0 0.0
    %1571 = vmatprep.subr.mxu0 0.0
    %1572 = vmatpush1.msra.mxu0 0.0
    %1573 = vmatprep.subr.mxu0 0.0
    %1574 = vmatpush1.msra.mxu0 0.0
    %1575 = vmatprep.subr.mxu0 0.0
    %1576 = vmatpush1.msra.mxu0 0.0
    %1577 = vmatprep.subr.mxu0 0.0
    %1578 = vmatpush1.msra.mxu0 0.0
    %v1579 = vand.u32 %v933, 4294901760
    %1580 = vmatprep.subr.mxu0 %v1579
    %v1581 = vand.u32 %v932, 4294901760
    %1582 = vmatpush1.msra.mxu0 %v1581
    %v1583 = vand.u32 %v931, 4294901760
    %1584 = vmatprep.subr.mxu0 %v1583
    %v1585 = vand.u32 %v930, 4294901760
    %1586 = vmatpush1.msra.mxu0 %v1585
    %v1587 = vand.u32 %v929, 4294901760
    %1588 = vmatprep.subr.mxu0 %v1587
    %v1589 = vand.u32 %v928, 4294901760
    %1590 = vmatpush1.msra.mxu0 %v1589
    %v1591 = vand.u32 %v927, 4294901760
    %1592 = vmatprep.subr.mxu0 %v1591
    %v1593 = vand.u32 %v926, 4294901760
    %1594 = vmatpush1.msra.mxu0 %v1593
    %1595 = vmatprep.subr.mxu0 0.0
    %1596 = vmatpush2.msra.mxu0 0.0
    %1597 = vmatprep.subr.mxu0 0.0
    %1598 = vmatpush2.msra.mxu0 0.0
    %1599 = vmatprep.subr.mxu0 0.0
    %1600 = vmatpush2.msra.mxu0 0.0
    %1601 = vmatprep.subr.mxu0 0.0
    %1602 = vmatpush2.msra.mxu0 0.0
    %1603 = vmatprep.subr.mxu0 0.0
    %1604 = vmatpush2.msra.mxu0 0.0
    %1605 = vmatprep.subr.mxu0 0.0
    %1606 = vmatpush2.msra.mxu0 0.0
    %1607 = vmatprep.subr.mxu0 0.0
    %1608 = vmatpush2.msra.mxu0 0.0
    %1609 = vmatprep.subr.mxu0 0.0
    %1610 = vmatpush2.msra.mxu0 0.0
    %1611 = vmatprep.subr.mxu0 0.0
    %1612 = vmatpush2.msra.mxu0 0.0
    %1613 = vmatprep.subr.mxu0 0.0
    %1614 = vmatpush2.msra.mxu0 0.0
    %1615 = vmatprep.subr.mxu0 0.0
    %1616 = vmatpush2.msra.mxu0 0.0
    %1617 = vmatprep.subr.mxu0 0.0
    %1618 = vmatpush2.msra.mxu0 0.0
    %1619 = vmatprep.subr.mxu0 0.0
    %1620 = vmatpush2.msra.mxu0 0.0
    %1621 = vmatprep.subr.mxu0 0.0
    %1622 = vmatpush2.msra.mxu0 0.0
    %1623 = vmatprep.subr.mxu0 0.0
    %1624 = vmatpush2.msra.mxu0 0.0
    %1625 = vmatprep.subr.mxu0 0.0
    %1626 = vmatpush2.msra.mxu0 0.0
    %1627 = vmatprep.mubr.f32.mxu0 0.0
    %v1628 = vand.u32 %v955, 4294901760
    %1629 = vmatmul.mubr.f32.gmra.mxu0 %v1628
    %v1630 = vpop.f32.mrf.mxu0
    %v1631 = vadd.f32 %v1530, %v1630
    %v1632 = vpop.f32.mrf.mxu0
    %v1633 = vadd.f32 %v1532, %v1632
    %1634 = vmatprep.mubr.f32.mxu0 0.0
    %v1635 = vand.u32 %v958, 4294901760
    %1636 = vmatmul.mubr.f32.gmra.mxu0 %v1635
    %v1637 = vpop.f32.mrf.mxu0
    %v1638 = vadd.f32 %v1537, %v1637
    %v1639 = vpop.f32.mrf.mxu0
    %v1640 = vadd.f32 %v1539, %v1639
    %1641 = vmatprep.mubr.f32.mxu0 0.0
    %v1642 = vand.u32 %v961, 4294901760
    %1643 = vmatmul.mubr.f32.gmra.mxu0 %v1642
    %v1644 = vpop.f32.mrf.mxu0
    %v1645 = vadd.f32 %v1544, %v1644
    %v1646 = vpop.f32.mrf.mxu0
    %v1647 = vadd.f32 %v1546, %v1646
    %1648 = vmatprep.mubr.f32.mxu0 0.0
    %v1649 = vand.u32 %v964, 4294901760
    %1650 = vmatmul.mubr.f32.gmra.mxu0 %v1649
    %v1651 = vpop.f32.mrf.mxu0
    %v1652 = vadd.f32 %v1551, %v1651
    %v1653 = vpop.f32.mrf.mxu0
    %v1654 = vadd.f32 %v1553, %v1653
    %1655 = vdwg.mxu0
    %v1656 = vtanh.pop %v1631
    %v1657 = vtanh.pop %v1633
    %v1658 = vtanh.pop %v1638
    %v1659 = vtanh.pop %v1640
    %v1660 = vtanh.pop %v1645
    %v1661 = vtanh.pop %v1647
    %v1662 = vtanh.pop %v1652
    %v1663 = vtanh.pop %v1654
    %1665 = vset.pattern.permute.xlu0 0
    %1666 = vperm.xlu0 %1665, %v59
    %v1667 = vpop.permute.xlu0 %1666
    %1670 = vset.pattern.permute.xlu0 0
    %1671 = vperm.xlu0 %1670, %v60
    %v1672 = vpop.permute.xlu0 %1671
    %1675 = vset.pattern.permute.xlu0 0
    %1676 = vperm.xlu0 %1675, %v61
    %v1677 = vpop.permute.xlu0 %1676
    %1680 = vset.pattern.permute.xlu0 0
    %1681 = vperm.xlu0 %1680, %v62
    %v1682 = vpop.permute.xlu0 %1681
    %v1685 = vsel %vm223, %v43, 0
    %v1688 = vsel %vm223, %v44, 0
    %v1691 = vsel %vm223, %v45, 0
    %v1694 = vsel %vm223, %v46, 0
    %1696 = vmatprep.subr.mxu0 0.0
    %1697 = vmatpush1.msra.mxu0 0.0
    %1698 = vmatprep.subr.mxu0 0.0
    %1699 = vmatpush1.msra.mxu0 0.0
    %1700 = vmatprep.subr.mxu0 0.0
    %1701 = vmatpush1.msra.mxu0 0.0
    %1702 = vmatprep.subr.mxu0 0.0
    %1703 = vmatpush1.msra.mxu0 0.0
    %1704 = vmatprep.subr.mxu0 0.0
    %1705 = vmatpush1.msra.mxu0 0.0
    %1706 = vmatprep.subr.mxu0 0.0
    %1707 = vmatpush1.msra.mxu0 0.0
    %1708 = vmatprep.subr.mxu0 0.0
    %1709 = vmatpush1.msra.mxu0 0.0
    %1710 = vmatprep.subr.mxu0 0.0
    %1711 = vmatpush1.msra.mxu0 0.0
    %1712 = vmatprep.subr.mxu0 0.0
    %1713 = vmatpush1.msra.mxu0 0.0
    %1714 = vmatprep.subr.mxu0 0.0
    %1715 = vmatpush1.msra.mxu0 0.0
    %1716 = vmatprep.subr.mxu0 0.0
    %1717 = vmatpush1.msra.mxu0 0.0
    %1718 = vmatprep.subr.mxu0 0.0
    %1719 = vmatpush1.msra.mxu0 0.0
    %v1720 = vand.u32 %v1663, 4294901760
    %1721 = vmatprep.subr.mxu0 %v1720
    %v1722 = vand.u32 %v1662, 4294901760
    %1723 = vmatpush1.msra.mxu0 %v1722
    %v1724 = vand.u32 %v1661, 4294901760
    %1725 = vmatprep.subr.mxu0 %v1724
    %v1726 = vand.u32 %v1660, 4294901760
    %1727 = vmatpush1.msra.mxu0 %v1726
    %v1728 = vand.u32 %v1659, 4294901760
    %1729 = vmatprep.subr.mxu0 %v1728
    %v1730 = vand.u32 %v1658, 4294901760
    %1731 = vmatpush1.msra.mxu0 %v1730
    %v1732 = vand.u32 %v1657, 4294901760
    %1733 = vmatprep.subr.mxu0 %v1732
    %v1734 = vand.u32 %v1656, 4294901760
    %1735 = vmatpush1.msra.mxu0 %v1734
    %1736 = vmatprep.subr.mxu0 0.0
    %1737 = vmatpush2.msra.mxu0 0.0
    %1738 = vmatprep.subr.mxu0 0.0
    %1739 = vmatpush2.msra.mxu0 0.0
    %1740 = vmatprep.subr.mxu0 0.0
    %1741 = vmatpush2.msra.mxu0 0.0
    %1742 = vmatprep.subr.mxu0 0.0
    %1743 = vmatpush2.msra.mxu0 0.0
    %1744 = vmatprep.subr.mxu0 0.0
    %1745 = vmatpush2.msra.mxu0 0.0
    %1746 = vmatprep.subr.mxu0 0.0
    %1747 = vmatpush2.msra.mxu0 0.0
    %1748 = vmatprep.subr.mxu0 0.0
    %1749 = vmatpush2.msra.mxu0 0.0
    %1750 = vmatprep.subr.mxu0 0.0
    %1751 = vmatpush2.msra.mxu0 0.0
    %1752 = vmatprep.subr.mxu0 0.0
    %1753 = vmatpush2.msra.mxu0 0.0
    %1754 = vmatprep.subr.mxu0 0.0
    %1755 = vmatpush2.msra.mxu0 0.0
    %1756 = vmatprep.subr.mxu0 0.0
    %1757 = vmatpush2.msra.mxu0 0.0
    %1758 = vmatprep.subr.mxu0 0.0
    %1759 = vmatpush2.msra.mxu0 0.0
    %1760 = vmatprep.subr.mxu0 0.0
    %1761 = vmatpush2.msra.mxu0 0.0
    %1762 = vmatprep.subr.mxu0 0.0
    %1763 = vmatpush2.msra.mxu0 0.0
    %1764 = vmatprep.subr.mxu0 0.0
    %1765 = vmatpush2.msra.mxu0 0.0
    %1766 = vmatprep.subr.mxu0 0.0
    %1767 = vmatpush2.msra.mxu0 0.0
    %1768 = vmatprep.mubr.f32.mxu0 0.0
    %v1769 = vand.u32 %v1685, 4294901760
    %v1770 = vsub.f32 %v1685, %v1769
    %v1771 = vand.u32 %v1770, 4294901760
    %v1772 = vsub.f32 %v1770, %v1771
    %v1773 = vand.u32 %v1772, 4294901760
    %1774 = vmatmul.mubr.f32.gmra.mxu0 %v1773
    %v1775 = vpop.f32.mrf.mxu0
    %v1776 = vadd.f32 %v1667, %v1775
    %v1777 = vpop.f32.mrf.mxu0
    %v1778 = vadd.f32 %v1667, %v1777
    %1779 = vmatprep.mubr.f32.mxu0 0.0
    %v1780 = vand.u32 %v1688, 4294901760
    %v1781 = vsub.f32 %v1688, %v1780
    %v1782 = vand.u32 %v1781, 4294901760
    %v1783 = vsub.f32 %v1781, %v1782
    %v1784 = vand.u32 %v1783, 4294901760
    %1785 = vmatmul.mubr.f32.gmra.mxu0 %v1784
    %v1786 = vpop.f32.mrf.mxu0
    %v1787 = vadd.f32 %v1672, %v1786
    %v1788 = vpop.f32.mrf.mxu0
    %v1789 = vadd.f32 %v1672, %v1788
    %1790 = vmatprep.mubr.f32.mxu0 0.0
    %v1791 = vand.u32 %v1691, 4294901760
    %v1792 = vsub.f32 %v1691, %v1791
    %v1793 = vand.u32 %v1792, 4294901760
    %v1794 = vsub.f32 %v1792, %v1793
    %v1795 = vand.u32 %v1794, 4294901760
    %1796 = vmatmul.mubr.f32.gmra.mxu0 %v1795
    %v1797 = vpop.f32.mrf.mxu0
    %v1798 = vadd.f32 %v1677, %v1797
    %v1799 = vpop.f32.mrf.mxu0
    %v1800 = vadd.f32 %v1677, %v1799
    %1801 = vmatprep.mubr.f32.mxu0 0.0
    %v1802 = vand.u32 %v1694, 4294901760
    %v1803 = vsub.f32 %v1694, %v1802
    %v1804 = vand.u32 %v1803, 4294901760
    %v1805 = vsub.f32 %v1803, %v1804
    %v1806 = vand.u32 %v1805, 4294901760
    %1807 = vmatmul.mubr.f32.gmra.mxu0 %v1806
    %v1808 = vpop.f32.mrf.mxu0
    %v1809 = vadd.f32 %v1682, %v1808
    %v1810 = vpop.f32.mrf.mxu0
    %v1811 = vadd.f32 %v1682, %v1810
    %1812 = vdwg.mxu0
    %1813 = vmatprep.subr.mxu0 0.0
    %1814 = vmatpush1.msra.mxu0 0.0
    %1815 = vmatprep.subr.mxu0 0.0
    %1816 = vmatpush1.msra.mxu0 0.0
    %1817 = vmatprep.subr.mxu0 0.0
    %1818 = vmatpush1.msra.mxu0 0.0
    %1819 = vmatprep.subr.mxu0 0.0
    %1820 = vmatpush1.msra.mxu0 0.0
    %1821 = vmatprep.subr.mxu0 0.0
    %1822 = vmatpush1.msra.mxu0 0.0
    %1823 = vmatprep.subr.mxu0 0.0
    %1824 = vmatpush1.msra.mxu0 0.0
    %1825 = vmatprep.subr.mxu0 0.0
    %1826 = vmatpush1.msra.mxu0 0.0
    %1827 = vmatprep.subr.mxu0 0.0
    %1828 = vmatpush1.msra.mxu0 0.0
    %1829 = vmatprep.subr.mxu0 0.0
    %1830 = vmatpush1.msra.mxu0 0.0
    %1831 = vmatprep.subr.mxu0 0.0
    %1832 = vmatpush1.msra.mxu0 0.0
    %1833 = vmatprep.subr.mxu0 0.0
    %1834 = vmatpush1.msra.mxu0 0.0
    %1835 = vmatprep.subr.mxu0 0.0
    %1836 = vmatpush1.msra.mxu0 0.0
    %v1837 = vand.u32 %v1663, 4294901760
    %v1838 = vsub.f32 %v1663, %v1837
    %v1839 = vand.u32 %v1838, 4294901760
    %v1840 = vsub.f32 %v1838, %v1839
    %v1841 = vand.u32 %v1840, 4294901760
    %1842 = vmatprep.subr.mxu0 %v1841
    %v1843 = vand.u32 %v1662, 4294901760
    %v1844 = vsub.f32 %v1662, %v1843
    %v1845 = vand.u32 %v1844, 4294901760
    %v1846 = vsub.f32 %v1844, %v1845
    %v1847 = vand.u32 %v1846, 4294901760
    %1848 = vmatpush1.msra.mxu0 %v1847
    %v1849 = vand.u32 %v1661, 4294901760
    %v1850 = vsub.f32 %v1661, %v1849
    %v1851 = vand.u32 %v1850, 4294901760
    %v1852 = vsub.f32 %v1850, %v1851
    %v1853 = vand.u32 %v1852, 4294901760
    %1854 = vmatprep.subr.mxu0 %v1853
    %v1855 = vand.u32 %v1660, 4294901760
    %v1856 = vsub.f32 %v1660, %v1855
    %v1857 = vand.u32 %v1856, 4294901760
    %v1858 = vsub.f32 %v1856, %v1857
    %v1859 = vand.u32 %v1858, 4294901760
    %1860 = vmatpush1.msra.mxu0 %v1859
    %v1861 = vand.u32 %v1659, 4294901760
    %v1862 = vsub.f32 %v1659, %v1861
    %v1863 = vand.u32 %v1862, 4294901760
    %v1864 = vsub.f32 %v1862, %v1863
    %v1865 = vand.u32 %v1864, 4294901760
    %1866 = vmatprep.subr.mxu0 %v1865
    %v1867 = vand.u32 %v1658, 4294901760
    %v1868 = vsub.f32 %v1658, %v1867
    %v1869 = vand.u32 %v1868, 4294901760
    %v1870 = vsub.f32 %v1868, %v1869
    %v1871 = vand.u32 %v1870, 4294901760
    %1872 = vmatpush1.msra.mxu0 %v1871
    %v1873 = vand.u32 %v1657, 4294901760
    %v1874 = vsub.f32 %v1657, %v1873
    %v1875 = vand.u32 %v1874, 4294901760
    %v1876 = vsub.f32 %v1874, %v1875
    %v1877 = vand.u32 %v1876, 4294901760
    %1878 = vmatprep.subr.mxu0 %v1877
    %v1879 = vand.u32 %v1656, 4294901760
    %v1880 = vsub.f32 %v1656, %v1879
    %v1881 = vand.u32 %v1880, 4294901760
    %v1882 = vsub.f32 %v1880, %v1881
    %v1883 = vand.u32 %v1882, 4294901760
    %1884 = vmatpush1.msra.mxu0 %v1883
    %1885 = vmatprep.subr.mxu0 0.0
    %1886 = vmatpush2.msra.mxu0 0.0
    %1887 = vmatprep.subr.mxu0 0.0
    %1888 = vmatpush2.msra.mxu0 0.0
    %1889 = vmatprep.subr.mxu0 0.0
    %1890 = vmatpush2.msra.mxu0 0.0
    %1891 = vmatprep.subr.mxu0 0.0
    %1892 = vmatpush2.msra.mxu0 0.0
    %1893 = vmatprep.subr.mxu0 0.0
    %1894 = vmatpush2.msra.mxu0 0.0
    %1895 = vmatprep.subr.mxu0 0.0
    %1896 = vmatpush2.msra.mxu0 0.0
    %1897 = vmatprep.subr.mxu0 0.0
    %1898 = vmatpush2.msra.mxu0 0.0
    %1899 = vmatprep.subr.mxu0 0.0
    %1900 = vmatpush2.msra.mxu0 0.0
    %1901 = vmatprep.subr.mxu0 0.0
    %1902 = vmatpush2.msra.mxu0 0.0
    %1903 = vmatprep.subr.mxu0 0.0
    %1904 = vmatpush2.msra.mxu0 0.0
    %1905 = vmatprep.subr.mxu0 0.0
    %1906 = vmatpush2.msra.mxu0 0.0
    %1907 = vmatprep.subr.mxu0 0.0
    %1908 = vmatpush2.msra.mxu0 0.0
    %1909 = vmatprep.subr.mxu0 0.0
    %1910 = vmatpush2.msra.mxu0 0.0
    %1911 = vmatprep.subr.mxu0 0.0
    %1912 = vmatpush2.msra.mxu0 0.0
    %1913 = vmatprep.subr.mxu0 0.0
    %1914 = vmatpush2.msra.mxu0 0.0
    %1915 = vmatprep.subr.mxu0 0.0
    %1916 = vmatpush2.msra.mxu0 0.0
    %1917 = vmatprep.mubr.f32.mxu0 0.0
    %v1918 = vand.u32 %v1685, 4294901760
    %1919 = vmatmul.mubr.f32.gmra.mxu0 %v1918
    %v1920 = vpop.f32.mrf.mxu0
    %v1921 = vadd.f32 %v1776, %v1920
    %v1922 = vpop.f32.mrf.mxu0
    %v1923 = vadd.f32 %v1778, %v1922
    %1924 = vmatprep.mubr.f32.mxu0 0.0
    %v1925 = vand.u32 %v1688, 4294901760
    %1926 = vmatmul.mubr.f32.gmra.mxu0 %v1925
    %v1927 = vpop.f32.mrf.mxu0
    %v1928 = vadd.f32 %v1787, %v1927
    %v1929 = vpop.f32.mrf.mxu0
    %v1930 = vadd.f32 %v1789, %v1929
    %1931 = vmatprep.mubr.f32.mxu0 0.0
    %v1932 = vand.u32 %v1691, 4294901760
    %1933 = vmatmul.mubr.f32.gmra.mxu0 %v1932
    %v1934 = vpop.f32.mrf.mxu0
    %v1935 = vadd.f32 %v1798, %v1934
    %v1936 = vpop.f32.mrf.mxu0
    %v1937 = vadd.f32 %v1800, %v1936
    %1938 = vmatprep.mubr.f32.mxu0 0.0
    %v1939 = vand.u32 %v1694, 4294901760
    %1940 = vmatmul.mubr.f32.gmra.mxu0 %v1939
    %v1941 = vpop.f32.mrf.mxu0
    %v1942 = vadd.f32 %v1809, %v1941
    %v1943 = vpop.f32.mrf.mxu0
    %v1944 = vadd.f32 %v1811, %v1943
    %1945 = vdwg.mxu0
    %1946 = vmatprep.subr.mxu0 0.0
    %1947 = vmatpush1.msra.mxu0 0.0
    %1948 = vmatprep.subr.mxu0 0.0
    %1949 = vmatpush1.msra.mxu0 0.0
    %1950 = vmatprep.subr.mxu0 0.0
    %1951 = vmatpush1.msra.mxu0 0.0
    %1952 = vmatprep.subr.mxu0 0.0
    %1953 = vmatpush1.msra.mxu0 0.0
    %1954 = vmatprep.subr.mxu0 0.0
    %1955 = vmatpush1.msra.mxu0 0.0
    %1956 = vmatprep.subr.mxu0 0.0
    %1957 = vmatpush1.msra.mxu0 0.0
    %1958 = vmatprep.subr.mxu0 0.0
    %1959 = vmatpush1.msra.mxu0 0.0
    %1960 = vmatprep.subr.mxu0 0.0
    %1961 = vmatpush1.msra.mxu0 0.0
    %1962 = vmatprep.subr.mxu0 0.0
    %1963 = vmatpush1.msra.mxu0 0.0
    %1964 = vmatprep.subr.mxu0 0.0
    %1965 = vmatpush1.msra.mxu0 0.0
    %1966 = vmatprep.subr.mxu0 0.0
    %1967 = vmatpush1.msra.mxu0 0.0
    %1968 = vmatprep.subr.mxu0 0.0
    %1969 = vmatpush1.msra.mxu0 0.0
    %v1970 = vand.u32 %v1663, 4294901760
    %v1971 = vsub.f32 %v1663, %v1970
    %1972 = vmatprep.subr.mxu0 %v1971
    %v1973 = vand.u32 %v1662, 4294901760
    %v1974 = vsub.f32 %v1662, %v1973
    %1975 = vmatpush1.msra.mxu0 %v1974
    %v1976 = vand.u32 %v1661, 4294901760
    %v1977 = vsub.f32 %v1661, %v1976
    %1978 = vmatprep.subr.mxu0 %v1977
    %v1979 = vand.u32 %v1660, 4294901760
    %v1980 = vsub.f32 %v1660, %v1979
    %1981 = vmatpush1.msra.mxu0 %v1980
    %v1982 = vand.u32 %v1659, 4294901760
    %v1983 = vsub.f32 %v1659, %v1982
    %1984 = vmatprep.subr.mxu0 %v1983
    %v1985 = vand.u32 %v1658, 4294901760
    %v1986 = vsub.f32 %v1658, %v1985
    %1987 = vmatpush1.msra.mxu0 %v1986
    %v1988 = vand.u32 %v1657, 4294901760
    %v1989 = vsub.f32 %v1657, %v1988
    %1990 = vmatprep.subr.mxu0 %v1989
    %v1991 = vand.u32 %v1656, 4294901760
    %v1992 = vsub.f32 %v1656, %v1991
    %1993 = vmatpush1.msra.mxu0 %v1992
    %1994 = vmatprep.subr.mxu0 0.0
    %1995 = vmatpush2.msra.mxu0 0.0
    %1996 = vmatprep.subr.mxu0 0.0
    %1997 = vmatpush2.msra.mxu0 0.0
    %1998 = vmatprep.subr.mxu0 0.0
    %1999 = vmatpush2.msra.mxu0 0.0
    %2000 = vmatprep.subr.mxu0 0.0
    %2001 = vmatpush2.msra.mxu0 0.0
    %2002 = vmatprep.subr.mxu0 0.0
    %2003 = vmatpush2.msra.mxu0 0.0
    %2004 = vmatprep.subr.mxu0 0.0
    %2005 = vmatpush2.msra.mxu0 0.0
    %2006 = vmatprep.subr.mxu0 0.0
    %2007 = vmatpush2.msra.mxu0 0.0
    %2008 = vmatprep.subr.mxu0 0.0
    %2009 = vmatpush2.msra.mxu0 0.0
    %2010 = vmatprep.subr.mxu0 0.0
    %2011 = vmatpush2.msra.mxu0 0.0
    %2012 = vmatprep.subr.mxu0 0.0
    %2013 = vmatpush2.msra.mxu0 0.0
    %2014 = vmatprep.subr.mxu0 0.0
    %2015 = vmatpush2.msra.mxu0 0.0
    %2016 = vmatprep.subr.mxu0 0.0
    %2017 = vmatpush2.msra.mxu0 0.0
    %2018 = vmatprep.subr.mxu0 0.0
    %2019 = vmatpush2.msra.mxu0 0.0
    %2020 = vmatprep.subr.mxu0 0.0
    %2021 = vmatpush2.msra.mxu0 0.0
    %2022 = vmatprep.subr.mxu0 0.0
    %2023 = vmatpush2.msra.mxu0 0.0
    %2024 = vmatprep.subr.mxu0 0.0
    %2025 = vmatpush2.msra.mxu0 0.0
    %2026 = vmatprep.mubr.f32.mxu0 0.0
    %v2027 = vand.u32 %v1685, 4294901760
    %v2028 = vsub.f32 %v1685, %v2027
    %2029 = vmatmul.mubr.f32.gmra.mxu0 %v2028
    %v2030 = vpop.f32.mrf.mxu0
    %v2031 = vadd.f32 %v1921, %v2030
    %v2032 = vpop.f32.mrf.mxu0
    %v2033 = vadd.f32 %v1923, %v2032
    %2034 = vmatprep.mubr.f32.mxu0 0.0
    %v2035 = vand.u32 %v1688, 4294901760
    %v2036 = vsub.f32 %v1688, %v2035
    %2037 = vmatmul.mubr.f32.gmra.mxu0 %v2036
    %v2038 = vpop.f32.mrf.mxu0
    %v2039 = vadd.f32 %v1928, %v2038
    %v2040 = vpop.f32.mrf.mxu0
    %v2041 = vadd.f32 %v1930, %v2040
    %2042 = vmatprep.mubr.f32.mxu0 0.0
    %v2043 = vand.u32 %v1691, 4294901760
    %v2044 = vsub.f32 %v1691, %v2043
    %2045 = vmatmul.mubr.f32.gmra.mxu0 %v2044
    %v2046 = vpop.f32.mrf.mxu0
    %v2047 = vadd.f32 %v1935, %v2046
    %v2048 = vpop.f32.mrf.mxu0
    %v2049 = vadd.f32 %v1937, %v2048
    %2050 = vmatprep.mubr.f32.mxu0 0.0
    %v2051 = vand.u32 %v1694, 4294901760
    %v2052 = vsub.f32 %v1694, %v2051
    %2053 = vmatmul.mubr.f32.gmra.mxu0 %v2052
    %v2054 = vpop.f32.mrf.mxu0
    %v2055 = vadd.f32 %v1942, %v2054
    %v2056 = vpop.f32.mrf.mxu0
    %v2057 = vadd.f32 %v1944, %v2056
    %2058 = vdwg.mxu0
    %2059 = vmatprep.subr.mxu0 0.0
    %2060 = vmatpush1.msra.mxu0 0.0
    %2061 = vmatprep.subr.mxu0 0.0
    %2062 = vmatpush1.msra.mxu0 0.0
    %2063 = vmatprep.subr.mxu0 0.0
    %2064 = vmatpush1.msra.mxu0 0.0
    %2065 = vmatprep.subr.mxu0 0.0
    %2066 = vmatpush1.msra.mxu0 0.0
    %2067 = vmatprep.subr.mxu0 0.0
    %2068 = vmatpush1.msra.mxu0 0.0
    %2069 = vmatprep.subr.mxu0 0.0
    %2070 = vmatpush1.msra.mxu0 0.0
    %2071 = vmatprep.subr.mxu0 0.0
    %2072 = vmatpush1.msra.mxu0 0.0
    %2073 = vmatprep.subr.mxu0 0.0
    %2074 = vmatpush1.msra.mxu0 0.0
    %2075 = vmatprep.subr.mxu0 0.0
    %2076 = vmatpush1.msra.mxu0 0.0
    %2077 = vmatprep.subr.mxu0 0.0
    %2078 = vmatpush1.msra.mxu0 0.0
    %2079 = vmatprep.subr.mxu0 0.0
    %2080 = vmatpush1.msra.mxu0 0.0
    %2081 = vmatprep.subr.mxu0 0.0
    %2082 = vmatpush1.msra.mxu0 0.0
    %v2083 = vand.u32 %v1663, 4294901760
    %2084 = vmatprep.subr.mxu0 %v2083
    %v2085 = vand.u32 %v1662, 4294901760
    %2086 = vmatpush1.msra.mxu0 %v2085
    %v2087 = vand.u32 %v1661, 4294901760
    %2088 = vmatprep.subr.mxu0 %v2087
    %v2089 = vand.u32 %v1660, 4294901760
    %2090 = vmatpush1.msra.mxu0 %v2089
    %v2091 = vand.u32 %v1659, 4294901760
    %2092 = vmatprep.subr.mxu0 %v2091
    %v2093 = vand.u32 %v1658, 4294901760
    %2094 = vmatpush1.msra.mxu0 %v2093
    %v2095 = vand.u32 %v1657, 4294901760
    %2096 = vmatprep.subr.mxu0 %v2095
    %v2097 = vand.u32 %v1656, 4294901760
    %2098 = vmatpush1.msra.mxu0 %v2097
    %2099 = vmatprep.subr.mxu0 0.0
    %2100 = vmatpush2.msra.mxu0 0.0
    %2101 = vmatprep.subr.mxu0 0.0
    %2102 = vmatpush2.msra.mxu0 0.0
    %2103 = vmatprep.subr.mxu0 0.0
    %2104 = vmatpush2.msra.mxu0 0.0
    %2105 = vmatprep.subr.mxu0 0.0
    %2106 = vmatpush2.msra.mxu0 0.0
    %2107 = vmatprep.subr.mxu0 0.0
    %2108 = vmatpush2.msra.mxu0 0.0
    %2109 = vmatprep.subr.mxu0 0.0
    %2110 = vmatpush2.msra.mxu0 0.0
    %2111 = vmatprep.subr.mxu0 0.0
    %2112 = vmatpush2.msra.mxu0 0.0
    %2113 = vmatprep.subr.mxu0 0.0
    %2114 = vmatpush2.msra.mxu0 0.0
    %2115 = vmatprep.subr.mxu0 0.0
    %2116 = vmatpush2.msra.mxu0 0.0
    %2117 = vmatprep.subr.mxu0 0.0
    %2118 = vmatpush2.msra.mxu0 0.0
    %2119 = vmatprep.subr.mxu0 0.0
    %2120 = vmatpush2.msra.mxu0 0.0
    %2121 = vmatprep.subr.mxu0 0.0
    %2122 = vmatpush2.msra.mxu0 0.0
    %2123 = vmatprep.subr.mxu0 0.0
    %2124 = vmatpush2.msra.mxu0 0.0
    %2125 = vmatprep.subr.mxu0 0.0
    %2126 = vmatpush2.msra.mxu0 0.0
    %2127 = vmatprep.subr.mxu0 0.0
    %2128 = vmatpush2.msra.mxu0 0.0
    %2129 = vmatprep.subr.mxu0 0.0
    %2130 = vmatpush2.msra.mxu0 0.0
    %2131 = vmatprep.mubr.f32.mxu0 0.0
    %v2132 = vand.u32 %v1685, 4294901760
    %v2133 = vsub.f32 %v1685, %v2132
    %v2134 = vand.u32 %v2133, 4294901760
    %2135 = vmatmul.mubr.f32.gmra.mxu0 %v2134
    %v2136 = vpop.f32.mrf.mxu0
    %v2137 = vadd.f32 %v2031, %v2136
    %v2138 = vpop.f32.mrf.mxu0
    %v2139 = vadd.f32 %v2033, %v2138
    %2140 = vmatprep.mubr.f32.mxu0 0.0
    %v2141 = vand.u32 %v1688, 4294901760
    %v2142 = vsub.f32 %v1688, %v2141
    %v2143 = vand.u32 %v2142, 4294901760
    %2144 = vmatmul.mubr.f32.gmra.mxu0 %v2143
    %v2145 = vpop.f32.mrf.mxu0
    %v2146 = vadd.f32 %v2039, %v2145
    %v2147 = vpop.f32.mrf.mxu0
    %v2148 = vadd.f32 %v2041, %v2147
    %2149 = vmatprep.mubr.f32.mxu0 0.0
    %v2150 = vand.u32 %v1691, 4294901760
    %v2151 = vsub.f32 %v1691, %v2150
    %v2152 = vand.u32 %v2151, 4294901760
    %2153 = vmatmul.mubr.f32.gmra.mxu0 %v2152
    %v2154 = vpop.f32.mrf.mxu0
    %v2155 = vadd.f32 %v2047, %v2154
    %v2156 = vpop.f32.mrf.mxu0
    %v2157 = vadd.f32 %v2049, %v2156
    %2158 = vmatprep.mubr.f32.mxu0 0.0
    %v2159 = vand.u32 %v1694, 4294901760
    %v2160 = vsub.f32 %v1694, %v2159
    %v2161 = vand.u32 %v2160, 4294901760
    %2162 = vmatmul.mubr.f32.gmra.mxu0 %v2161
    %v2163 = vpop.f32.mrf.mxu0
    %v2164 = vadd.f32 %v2055, %v2163
    %v2165 = vpop.f32.mrf.mxu0
    %v2166 = vadd.f32 %v2057, %v2165
    %2167 = vdwg.mxu0
    %2168 = vmatprep.subr.mxu0 0.0
    %2169 = vmatpush1.msra.mxu0 0.0
    %2170 = vmatprep.subr.mxu0 0.0
    %2171 = vmatpush1.msra.mxu0 0.0
    %2172 = vmatprep.subr.mxu0 0.0
    %2173 = vmatpush1.msra.mxu0 0.0
    %2174 = vmatprep.subr.mxu0 0.0
    %2175 = vmatpush1.msra.mxu0 0.0
    %2176 = vmatprep.subr.mxu0 0.0
    %2177 = vmatpush1.msra.mxu0 0.0
    %2178 = vmatprep.subr.mxu0 0.0
    %2179 = vmatpush1.msra.mxu0 0.0
    %2180 = vmatprep.subr.mxu0 0.0
    %2181 = vmatpush1.msra.mxu0 0.0
    %2182 = vmatprep.subr.mxu0 0.0
    %2183 = vmatpush1.msra.mxu0 0.0
    %2184 = vmatprep.subr.mxu0 0.0
    %2185 = vmatpush1.msra.mxu0 0.0
    %2186 = vmatprep.subr.mxu0 0.0
    %2187 = vmatpush1.msra.mxu0 0.0
    %2188 = vmatprep.subr.mxu0 0.0
    %2189 = vmatpush1.msra.mxu0 0.0
    %2190 = vmatprep.subr.mxu0 0.0
    %2191 = vmatpush1.msra.mxu0 0.0
    %v2192 = vand.u32 %v1663, 4294901760
    %v2193 = vsub.f32 %v1663, %v2192
    %v2194 = vand.u32 %v2193, 4294901760
    %2195 = vmatprep.subr.mxu0 %v2194
    %v2196 = vand.u32 %v1662, 4294901760
    %v2197 = vsub.f32 %v1662, %v2196
    %v2198 = vand.u32 %v2197, 4294901760
    %2199 = vmatpush1.msra.mxu0 %v2198
    %v2200 = vand.u32 %v1661, 4294901760
    %v2201 = vsub.f32 %v1661, %v2200
    %v2202 = vand.u32 %v2201, 4294901760
    %2203 = vmatprep.subr.mxu0 %v2202
    %v2204 = vand.u32 %v1660, 4294901760
    %v2205 = vsub.f32 %v1660, %v2204
    %v2206 = vand.u32 %v2205, 4294901760
    %2207 = vmatpush1.msra.mxu0 %v2206
    %v2208 = vand.u32 %v1659, 4294901760
    %v2209 = vsub.f32 %v1659, %v2208
    %v2210 = vand.u32 %v2209, 4294901760
    %2211 = vmatprep.subr.mxu0 %v2210
    %v2212 = vand.u32 %v1658, 4294901760
    %v2213 = vsub.f32 %v1658, %v2212
    %v2214 = vand.u32 %v2213, 4294901760
    %2215 = vmatpush1.msra.mxu0 %v2214
    %v2216 = vand.u32 %v1657, 4294901760
    %v2217 = vsub.f32 %v1657, %v2216
    %v2218 = vand.u32 %v2217, 4294901760
    %2219 = vmatprep.subr.mxu0 %v2218
    %v2220 = vand.u32 %v1656, 4294901760
    %v2221 = vsub.f32 %v1656, %v2220
    %v2222 = vand.u32 %v2221, 4294901760
    %2223 = vmatpush1.msra.mxu0 %v2222
    %2224 = vmatprep.subr.mxu0 0.0
    %2225 = vmatpush2.msra.mxu0 0.0
    %2226 = vmatprep.subr.mxu0 0.0
    %2227 = vmatpush2.msra.mxu0 0.0
    %2228 = vmatprep.subr.mxu0 0.0
    %2229 = vmatpush2.msra.mxu0 0.0
    %2230 = vmatprep.subr.mxu0 0.0
    %2231 = vmatpush2.msra.mxu0 0.0
    %2232 = vmatprep.subr.mxu0 0.0
    %2233 = vmatpush2.msra.mxu0 0.0
    %2234 = vmatprep.subr.mxu0 0.0
    %2235 = vmatpush2.msra.mxu0 0.0
    %2236 = vmatprep.subr.mxu0 0.0
    %2237 = vmatpush2.msra.mxu0 0.0
    %2238 = vmatprep.subr.mxu0 0.0
    %2239 = vmatpush2.msra.mxu0 0.0
    %2240 = vmatprep.subr.mxu0 0.0
    %2241 = vmatpush2.msra.mxu0 0.0
    %2242 = vmatprep.subr.mxu0 0.0
    %2243 = vmatpush2.msra.mxu0 0.0
    %2244 = vmatprep.subr.mxu0 0.0
    %2245 = vmatpush2.msra.mxu0 0.0
    %2246 = vmatprep.subr.mxu0 0.0
    %2247 = vmatpush2.msra.mxu0 0.0
    %2248 = vmatprep.subr.mxu0 0.0
    %2249 = vmatpush2.msra.mxu0 0.0
    %2250 = vmatprep.subr.mxu0 0.0
    %2251 = vmatpush2.msra.mxu0 0.0
    %2252 = vmatprep.subr.mxu0 0.0
    %2253 = vmatpush2.msra.mxu0 0.0
    %2254 = vmatprep.subr.mxu0 0.0
    %2255 = vmatpush2.msra.mxu0 0.0
    %2256 = vmatprep.mubr.f32.mxu0 0.0
    %v2257 = vand.u32 %v1685, 4294901760
    %2258 = vmatmul.mubr.f32.gmra.mxu0 %v2257
    %v2259 = vpop.f32.mrf.mxu0
    %v2260 = vadd.f32 %v2137, %v2259
    %v2261 = vpop.f32.mrf.mxu0
    %v2262 = vadd.f32 %v2139, %v2261
    %2263 = vmatprep.mubr.f32.mxu0 0.0
    %v2264 = vand.u32 %v1688, 4294901760
    %2265 = vmatmul.mubr.f32.gmra.mxu0 %v2264
    %v2266 = vpop.f32.mrf.mxu0
    %v2267 = vadd.f32 %v2146, %v2266
    %v2268 = vpop.f32.mrf.mxu0
    %v2269 = vadd.f32 %v2148, %v2268
    %2270 = vmatprep.mubr.f32.mxu0 0.0
    %v2271 = vand.u32 %v1691, 4294901760
    %2272 = vmatmul.mubr.f32.gmra.mxu0 %v2271
    %v2273 = vpop.f32.mrf.mxu0
    %v2274 = vadd.f32 %v2155, %v2273
    %v2275 = vpop.f32.mrf.mxu0
    %v2276 = vadd.f32 %v2157, %v2275
    %2277 = vmatprep.mubr.f32.mxu0 0.0
    %v2278 = vand.u32 %v1694, 4294901760
    %2279 = vmatmul.mubr.f32.gmra.mxu0 %v2278
    %v2280 = vpop.f32.mrf.mxu0
    %v2281 = vadd.f32 %v2164, %v2280
    %v2282 = vpop.f32.mrf.mxu0
    %v2283 = vadd.f32 %v2166, %v2282
    %2284 = vdwg.mxu0
    %2285 = vmatprep.subr.mxu0 0.0
    %2286 = vmatpush1.msra.mxu0 0.0
    %2287 = vmatprep.subr.mxu0 0.0
    %2288 = vmatpush1.msra.mxu0 0.0
    %2289 = vmatprep.subr.mxu0 0.0
    %2290 = vmatpush1.msra.mxu0 0.0
    %2291 = vmatprep.subr.mxu0 0.0
    %2292 = vmatpush1.msra.mxu0 0.0
    %2293 = vmatprep.subr.mxu0 0.0
    %2294 = vmatpush1.msra.mxu0 0.0
    %2295 = vmatprep.subr.mxu0 0.0
    %2296 = vmatpush1.msra.mxu0 0.0
    %2297 = vmatprep.subr.mxu0 0.0
    %2298 = vmatpush1.msra.mxu0 0.0
    %2299 = vmatprep.subr.mxu0 0.0
    %2300 = vmatpush1.msra.mxu0 0.0
    %2301 = vmatprep.subr.mxu0 0.0
    %2302 = vmatpush1.msra.mxu0 0.0
    %2303 = vmatprep.subr.mxu0 0.0
    %2304 = vmatpush1.msra.mxu0 0.0
    %2305 = vmatprep.subr.mxu0 0.0
    %2306 = vmatpush1.msra.mxu0 0.0
    %2307 = vmatprep.subr.mxu0 0.0
    %2308 = vmatpush1.msra.mxu0 0.0
    %v2309 = vand.u32 %v1663, 4294901760
    %2310 = vmatprep.subr.mxu0 %v2309
    %v2311 = vand.u32 %v1662, 4294901760
    %2312 = vmatpush1.msra.mxu0 %v2311
    %v2313 = vand.u32 %v1661, 4294901760
    %2314 = vmatprep.subr.mxu0 %v2313
    %v2315 = vand.u32 %v1660, 4294901760
    %2316 = vmatpush1.msra.mxu0 %v2315
    %v2317 = vand.u32 %v1659, 4294901760
    %2318 = vmatprep.subr.mxu0 %v2317
    %v2319 = vand.u32 %v1658, 4294901760
    %2320 = vmatpush1.msra.mxu0 %v2319
    %v2321 = vand.u32 %v1657, 4294901760
    %2322 = vmatprep.subr.mxu0 %v2321
    %v2323 = vand.u32 %v1656, 4294901760
    %2324 = vmatpush1.msra.mxu0 %v2323
    %2325 = vmatprep.subr.mxu0 0.0
    %2326 = vmatpush2.msra.mxu0 0.0
    %2327 = vmatprep.subr.mxu0 0.0
    %2328 = vmatpush2.msra.mxu0 0.0
    %2329 = vmatprep.subr.mxu0 0.0
    %2330 = vmatpush2.msra.mxu0 0.0
    %2331 = vmatprep.subr.mxu0 0.0
    %2332 = vmatpush2.msra.mxu0 0.0
    %2333 = vmatprep.subr.mxu0 0.0
    %2334 = vmatpush2.msra.mxu0 0.0
    %2335 = vmatprep.subr.mxu0 0.0
    %2336 = vmatpush2.msra.mxu0 0.0
    %2337 = vmatprep.subr.mxu0 0.0
    %2338 = vmatpush2.msra.mxu0 0.0
    %2339 = vmatprep.subr.mxu0 0.0
    %2340 = vmatpush2.msra.mxu0 0.0
    %2341 = vmatprep.subr.mxu0 0.0
    %2342 = vmatpush2.msra.mxu0 0.0
    %2343 = vmatprep.subr.mxu0 0.0
    %2344 = vmatpush2.msra.mxu0 0.0
    %2345 = vmatprep.subr.mxu0 0.0
    %2346 = vmatpush2.msra.mxu0 0.0
    %2347 = vmatprep.subr.mxu0 0.0
    %2348 = vmatpush2.msra.mxu0 0.0
    %2349 = vmatprep.subr.mxu0 0.0
    %2350 = vmatpush2.msra.mxu0 0.0
    %2351 = vmatprep.subr.mxu0 0.0
    %2352 = vmatpush2.msra.mxu0 0.0
    %2353 = vmatprep.subr.mxu0 0.0
    %2354 = vmatpush2.msra.mxu0 0.0
    %2355 = vmatprep.subr.mxu0 0.0
    %2356 = vmatpush2.msra.mxu0 0.0
    %2357 = vmatprep.mubr.f32.mxu0 0.0
    %v2358 = vand.u32 %v1685, 4294901760
    %2359 = vmatmul.mubr.f32.gmra.mxu0 %v2358
    %v2360 = vpop.f32.mrf.mxu0
    %v2361 = vadd.f32 %v2260, %v2360
    %v2362 = vpop.f32.mrf.mxu0
    %v2363 = vadd.f32 %v2262, %v2362
    %2364 = vmatprep.mubr.f32.mxu0 0.0
    %v2365 = vand.u32 %v1688, 4294901760
    %2366 = vmatmul.mubr.f32.gmra.mxu0 %v2365
    %v2367 = vpop.f32.mrf.mxu0
    %v2368 = vadd.f32 %v2267, %v2367
    %v2369 = vpop.f32.mrf.mxu0
    %v2370 = vadd.f32 %v2269, %v2369
    %2371 = vmatprep.mubr.f32.mxu0 0.0
    %v2372 = vand.u32 %v1691, 4294901760
    %2373 = vmatmul.mubr.f32.gmra.mxu0 %v2372
    %v2374 = vpop.f32.mrf.mxu0
    %v2375 = vadd.f32 %v2274, %v2374
    %v2376 = vpop.f32.mrf.mxu0
    %v2377 = vadd.f32 %v2276, %v2376
    %2378 = vmatprep.mubr.f32.mxu0 0.0
    %v2379 = vand.u32 %v1694, 4294901760
    %2380 = vmatmul.mubr.f32.gmra.mxu0 %v2379
    %v2381 = vpop.f32.mrf.mxu0
    %v2382 = vadd.f32 %v2281, %v2381
    %v2383 = vpop.f32.mrf.mxu0
    %v2384 = vadd.f32 %v2283, %v2383
    %2385 = vdwg.mxu0
    %v2386 = vtanh.pop %v2361
    %v2387 = vtanh.pop %v2363
    %v2388 = vtanh.pop %v2368
    %v2389 = vtanh.pop %v2370
    %v2390 = vtanh.pop %v2375
    %v2391 = vtanh.pop %v2377
    %v2392 = vtanh.pop %v2382
    %v2393 = vtanh.pop %v2384
    %2395 = vset.pattern.permute.xlu0 0
    %2396 = vperm.xlu0 %2395, %v63
    %v2397 = vpop.permute.xlu0 %2396
    %2400 = vset.pattern.permute.xlu0 0
    %2401 = vperm.xlu0 %2400, %v64
    %v2402 = vpop.permute.xlu0 %2401
    %2405 = vset.pattern.permute.xlu0 0
    %2406 = vperm.xlu0 %2405, %v65
    %v2407 = vpop.permute.xlu0 %2406
    %2410 = vset.pattern.permute.xlu0 0
    %2411 = vperm.xlu0 %2410, %v66
    %v2412 = vpop.permute.xlu0 %2411
    %v2415 = vsel %vm223, %v47, 0
    %v2418 = vsel %vm223, %v48, 0
    %v2421 = vsel %vm223, %v49, 0
    %v2424 = vsel %vm223, %v50, 0
    %2426 = vmatprep.subr.mxu0 0.0
    %2427 = vmatpush1.msra.mxu0 0.0
    %2428 = vmatprep.subr.mxu0 0.0
    %2429 = vmatpush1.msra.mxu0 0.0
    %2430 = vmatprep.subr.mxu0 0.0
    %2431 = vmatpush1.msra.mxu0 0.0
    %2432 = vmatprep.subr.mxu0 0.0
    %2433 = vmatpush1.msra.mxu0 0.0
    %2434 = vmatprep.subr.mxu0 0.0
    %2435 = vmatpush1.msra.mxu0 0.0
    %2436 = vmatprep.subr.mxu0 0.0
    %2437 = vmatpush1.msra.mxu0 0.0
    %2438 = vmatprep.subr.mxu0 0.0
    %2439 = vmatpush1.msra.mxu0 0.0
    %2440 = vmatprep.subr.mxu0 0.0
    %2441 = vmatpush1.msra.mxu0 0.0
    %2442 = vmatprep.subr.mxu0 0.0
    %2443 = vmatpush1.msra.mxu0 0.0
    %2444 = vmatprep.subr.mxu0 0.0
    %2445 = vmatpush1.msra.mxu0 0.0
    %2446 = vmatprep.subr.mxu0 0.0
    %2447 = vmatpush1.msra.mxu0 0.0
    %2448 = vmatprep.subr.mxu0 0.0
    %2449 = vmatpush1.msra.mxu0 0.0
    %v2450 = vand.u32 %v2393, 4294901760
    %2451 = vmatprep.subr.mxu0 %v2450
    %v2452 = vand.u32 %v2392, 4294901760
    %2453 = vmatpush1.msra.mxu0 %v2452
    %v2454 = vand.u32 %v2391, 4294901760
    %2455 = vmatprep.subr.mxu0 %v2454
    %v2456 = vand.u32 %v2390, 4294901760
    %2457 = vmatpush1.msra.mxu0 %v2456
    %v2458 = vand.u32 %v2389, 4294901760
    %2459 = vmatprep.subr.mxu0 %v2458
    %v2460 = vand.u32 %v2388, 4294901760
    %2461 = vmatpush1.msra.mxu0 %v2460
    %v2462 = vand.u32 %v2387, 4294901760
    %2463 = vmatprep.subr.mxu0 %v2462
    %v2464 = vand.u32 %v2386, 4294901760
    %2465 = vmatpush1.msra.mxu0 %v2464
    %2466 = vmatprep.subr.mxu0 0.0
    %2467 = vmatpush2.msra.mxu0 0.0
    %2468 = vmatprep.subr.mxu0 0.0
    %2469 = vmatpush2.msra.mxu0 0.0
    %2470 = vmatprep.subr.mxu0 0.0
    %2471 = vmatpush2.msra.mxu0 0.0
    %2472 = vmatprep.subr.mxu0 0.0
    %2473 = vmatpush2.msra.mxu0 0.0
    %2474 = vmatprep.subr.mxu0 0.0
    %2475 = vmatpush2.msra.mxu0 0.0
    %2476 = vmatprep.subr.mxu0 0.0
    %2477 = vmatpush2.msra.mxu0 0.0
    %2478 = vmatprep.subr.mxu0 0.0
    %2479 = vmatpush2.msra.mxu0 0.0
    %2480 = vmatprep.subr.mxu0 0.0
    %2481 = vmatpush2.msra.mxu0 0.0
    %2482 = vmatprep.subr.mxu0 0.0
    %2483 = vmatpush2.msra.mxu0 0.0
    %2484 = vmatprep.subr.mxu0 0.0
    %2485 = vmatpush2.msra.mxu0 0.0
    %2486 = vmatprep.subr.mxu0 0.0
    %2487 = vmatpush2.msra.mxu0 0.0
    %2488 = vmatprep.subr.mxu0 0.0
    %2489 = vmatpush2.msra.mxu0 0.0
    %2490 = vmatprep.subr.mxu0 0.0
    %2491 = vmatpush2.msra.mxu0 0.0
    %2492 = vmatprep.subr.mxu0 0.0
    %2493 = vmatpush2.msra.mxu0 0.0
    %2494 = vmatprep.subr.mxu0 0.0
    %2495 = vmatpush2.msra.mxu0 0.0
    %2496 = vmatprep.subr.mxu0 0.0
    %2497 = vmatpush2.msra.mxu0 0.0
    %2498 = vmatprep.mubr.f32.mxu0 0.0
    %v2499 = vand.u32 %v2415, 4294901760
    %v2500 = vsub.f32 %v2415, %v2499
    %v2501 = vand.u32 %v2500, 4294901760
    %v2502 = vsub.f32 %v2500, %v2501
    %v2503 = vand.u32 %v2502, 4294901760
    %2504 = vmatmul.mubr.f32.gmra.mxu0 %v2503
    %v2505 = vpop.f32.mrf.mxu0
    %v2506 = vadd.f32 %v2397, %v2505
    %v2507 = vpop.f32.mrf.mxu0
    %v2508 = vadd.f32 %v2397, %v2507
    %2509 = vmatprep.mubr.f32.mxu0 0.0
    %v2510 = vand.u32 %v2418, 4294901760
    %v2511 = vsub.f32 %v2418, %v2510
    %v2512 = vand.u32 %v2511, 4294901760
    %v2513 = vsub.f32 %v2511, %v2512
    %v2514 = vand.u32 %v2513, 4294901760
    %2515 = vmatmul.mubr.f32.gmra.mxu0 %v2514
    %v2516 = vpop.f32.mrf.mxu0
    %v2517 = vadd.f32 %v2402, %v2516
    %v2518 = vpop.f32.mrf.mxu0
    %v2519 = vadd.f32 %v2402, %v2518
    %2520 = vmatprep.mubr.f32.mxu0 0.0
    %v2521 = vand.u32 %v2421, 4294901760
    %v2522 = vsub.f32 %v2421, %v2521
    %v2523 = vand.u32 %v2522, 4294901760
    %v2524 = vsub.f32 %v2522, %v2523
    %v2525 = vand.u32 %v2524, 4294901760
    %2526 = vmatmul.mubr.f32.gmra.mxu0 %v2525
    %v2527 = vpop.f32.mrf.mxu0
    %v2528 = vadd.f32 %v2407, %v2527
    %v2529 = vpop.f32.mrf.mxu0
    %v2530 = vadd.f32 %v2407, %v2529
    %2531 = vmatprep.mubr.f32.mxu0 0.0
    %v2532 = vand.u32 %v2424, 4294901760
    %v2533 = vsub.f32 %v2424, %v2532
    %v2534 = vand.u32 %v2533, 4294901760
    %v2535 = vsub.f32 %v2533, %v2534
    %v2536 = vand.u32 %v2535, 4294901760
    %2537 = vmatmul.mubr.f32.gmra.mxu0 %v2536
    %v2538 = vpop.f32.mrf.mxu0
    %v2539 = vadd.f32 %v2412, %v2538
    %v2540 = vpop.f32.mrf.mxu0
    %v2541 = vadd.f32 %v2412, %v2540
    %2542 = vdwg.mxu0
    %2543 = vmatprep.subr.mxu0 0.0
    %2544 = vmatpush1.msra.mxu0 0.0
    %2545 = vmatprep.subr.mxu0 0.0
    %2546 = vmatpush1.msra.mxu0 0.0
    %2547 = vmatprep.subr.mxu0 0.0
    %2548 = vmatpush1.msra.mxu0 0.0
    %2549 = vmatprep.subr.mxu0 0.0
    %2550 = vmatpush1.msra.mxu0 0.0
    %2551 = vmatprep.subr.mxu0 0.0
    %2552 = vmatpush1.msra.mxu0 0.0
    %2553 = vmatprep.subr.mxu0 0.0
    %2554 = vmatpush1.msra.mxu0 0.0
    %2555 = vmatprep.subr.mxu0 0.0
    %2556 = vmatpush1.msra.mxu0 0.0
    %2557 = vmatprep.subr.mxu0 0.0
    %2558 = vmatpush1.msra.mxu0 0.0
    %2559 = vmatprep.subr.mxu0 0.0
    %2560 = vmatpush1.msra.mxu0 0.0
    %2561 = vmatprep.subr.mxu0 0.0
    %2562 = vmatpush1.msra.mxu0 0.0
    %2563 = vmatprep.subr.mxu0 0.0
    %2564 = vmatpush1.msra.mxu0 0.0
    %2565 = vmatprep.subr.mxu0 0.0
    %2566 = vmatpush1.msra.mxu0 0.0
    %v2567 = vand.u32 %v2393, 4294901760
    %v2568 = vsub.f32 %v2393, %v2567
    %v2569 = vand.u32 %v2568, 4294901760
    %v2570 = vsub.f32 %v2568, %v2569
    %v2571 = vand.u32 %v2570, 4294901760
    %2572 = vmatprep.subr.mxu0 %v2571
    %v2573 = vand.u32 %v2392, 4294901760
    %v2574 = vsub.f32 %v2392, %v2573
    %v2575 = vand.u32 %v2574, 4294901760
    %v2576 = vsub.f32 %v2574, %v2575
    %v2577 = vand.u32 %v2576, 4294901760
    %2578 = vmatpush1.msra.mxu0 %v2577
    %v2579 = vand.u32 %v2391, 4294901760
    %v2580 = vsub.f32 %v2391, %v2579
    %v2581 = vand.u32 %v2580, 4294901760
    %v2582 = vsub.f32 %v2580, %v2581
    %v2583 = vand.u32 %v2582, 4294901760
    %2584 = vmatprep.subr.mxu0 %v2583
    %v2585 = vand.u32 %v2390, 4294901760
    %v2586 = vsub.f32 %v2390, %v2585
    %v2587 = vand.u32 %v2586, 4294901760
    %v2588 = vsub.f32 %v2586, %v2587
    %v2589 = vand.u32 %v2588, 4294901760
    %2590 = vmatpush1.msra.mxu0 %v2589
    %v2591 = vand.u32 %v2389, 4294901760
    %v2592 = vsub.f32 %v2389, %v2591
    %v2593 = vand.u32 %v2592, 4294901760
    %v2594 = vsub.f32 %v2592, %v2593
    %v2595 = vand.u32 %v2594, 4294901760
    %2596 = vmatprep.subr.mxu0 %v2595
    %v2597 = vand.u32 %v2388, 4294901760
    %v2598 = vsub.f32 %v2388, %v2597
    %v2599 = vand.u32 %v2598, 4294901760
    %v2600 = vsub.f32 %v2598, %v2599
    %v2601 = vand.u32 %v2600, 4294901760
    %2602 = vmatpush1.msra.mxu0 %v2601
    %v2603 = vand.u32 %v2387, 4294901760
    %v2604 = vsub.f32 %v2387, %v2603
    %v2605 = vand.u32 %v2604, 4294901760
    %v2606 = vsub.f32 %v2604, %v2605
    %v2607 = vand.u32 %v2606, 4294901760
    %2608 = vmatprep.subr.mxu0 %v2607
    %v2609 = vand.u32 %v2386, 4294901760
    %v2610 = vsub.f32 %v2386, %v2609
    %v2611 = vand.u32 %v2610, 4294901760
    %v2612 = vsub.f32 %v2610, %v2611
    %v2613 = vand.u32 %v2612, 4294901760
    %2614 = vmatpush1.msra.mxu0 %v2613
    %2615 = vmatprep.subr.mxu0 0.0
    %2616 = vmatpush2.msra.mxu0 0.0
    %2617 = vmatprep.subr.mxu0 0.0
    %2618 = vmatpush2.msra.mxu0 0.0
    %2619 = vmatprep.subr.mxu0 0.0
    %2620 = vmatpush2.msra.mxu0 0.0
    %2621 = vmatprep.subr.mxu0 0.0
    %2622 = vmatpush2.msra.mxu0 0.0
    %2623 = vmatprep.subr.mxu0 0.0
    %2624 = vmatpush2.msra.mxu0 0.0
    %2625 = vmatprep.subr.mxu0 0.0
    %2626 = vmatpush2.msra.mxu0 0.0
    %2627 = vmatprep.subr.mxu0 0.0
    %2628 = vmatpush2.msra.mxu0 0.0
    %2629 = vmatprep.subr.mxu0 0.0
    %2630 = vmatpush2.msra.mxu0 0.0
    %2631 = vmatprep.subr.mxu0 0.0
    %2632 = vmatpush2.msra.mxu0 0.0
    %2633 = vmatprep.subr.mxu0 0.0
    %2634 = vmatpush2.msra.mxu0 0.0
    %2635 = vmatprep.subr.mxu0 0.0
    %2636 = vmatpush2.msra.mxu0 0.0
    %2637 = vmatprep.subr.mxu0 0.0
    %2638 = vmatpush2.msra.mxu0 0.0
    %2639 = vmatprep.subr.mxu0 0.0
    %2640 = vmatpush2.msra.mxu0 0.0
    %2641 = vmatprep.subr.mxu0 0.0
    %2642 = vmatpush2.msra.mxu0 0.0
    %2643 = vmatprep.subr.mxu0 0.0
    %2644 = vmatpush2.msra.mxu0 0.0
    %2645 = vmatprep.subr.mxu0 0.0
    %2646 = vmatpush2.msra.mxu0 0.0
    %2647 = vmatprep.mubr.f32.mxu0 0.0
    %v2648 = vand.u32 %v2415, 4294901760
    %2649 = vmatmul.mubr.f32.gmra.mxu0 %v2648
    %v2650 = vpop.f32.mrf.mxu0
    %v2651 = vadd.f32 %v2506, %v2650
    %v2652 = vpop.f32.mrf.mxu0
    %v2653 = vadd.f32 %v2508, %v2652
    %2654 = vmatprep.mubr.f32.mxu0 0.0
    %v2655 = vand.u32 %v2418, 4294901760
    %2656 = vmatmul.mubr.f32.gmra.mxu0 %v2655
    %v2657 = vpop.f32.mrf.mxu0
    %v2658 = vadd.f32 %v2517, %v2657
    %v2659 = vpop.f32.mrf.mxu0
    %v2660 = vadd.f32 %v2519, %v2659
    %2661 = vmatprep.mubr.f32.mxu0 0.0
    %v2662 = vand.u32 %v2421, 4294901760
    %2663 = vmatmul.mubr.f32.gmra.mxu0 %v2662
    %v2664 = vpop.f32.mrf.mxu0
    %v2665 = vadd.f32 %v2528, %v2664
    %v2666 = vpop.f32.mrf.mxu0
    %v2667 = vadd.f32 %v2530, %v2666
    %2668 = vmatprep.mubr.f32.mxu0 0.0
    %v2669 = vand.u32 %v2424, 4294901760
    %2670 = vmatmul.mubr.f32.gmra.mxu0 %v2669
    %v2671 = vpop.f32.mrf.mxu0
    %v2672 = vadd.f32 %v2539, %v2671
    %v2673 = vpop.f32.mrf.mxu0
    %v2674 = vadd.f32 %v2541, %v2673
    %2675 = vdwg.mxu0
    %2676 = vmatprep.subr.mxu0 0.0
    %2677 = vmatpush1.msra.mxu0 0.0
    %2678 = vmatprep.subr.mxu0 0.0
    %2679 = vmatpush1.msra.mxu0 0.0
    %2680 = vmatprep.subr.mxu0 0.0
    %2681 = vmatpush1.msra.mxu0 0.0
    %2682 = vmatprep.subr.mxu0 0.0
    %2683 = vmatpush1.msra.mxu0 0.0
    %2684 = vmatprep.subr.mxu0 0.0
    %2685 = vmatpush1.msra.mxu0 0.0
    %2686 = vmatprep.subr.mxu0 0.0
    %2687 = vmatpush1.msra.mxu0 0.0
    %2688 = vmatprep.subr.mxu0 0.0
    %2689 = vmatpush1.msra.mxu0 0.0
    %2690 = vmatprep.subr.mxu0 0.0
    %2691 = vmatpush1.msra.mxu0 0.0
    %2692 = vmatprep.subr.mxu0 0.0
    %2693 = vmatpush1.msra.mxu0 0.0
    %2694 = vmatprep.subr.mxu0 0.0
    %2695 = vmatpush1.msra.mxu0 0.0
    %2696 = vmatprep.subr.mxu0 0.0
    %2697 = vmatpush1.msra.mxu0 0.0
    %2698 = vmatprep.subr.mxu0 0.0
    %2699 = vmatpush1.msra.mxu0 0.0
    %v2700 = vand.u32 %v2393, 4294901760
    %v2701 = vsub.f32 %v2393, %v2700
    %2702 = vmatprep.subr.mxu0 %v2701
    %v2703 = vand.u32 %v2392, 4294901760
    %v2704 = vsub.f32 %v2392, %v2703
    %2705 = vmatpush1.msra.mxu0 %v2704
    %v2706 = vand.u32 %v2391, 4294901760
    %v2707 = vsub.f32 %v2391, %v2706
    %2708 = vmatprep.subr.mxu0 %v2707
    %v2709 = vand.u32 %v2390, 4294901760
    %v2710 = vsub.f32 %v2390, %v2709
    %2711 = vmatpush1.msra.mxu0 %v2710
    %v2712 = vand.u32 %v2389, 4294901760
    %v2713 = vsub.f32 %v2389, %v2712
    %2714 = vmatprep.subr.mxu0 %v2713
    %v2715 = vand.u32 %v2388, 4294901760
    %v2716 = vsub.f32 %v2388, %v2715
    %2717 = vmatpush1.msra.mxu0 %v2716
    %v2718 = vand.u32 %v2387, 4294901760
    %v2719 = vsub.f32 %v2387, %v2718
    %2720 = vmatprep.subr.mxu0 %v2719
    %v2721 = vand.u32 %v2386, 4294901760
    %v2722 = vsub.f32 %v2386, %v2721
    %2723 = vmatpush1.msra.mxu0 %v2722
    %2724 = vmatprep.subr.mxu0 0.0
    %2725 = vmatpush2.msra.mxu0 0.0
    %2726 = vmatprep.subr.mxu0 0.0
    %2727 = vmatpush2.msra.mxu0 0.0
    %2728 = vmatprep.subr.mxu0 0.0
    %2729 = vmatpush2.msra.mxu0 0.0
    %2730 = vmatprep.subr.mxu0 0.0
    %2731 = vmatpush2.msra.mxu0 0.0
    %2732 = vmatprep.subr.mxu0 0.0
    %2733 = vmatpush2.msra.mxu0 0.0
    %2734 = vmatprep.subr.mxu0 0.0
    %2735 = vmatpush2.msra.mxu0 0.0
    %2736 = vmatprep.subr.mxu0 0.0
    %2737 = vmatpush2.msra.mxu0 0.0
    %2738 = vmatprep.subr.mxu0 0.0
    %2739 = vmatpush2.msra.mxu0 0.0
    %2740 = vmatprep.subr.mxu0 0.0
    %2741 = vmatpush2.msra.mxu0 0.0
    %2742 = vmatprep.subr.mxu0 0.0
    %2743 = vmatpush2.msra.mxu0 0.0
    %2744 = vmatprep.subr.mxu0 0.0
    %2745 = vmatpush2.msra.mxu0 0.0
    %2746 = vmatprep.subr.mxu0 0.0
    %2747 = vmatpush2.msra.mxu0 0.0
    %2748 = vmatprep.subr.mxu0 0.0
    %2749 = vmatpush2.msra.mxu0 0.0
    %2750 = vmatprep.subr.mxu0 0.0
    %2751 = vmatpush2.msra.mxu0 0.0
    %2752 = vmatprep.subr.mxu0 0.0
    %2753 = vmatpush2.msra.mxu0 0.0
    %2754 = vmatprep.subr.mxu0 0.0
    %2755 = vmatpush2.msra.mxu0 0.0
    %2756 = vmatprep.mubr.f32.mxu0 0.0
    %v2757 = vand.u32 %v2415, 4294901760
    %v2758 = vsub.f32 %v2415, %v2757
    %2759 = vmatmul.mubr.f32.gmra.mxu0 %v2758
    %v2760 = vpop.f32.mrf.mxu0
    %v2761 = vadd.f32 %v2651, %v2760
    %v2762 = vpop.f32.mrf.mxu0
    %v2763 = vadd.f32 %v2653, %v2762
    %2764 = vmatprep.mubr.f32.mxu0 0.0
    %v2765 = vand.u32 %v2418, 4294901760
    %v2766 = vsub.f32 %v2418, %v2765
    %2767 = vmatmul.mubr.f32.gmra.mxu0 %v2766
    %v2768 = vpop.f32.mrf.mxu0
    %v2769 = vadd.f32 %v2658, %v2768
    %v2770 = vpop.f32.mrf.mxu0
    %v2771 = vadd.f32 %v2660, %v2770
    %2772 = vmatprep.mubr.f32.mxu0 0.0
    %v2773 = vand.u32 %v2421, 4294901760
    %v2774 = vsub.f32 %v2421, %v2773
    %2775 = vmatmul.mubr.f32.gmra.mxu0 %v2774
    %v2776 = vpop.f32.mrf.mxu0
    %v2777 = vadd.f32 %v2665, %v2776
    %v2778 = vpop.f32.mrf.mxu0
    %v2779 = vadd.f32 %v2667, %v2778
    %2780 = vmatprep.mubr.f32.mxu0 0.0
    %v2781 = vand.u32 %v2424, 4294901760
    %v2782 = vsub.f32 %v2424, %v2781
    %2783 = vmatmul.mubr.f32.gmra.mxu0 %v2782
    %v2784 = vpop.f32.mrf.mxu0
    %v2785 = vadd.f32 %v2672, %v2784
    %v2786 = vpop.f32.mrf.mxu0
    %v2787 = vadd.f32 %v2674, %v2786
    %2788 = vdwg.mxu0
    %2789 = vmatprep.subr.mxu0 0.0
    %2790 = vmatpush1.msra.mxu0 0.0
    %2791 = vmatprep.subr.mxu0 0.0
    %2792 = vmatpush1.msra.mxu0 0.0
    %2793 = vmatprep.subr.mxu0 0.0
    %2794 = vmatpush1.msra.mxu0 0.0
    %2795 = vmatprep.subr.mxu0 0.0
    %2796 = vmatpush1.msra.mxu0 0.0
    %2797 = vmatprep.subr.mxu0 0.0
    %2798 = vmatpush1.msra.mxu0 0.0
    %2799 = vmatprep.subr.mxu0 0.0
    %2800 = vmatpush1.msra.mxu0 0.0
    %2801 = vmatprep.subr.mxu0 0.0
    %2802 = vmatpush1.msra.mxu0 0.0
    %2803 = vmatprep.subr.mxu0 0.0
    %2804 = vmatpush1.msra.mxu0 0.0
    %2805 = vmatprep.subr.mxu0 0.0
    %2806 = vmatpush1.msra.mxu0 0.0
    %2807 = vmatprep.subr.mxu0 0.0
    %2808 = vmatpush1.msra.mxu0 0.0
    %2809 = vmatprep.subr.mxu0 0.0
    %2810 = vmatpush1.msra.mxu0 0.0
    %2811 = vmatprep.subr.mxu0 0.0
    %2812 = vmatpush1.msra.mxu0 0.0
    %v2813 = vand.u32 %v2393, 4294901760
    %2814 = vmatprep.subr.mxu0 %v2813
    %v2815 = vand.u32 %v2392, 4294901760
    %2816 = vmatpush1.msra.mxu0 %v2815
    %v2817 = vand.u32 %v2391, 4294901760
    %2818 = vmatprep.subr.mxu0 %v2817
    %v2819 = vand.u32 %v2390, 4294901760
    %2820 = vmatpush1.msra.mxu0 %v2819
    %v2821 = vand.u32 %v2389, 4294901760
    %2822 = vmatprep.subr.mxu0 %v2821
    %v2823 = vand.u32 %v2388, 4294901760
    %2824 = vmatpush1.msra.mxu0 %v2823
    %v2825 = vand.u32 %v2387, 4294901760
    %2826 = vmatprep.subr.mxu0 %v2825
    %v2827 = vand.u32 %v2386, 4294901760
    %2828 = vmatpush1.msra.mxu0 %v2827
    %2829 = vmatprep.subr.mxu0 0.0
    %2830 = vmatpush2.msra.mxu0 0.0
    %2831 = vmatprep.subr.mxu0 0.0
    %2832 = vmatpush2.msra.mxu0 0.0
    %2833 = vmatprep.subr.mxu0 0.0
    %2834 = vmatpush2.msra.mxu0 0.0
    %2835 = vmatprep.subr.mxu0 0.0
    %2836 = vmatpush2.msra.mxu0 0.0
    %2837 = vmatprep.subr.mxu0 0.0
    %2838 = vmatpush2.msra.mxu0 0.0
    %2839 = vmatprep.subr.mxu0 0.0
    %2840 = vmatpush2.msra.mxu0 0.0
    %2841 = vmatprep.subr.mxu0 0.0
    %2842 = vmatpush2.msra.mxu0 0.0
    %2843 = vmatprep.subr.mxu0 0.0
    %2844 = vmatpush2.msra.mxu0 0.0
    %2845 = vmatprep.subr.mxu0 0.0
    %2846 = vmatpush2.msra.mxu0 0.0
    %2847 = vmatprep.subr.mxu0 0.0
    %2848 = vmatpush2.msra.mxu0 0.0
    %2849 = vmatprep.subr.mxu0 0.0
    %2850 = vmatpush2.msra.mxu0 0.0
    %2851 = vmatprep.subr.mxu0 0.0
    %2852 = vmatpush2.msra.mxu0 0.0
    %2853 = vmatprep.subr.mxu0 0.0
    %2854 = vmatpush2.msra.mxu0 0.0
    %2855 = vmatprep.subr.mxu0 0.0
    %2856 = vmatpush2.msra.mxu0 0.0
    %2857 = vmatprep.subr.mxu0 0.0
    %2858 = vmatpush2.msra.mxu0 0.0
    %2859 = vmatprep.subr.mxu0 0.0
    %2860 = vmatpush2.msra.mxu0 0.0
    %2861 = vmatprep.mubr.f32.mxu0 0.0
    %v2862 = vand.u32 %v2415, 4294901760
    %v2863 = vsub.f32 %v2415, %v2862
    %v2864 = vand.u32 %v2863, 4294901760
    %2865 = vmatmul.mubr.f32.gmra.mxu0 %v2864
    %v2866 = vpop.f32.mrf.mxu0
    %v2867 = vadd.f32 %v2761, %v2866
    %v2868 = vpop.f32.mrf.mxu0
    %v2869 = vadd.f32 %v2763, %v2868
    %2870 = vmatprep.mubr.f32.mxu0 0.0
    %v2871 = vand.u32 %v2418, 4294901760
    %v2872 = vsub.f32 %v2418, %v2871
    %v2873 = vand.u32 %v2872, 4294901760
    %2874 = vmatmul.mubr.f32.gmra.mxu0 %v2873
    %v2875 = vpop.f32.mrf.mxu0
    %v2876 = vadd.f32 %v2769, %v2875
    %v2877 = vpop.f32.mrf.mxu0
    %v2878 = vadd.f32 %v2771, %v2877
    %2879 = vmatprep.mubr.f32.mxu0 0.0
    %v2880 = vand.u32 %v2421, 4294901760
    %v2881 = vsub.f32 %v2421, %v2880
    %v2882 = vand.u32 %v2881, 4294901760
    %2883 = vmatmul.mubr.f32.gmra.mxu0 %v2882
    %v2884 = vpop.f32.mrf.mxu0
    %v2885 = vadd.f32 %v2777, %v2884
    %v2886 = vpop.f32.mrf.mxu0
    %v2887 = vadd.f32 %v2779, %v2886
    %2888 = vmatprep.mubr.f32.mxu0 0.0
    %v2889 = vand.u32 %v2424, 4294901760
    %v2890 = vsub.f32 %v2424, %v2889
    %v2891 = vand.u32 %v2890, 4294901760
    %2892 = vmatmul.mubr.f32.gmra.mxu0 %v2891
    %v2893 = vpop.f32.mrf.mxu0
    %v2894 = vadd.f32 %v2785, %v2893
    %v2895 = vpop.f32.mrf.mxu0
    %v2896 = vadd.f32 %v2787, %v2895
    %2897 = vdwg.mxu0
    %2898 = vmatprep.subr.mxu0 0.0
    %2899 = vmatpush1.msra.mxu0 0.0
    %2900 = vmatprep.subr.mxu0 0.0
    %2901 = vmatpush1.msra.mxu0 0.0
    %2902 = vmatprep.subr.mxu0 0.0
    %2903 = vmatpush1.msra.mxu0 0.0
    %2904 = vmatprep.subr.mxu0 0.0
    %2905 = vmatpush1.msra.mxu0 0.0
    %2906 = vmatprep.subr.mxu0 0.0
    %2907 = vmatpush1.msra.mxu0 0.0
    %2908 = vmatprep.subr.mxu0 0.0
    %2909 = vmatpush1.msra.mxu0 0.0
    %2910 = vmatprep.subr.mxu0 0.0
    %2911 = vmatpush1.msra.mxu0 0.0
    %2912 = vmatprep.subr.mxu0 0.0
    %2913 = vmatpush1.msra.mxu0 0.0
    %2914 = vmatprep.subr.mxu0 0.0
    %2915 = vmatpush1.msra.mxu0 0.0
    %2916 = vmatprep.subr.mxu0 0.0
    %2917 = vmatpush1.msra.mxu0 0.0
    %2918 = vmatprep.subr.mxu0 0.0
    %2919 = vmatpush1.msra.mxu0 0.0
    %2920 = vmatprep.subr.mxu0 0.0
    %2921 = vmatpush1.msra.mxu0 0.0
    %v2922 = vand.u32 %v2393, 4294901760
    %v2923 = vsub.f32 %v2393, %v2922
    %v2924 = vand.u32 %v2923, 4294901760
    %2925 = vmatprep.subr.mxu0 %v2924
    %v2926 = vand.u32 %v2392, 4294901760
    %v2927 = vsub.f32 %v2392, %v2926
    %v2928 = vand.u32 %v2927, 4294901760
    %2929 = vmatpush1.msra.mxu0 %v2928
    %v2930 = vand.u32 %v2391, 4294901760
    %v2931 = vsub.f32 %v2391, %v2930
    %v2932 = vand.u32 %v2931, 4294901760
    %2933 = vmatprep.subr.mxu0 %v2932
    %v2934 = vand.u32 %v2390, 4294901760
    %v2935 = vsub.f32 %v2390, %v2934
    %v2936 = vand.u32 %v2935, 4294901760
    %2937 = vmatpush1.msra.mxu0 %v2936
    %v2938 = vand.u32 %v2389, 4294901760
    %v2939 = vsub.f32 %v2389, %v2938
    %v2940 = vand.u32 %v2939, 4294901760
    %2941 = vmatprep.subr.mxu0 %v2940
    %v2942 = vand.u32 %v2388, 4294901760
    %v2943 = vsub.f32 %v2388, %v2942
    %v2944 = vand.u32 %v2943, 4294901760
    %2945 = vmatpush1.msra.mxu0 %v2944
    %v2946 = vand.u32 %v2387, 4294901760
    %v2947 = vsub.f32 %v2387, %v2946
    %v2948 = vand.u32 %v2947, 4294901760
    %2949 = vmatprep.subr.mxu0 %v2948
    %v2950 = vand.u32 %v2386, 4294901760
    %v2951 = vsub.f32 %v2386, %v2950
    %v2952 = vand.u32 %v2951, 4294901760
    %2953 = vmatpush1.msra.mxu0 %v2952
    %2954 = vmatprep.subr.mxu0 0.0
    %2955 = vmatpush2.msra.mxu0 0.0
    %2956 = vmatprep.subr.mxu0 0.0
    %2957 = vmatpush2.msra.mxu0 0.0
    %2958 = vmatprep.subr.mxu0 0.0
    %2959 = vmatpush2.msra.mxu0 0.0
    %2960 = vmatprep.subr.mxu0 0.0
    %2961 = vmatpush2.msra.mxu0 0.0
    %2962 = vmatprep.subr.mxu0 0.0
    %2963 = vmatpush2.msra.mxu0 0.0
    %2964 = vmatprep.subr.mxu0 0.0
    %2965 = vmatpush2.msra.mxu0 0.0
    %2966 = vmatprep.subr.mxu0 0.0
    %2967 = vmatpush2.msra.mxu0 0.0
    %2968 = vmatprep.subr.mxu0 0.0
    %2969 = vmatpush2.msra.mxu0 0.0
    %2970 = vmatprep.subr.mxu0 0.0
    %2971 = vmatpush2.msra.mxu0 0.0
    %2972 = vmatprep.subr.mxu0 0.0
    %2973 = vmatpush2.msra.mxu0 0.0
    %2974 = vmatprep.subr.mxu0 0.0
    %2975 = vmatpush2.msra.mxu0 0.0
    %2976 = vmatprep.subr.mxu0 0.0
    %2977 = vmatpush2.msra.mxu0 0.0
    %2978 = vmatprep.subr.mxu0 0.0
    %2979 = vmatpush2.msra.mxu0 0.0
    %2980 = vmatprep.subr.mxu0 0.0
    %2981 = vmatpush2.msra.mxu0 0.0
    %2982 = vmatprep.subr.mxu0 0.0
    %2983 = vmatpush2.msra.mxu0 0.0
    %2984 = vmatprep.subr.mxu0 0.0
    %2985 = vmatpush2.msra.mxu0 0.0
    %2986 = vmatprep.mubr.f32.mxu0 0.0
    %v2987 = vand.u32 %v2415, 4294901760
    %2988 = vmatmul.mubr.f32.gmra.mxu0 %v2987
    %v2989 = vpop.f32.mrf.mxu0
    %v2990 = vadd.f32 %v2867, %v2989
    %v2991 = vpop.f32.mrf.mxu0
    %v2992 = vadd.f32 %v2869, %v2991
    %2993 = vmatprep.mubr.f32.mxu0 0.0
    %v2994 = vand.u32 %v2418, 4294901760
    %2995 = vmatmul.mubr.f32.gmra.mxu0 %v2994
    %v2996 = vpop.f32.mrf.mxu0
    %v2997 = vadd.f32 %v2876, %v2996
    %v2998 = vpop.f32.mrf.mxu0
    %v2999 = vadd.f32 %v2878, %v2998
    %3000 = vmatprep.mubr.f32.mxu0 0.0
    %v3001 = vand.u32 %v2421, 4294901760
    %3002 = vmatmul.mubr.f32.gmra.mxu0 %v3001
    %v3003 = vpop.f32.mrf.mxu0
    %v3004 = vadd.f32 %v2885, %v3003
    %v3005 = vpop.f32.mrf.mxu0
    %v3006 = vadd.f32 %v2887, %v3005
    %3007 = vmatprep.mubr.f32.mxu0 0.0
    %v3008 = vand.u32 %v2424, 4294901760
    %3009 = vmatmul.mubr.f32.gmra.mxu0 %v3008
    %v3010 = vpop.f32.mrf.mxu0
    %v3011 = vadd.f32 %v2894, %v3010
    %v3012 = vpop.f32.mrf.mxu0
    %v3013 = vadd.f32 %v2896, %v3012
    %3014 = vdwg.mxu0
    %3015 = vmatprep.subr.mxu0 0.0
    %3016 = vmatpush1.msra.mxu0 0.0
    %3017 = vmatprep.subr.mxu0 0.0
    %3018 = vmatpush1.msra.mxu0 0.0
    %3019 = vmatprep.subr.mxu0 0.0
    %3020 = vmatpush1.msra.mxu0 0.0
    %3021 = vmatprep.subr.mxu0 0.0
    %3022 = vmatpush1.msra.mxu0 0.0
    %3023 = vmatprep.subr.mxu0 0.0
    %3024 = vmatpush1.msra.mxu0 0.0
    %3025 = vmatprep.subr.mxu0 0.0
    %3026 = vmatpush1.msra.mxu0 0.0
    %3027 = vmatprep.subr.mxu0 0.0
    %3028 = vmatpush1.msra.mxu0 0.0
    %3029 = vmatprep.subr.mxu0 0.0
    %3030 = vmatpush1.msra.mxu0 0.0
    %3031 = vmatprep.subr.mxu0 0.0
    %3032 = vmatpush1.msra.mxu0 0.0
    %3033 = vmatprep.subr.mxu0 0.0
    %3034 = vmatpush1.msra.mxu0 0.0
    %3035 = vmatprep.subr.mxu0 0.0
    %3036 = vmatpush1.msra.mxu0 0.0
    %3037 = vmatprep.subr.mxu0 0.0
    %3038 = vmatpush1.msra.mxu0 0.0
    %v3039 = vand.u32 %v2393, 4294901760
    %3040 = vmatprep.subr.mxu0 %v3039
    %v3041 = vand.u32 %v2392, 4294901760
    %3042 = vmatpush1.msra.mxu0 %v3041
    %v3043 = vand.u32 %v2391, 4294901760
    %3044 = vmatprep.subr.mxu0 %v3043
    %v3045 = vand.u32 %v2390, 4294901760
    %3046 = vmatpush1.msra.mxu0 %v3045
    %v3047 = vand.u32 %v2389, 4294901760
    %3048 = vmatprep.subr.mxu0 %v3047
    %v3049 = vand.u32 %v2388, 4294901760
    %3050 = vmatpush1.msra.mxu0 %v3049
    %v3051 = vand.u32 %v2387, 4294901760
    %3052 = vmatprep.subr.mxu0 %v3051
    %v3053 = vand.u32 %v2386, 4294901760
    %3054 = vmatpush1.msra.mxu0 %v3053
    %3055 = vmatprep.subr.mxu0 0.0
    %3056 = vmatpush2.msra.mxu0 0.0
    %3057 = vmatprep.subr.mxu0 0.0
    %3058 = vmatpush2.msra.mxu0 0.0
    %3059 = vmatprep.subr.mxu0 0.0
    %3060 = vmatpush2.msra.mxu0 0.0
    %3061 = vmatprep.subr.mxu0 0.0
    %3062 = vmatpush2.msra.mxu0 0.0
    %3063 = vmatprep.subr.mxu0 0.0
    %3064 = vmatpush2.msra.mxu0 0.0
    %3065 = vmatprep.subr.mxu0 0.0
    %3066 = vmatpush2.msra.mxu0 0.0
    %3067 = vmatprep.subr.mxu0 0.0
    %3068 = vmatpush2.msra.mxu0 0.0
    %3069 = vmatprep.subr.mxu0 0.0
    %3070 = vmatpush2.msra.mxu0 0.0
    %3071 = vmatprep.subr.mxu0 0.0
    %3072 = vmatpush2.msra.mxu0 0.0
    %3073 = vmatprep.subr.mxu0 0.0
    %3074 = vmatpush2.msra.mxu0 0.0
    %3075 = vmatprep.subr.mxu0 0.0
    %3076 = vmatpush2.msra.mxu0 0.0
    %3077 = vmatprep.subr.mxu0 0.0
    %3078 = vmatpush2.msra.mxu0 0.0
    %3079 = vmatprep.subr.mxu0 0.0
    %3080 = vmatpush2.msra.mxu0 0.0
    %3081 = vmatprep.subr.mxu0 0.0
    %3082 = vmatpush2.msra.mxu0 0.0
    %3083 = vmatprep.subr.mxu0 0.0
    %3084 = vmatpush2.msra.mxu0 0.0
    %3085 = vmatprep.subr.mxu0 0.0
    %3086 = vmatpush2.msra.mxu0 0.0
    %3087 = vmatprep.mubr.f32.mxu0 0.0
    %v3088 = vand.u32 %v2415, 4294901760
    %3089 = vmatmul.mubr.f32.gmra.mxu0 %v3088
    %v3090 = vpop.f32.mrf.mxu0
    %v3091 = vadd.f32 %v2990, %v3090
    %v3092 = vpop.f32.mrf.mxu0
    %v3093 = vadd.f32 %v2992, %v3092
    %3094 = vmatprep.mubr.f32.mxu0 0.0
    %v3095 = vand.u32 %v2418, 4294901760
    %3096 = vmatmul.mubr.f32.gmra.mxu0 %v3095
    %v3097 = vpop.f32.mrf.mxu0
    %v3098 = vadd.f32 %v2997, %v3097
    %v3099 = vpop.f32.mrf.mxu0
    %v3100 = vadd.f32 %v2999, %v3099
    %3101 = vmatprep.mubr.f32.mxu0 0.0
    %v3102 = vand.u32 %v2421, 4294901760
    %3103 = vmatmul.mubr.f32.gmra.mxu0 %v3102
    %v3104 = vpop.f32.mrf.mxu0
    %v3105 = vadd.f32 %v3004, %v3104
    %v3106 = vpop.f32.mrf.mxu0
    %v3107 = vadd.f32 %v3006, %v3106
    %3108 = vmatprep.mubr.f32.mxu0 0.0
    %v3109 = vand.u32 %v2424, 4294901760
    %3110 = vmatmul.mubr.f32.gmra.mxu0 %v3109
    %v3111 = vpop.f32.mrf.mxu0
    %v3112 = vadd.f32 %v3011, %v3111
    %v3113 = vpop.f32.mrf.mxu0
    %v3114 = vadd.f32 %v3013, %v3113
    %3115 = vdwg.mxu0
    %v3116 = vtanh.pop %v3091
    %v3117 = vtanh.pop %v3093
    %v3118 = vtanh.pop %v3098
    %v3119 = vtanh.pop %v3100
    %v3120 = vtanh.pop %v3105
    %v3121 = vtanh.pop %v3107
    %v3122 = vtanh.pop %v3112
    %v3123 = vtanh.pop %v3114
    %3125 = vset.pattern.permute.xlu0 0
    %3126 = vperm.xlu0 %3125, %v68
    %v3127 = vpop.permute.xlu0 %3126
    %v3130 = vsel %vm223, %v67, 0
    %3132 = vmatprep.subr.mxu0 0.0
    %3133 = vmatpush1.msra.mxu0 0.0
    %3134 = vmatprep.subr.mxu0 0.0
    %3135 = vmatpush1.msra.mxu0 0.0
    %3136 = vmatprep.subr.mxu0 0.0
    %3137 = vmatpush1.msra.mxu0 0.0
    %3138 = vmatprep.subr.mxu0 0.0
    %3139 = vmatpush1.msra.mxu0 0.0
    %3140 = vmatprep.subr.mxu0 0.0
    %3141 = vmatpush1.msra.mxu0 0.0
    %3142 = vmatprep.subr.mxu0 0.0
    %3143 = vmatpush1.msra.mxu0 0.0
    %3144 = vmatprep.subr.mxu0 0.0
    %3145 = vmatpush1.msra.mxu0 0.0
    %3146 = vmatprep.subr.mxu0 0.0
    %3147 = vmatpush1.msra.mxu0 0.0
    %3148 = vmatprep.subr.mxu0 0.0
    %3149 = vmatpush1.msra.mxu0 0.0
    %3150 = vmatprep.subr.mxu0 0.0
    %3151 = vmatpush1.msra.mxu0 0.0
    %3152 = vmatprep.subr.mxu0 0.0
    %3153 = vmatpush1.msra.mxu0 0.0
    %3154 = vmatprep.subr.mxu0 0.0
    %3155 = vmatpush1.msra.mxu0 0.0
    %v3156 = vand.u32 %v3123, 4294901760
    %3157 = vmatprep.subr.mxu0 %v3156
    %v3158 = vand.u32 %v3122, 4294901760
    %3159 = vmatpush1.msra.mxu0 %v3158
    %v3160 = vand.u32 %v3121, 4294901760
    %3161 = vmatprep.subr.mxu0 %v3160
    %v3162 = vand.u32 %v3120, 4294901760
    %3163 = vmatpush1.msra.mxu0 %v3162
    %v3164 = vand.u32 %v3119, 4294901760
    %3165 = vmatprep.subr.mxu0 %v3164
    %v3166 = vand.u32 %v3118, 4294901760
    %3167 = vmatpush1.msra.mxu0 %v3166
    %v3168 = vand.u32 %v3117, 4294901760
    %3169 = vmatprep.subr.mxu0 %v3168
    %v3170 = vand.u32 %v3116, 4294901760
    %3171 = vmatpush1.msra.mxu0 %v3170
    %3172 = vmatprep.subr.mxu0 0.0
    %3173 = vmatpush2.msra.mxu0 0.0
    %3174 = vmatprep.subr.mxu0 0.0
    %3175 = vmatpush2.msra.mxu0 0.0
    %3176 = vmatprep.subr.mxu0 0.0
    %3177 = vmatpush2.msra.mxu0 0.0
    %3178 = vmatprep.subr.mxu0 0.0
    %3179 = vmatpush2.msra.mxu0 0.0
    %3180 = vmatprep.subr.mxu0 0.0
    %3181 = vmatpush2.msra.mxu0 0.0
    %3182 = vmatprep.subr.mxu0 0.0
    %3183 = vmatpush2.msra.mxu0 0.0
    %3184 = vmatprep.subr.mxu0 0.0
    %3185 = vmatpush2.msra.mxu0 0.0
    %3186 = vmatprep.subr.mxu0 0.0
    %3187 = vmatpush2.msra.mxu0 0.0
    %3188 = vmatprep.subr.mxu0 0.0
    %3189 = vmatpush2.msra.mxu0 0.0
    %3190 = vmatprep.subr.mxu0 0.0
    %3191 = vmatpush2.msra.mxu0 0.0
    %3192 = vmatprep.subr.mxu0 0.0
    %3193 = vmatpush2.msra.mxu0 0.0
    %3194 = vmatprep.subr.mxu0 0.0
    %3195 = vmatpush2.msra.mxu0 0.0
    %3196 = vmatprep.subr.mxu0 0.0
    %3197 = vmatpush2.msra.mxu0 0.0
    %3198 = vmatprep.subr.mxu0 0.0
    %3199 = vmatpush2.msra.mxu0 0.0
    %3200 = vmatprep.subr.mxu0 0.0
    %3201 = vmatpush2.msra.mxu0 0.0
    %3202 = vmatprep.subr.mxu0 0.0
    %3203 = vmatpush2.msra.mxu0 0.0
    %3204 = vmatprep.mubr.f32.mxu0 0.0
    %v3205 = vand.u32 %v3130, 4294901760
    %v3206 = vsub.f32 %v3130, %v3205
    %v3207 = vand.u32 %v3206, 4294901760
    %v3208 = vsub.f32 %v3206, %v3207
    %v3209 = vand.u32 %v3208, 4294901760
    %3210 = vmatmul.mubr.f32.gmra.mxu0 %v3209
    %v3211 = vpop.f32.mrf.mxu0
    %v3212 = vadd.f32 %v3127, %v3211
    %v3213 = vpop.f32.mrf.mxu0
    %v3214 = vadd.f32 %v3127, %v3213
    %3215 = vdwg.mxu0
    %3216 = vmatprep.subr.mxu0 0.0
    %3217 = vmatpush1.msra.mxu0 0.0
    %3218 = vmatprep.subr.mxu0 0.0
    %3219 = vmatpush1.msra.mxu0 0.0
    %3220 = vmatprep.subr.mxu0 0.0
    %3221 = vmatpush1.msra.mxu0 0.0
    %3222 = vmatprep.subr.mxu0 0.0
    %3223 = vmatpush1.msra.mxu0 0.0
    %3224 = vmatprep.subr.mxu0 0.0
    %3225 = vmatpush1.msra.mxu0 0.0
    %3226 = vmatprep.subr.mxu0 0.0
    %3227 = vmatpush1.msra.mxu0 0.0
    %3228 = vmatprep.subr.mxu0 0.0
    %3229 = vmatpush1.msra.mxu0 0.0
    %3230 = vmatprep.subr.mxu0 0.0
    %3231 = vmatpush1.msra.mxu0 0.0
    %3232 = vmatprep.subr.mxu0 0.0
    %3233 = vmatpush1.msra.mxu0 0.0
    %3234 = vmatprep.subr.mxu0 0.0
    %3235 = vmatpush1.msra.mxu0 0.0
    %3236 = vmatprep.subr.mxu0 0.0
    %3237 = vmatpush1.msra.mxu0 0.0
    %3238 = vmatprep.subr.mxu0 0.0
    %3239 = vmatpush1.msra.mxu0 0.0
    %v3240 = vand.u32 %v3123, 4294901760
    %v3241 = vsub.f32 %v3123, %v3240
    %v3242 = vand.u32 %v3241, 4294901760
    %v3243 = vsub.f32 %v3241, %v3242
    %v3244 = vand.u32 %v3243, 4294901760
    %3245 = vmatprep.subr.mxu0 %v3244
    %v3246 = vand.u32 %v3122, 4294901760
    %v3247 = vsub.f32 %v3122, %v3246
    %v3248 = vand.u32 %v3247, 4294901760
    %v3249 = vsub.f32 %v3247, %v3248
    %v3250 = vand.u32 %v3249, 4294901760
    %3251 = vmatpush1.msra.mxu0 %v3250
    %v3252 = vand.u32 %v3121, 4294901760
    %v3253 = vsub.f32 %v3121, %v3252
    %v3254 = vand.u32 %v3253, 4294901760
    %v3255 = vsub.f32 %v3253, %v3254
    %v3256 = vand.u32 %v3255, 4294901760
    %3257 = vmatprep.subr.mxu0 %v3256
    %v3258 = vand.u32 %v3120, 4294901760
    %v3259 = vsub.f32 %v3120, %v3258
    %v3260 = vand.u32 %v3259, 4294901760
    %v3261 = vsub.f32 %v3259, %v3260
    %v3262 = vand.u32 %v3261, 4294901760
    %3263 = vmatpush1.msra.mxu0 %v3262
    %v3264 = vand.u32 %v3119, 4294901760
    %v3265 = vsub.f32 %v3119, %v3264
    %v3266 = vand.u32 %v3265, 4294901760
    %v3267 = vsub.f32 %v3265, %v3266
    %v3268 = vand.u32 %v3267, 4294901760
    %3269 = vmatprep.subr.mxu0 %v3268
    %v3270 = vand.u32 %v3118, 4294901760
    %v3271 = vsub.f32 %v3118, %v3270
    %v3272 = vand.u32 %v3271, 4294901760
    %v3273 = vsub.f32 %v3271, %v3272
    %v3274 = vand.u32 %v3273, 4294901760
    %3275 = vmatpush1.msra.mxu0 %v3274
    %v3276 = vand.u32 %v3117, 4294901760
    %v3277 = vsub.f32 %v3117, %v3276
    %v3278 = vand.u32 %v3277, 4294901760
    %v3279 = vsub.f32 %v3277, %v3278
    %v3280 = vand.u32 %v3279, 4294901760
    %3281 = vmatprep.subr.mxu0 %v3280
    %v3282 = vand.u32 %v3116, 4294901760
    %v3283 = vsub.f32 %v3116, %v3282
    %v3284 = vand.u32 %v3283, 4294901760
    %v3285 = vsub.f32 %v3283, %v3284
    %v3286 = vand.u32 %v3285, 4294901760
    %3287 = vmatpush1.msra.mxu0 %v3286
    %3288 = vmatprep.subr.mxu0 0.0
    %3289 = vmatpush2.msra.mxu0 0.0
    %3290 = vmatprep.subr.mxu0 0.0
    %3291 = vmatpush2.msra.mxu0 0.0
    %3292 = vmatprep.subr.mxu0 0.0
    %3293 = vmatpush2.msra.mxu0 0.0
    %3294 = vmatprep.subr.mxu0 0.0
    %3295 = vmatpush2.msra.mxu0 0.0
    %3296 = vmatprep.subr.mxu0 0.0
    %3297 = vmatpush2.msra.mxu0 0.0
    %3298 = vmatprep.subr.mxu0 0.0
    %3299 = vmatpush2.msra.mxu0 0.0
    %3300 = vmatprep.subr.mxu0 0.0
    %3301 = vmatpush2.msra.mxu0 0.0
    %3302 = vmatprep.subr.mxu0 0.0
    %3303 = vmatpush2.msra.mxu0 0.0
    %3304 = vmatprep.subr.mxu0 0.0
    %3305 = vmatpush2.msra.mxu0 0.0
    %3306 = vmatprep.subr.mxu0 0.0
    %3307 = vmatpush2.msra.mxu0 0.0
    %3308 = vmatprep.subr.mxu0 0.0
    %3309 = vmatpush2.msra.mxu0 0.0
    %3310 = vmatprep.subr.mxu0 0.0
    %3311 = vmatpush2.msra.mxu0 0.0
    %3312 = vmatprep.subr.mxu0 0.0
    %3313 = vmatpush2.msra.mxu0 0.0
    %3314 = vmatprep.subr.mxu0 0.0
    %3315 = vmatpush2.msra.mxu0 0.0
    %3316 = vmatprep.subr.mxu0 0.0
    %3317 = vmatpush2.msra.mxu0 0.0
    %3318 = vmatprep.subr.mxu0 0.0
    %3319 = vmatpush2.msra.mxu0 0.0
    %3320 = vmatprep.mubr.f32.mxu0 0.0
    %v3321 = vand.u32 %v3130, 4294901760
    %3322 = vmatmul.mubr.f32.gmra.mxu0 %v3321
    %v3323 = vpop.f32.mrf.mxu0
    %v3324 = vadd.f32 %v3212, %v3323
    %v3325 = vpop.f32.mrf.mxu0
    %v3326 = vadd.f32 %v3214, %v3325
    %3327 = vdwg.mxu0
    %3328 = vmatprep.subr.mxu0 0.0
    %3329 = vmatpush1.msra.mxu0 0.0
    %3330 = vmatprep.subr.mxu0 0.0
    %3331 = vmatpush1.msra.mxu0 0.0
    %3332 = vmatprep.subr.mxu0 0.0
    %3333 = vmatpush1.msra.mxu0 0.0
    %3334 = vmatprep.subr.mxu0 0.0
    %3335 = vmatpush1.msra.mxu0 0.0
    %3336 = vmatprep.subr.mxu0 0.0
    %3337 = vmatpush1.msra.mxu0 0.0
    %3338 = vmatprep.subr.mxu0 0.0
    %3339 = vmatpush1.msra.mxu0 0.0
    %3340 = vmatprep.subr.mxu0 0.0
    %3341 = vmatpush1.msra.mxu0 0.0
    %3342 = vmatprep.subr.mxu0 0.0
    %3343 = vmatpush1.msra.mxu0 0.0
    %3344 = vmatprep.subr.mxu0 0.0
    %3345 = vmatpush1.msra.mxu0 0.0
    %3346 = vmatprep.subr.mxu0 0.0
    %3347 = vmatpush1.msra.mxu0 0.0
    %3348 = vmatprep.subr.mxu0 0.0
    %3349 = vmatpush1.msra.mxu0 0.0
    %3350 = vmatprep.subr.mxu0 0.0
    %3351 = vmatpush1.msra.mxu0 0.0
    %v3352 = vand.u32 %v3123, 4294901760
    %v3353 = vsub.f32 %v3123, %v3352
    %3354 = vmatprep.subr.mxu0 %v3353
    %v3355 = vand.u32 %v3122, 4294901760
    %v3356 = vsub.f32 %v3122, %v3355
    %3357 = vmatpush1.msra.mxu0 %v3356
    %v3358 = vand.u32 %v3121, 4294901760
    %v3359 = vsub.f32 %v3121, %v3358
    %3360 = vmatprep.subr.mxu0 %v3359
    %v3361 = vand.u32 %v3120, 4294901760
    %v3362 = vsub.f32 %v3120, %v3361
    %3363 = vmatpush1.msra.mxu0 %v3362
    %v3364 = vand.u32 %v3119, 4294901760
    %v3365 = vsub.f32 %v3119, %v3364
    %3366 = vmatprep.subr.mxu0 %v3365
    %v3367 = vand.u32 %v3118, 4294901760
    %v3368 = vsub.f32 %v3118, %v3367
    %3369 = vmatpush1.msra.mxu0 %v3368
    %v3370 = vand.u32 %v3117, 4294901760
    %v3371 = vsub.f32 %v3117, %v3370
    %3372 = vmatprep.subr.mxu0 %v3371
    %v3373 = vand.u32 %v3116, 4294901760
    %v3374 = vsub.f32 %v3116, %v3373
    %3375 = vmatpush1.msra.mxu0 %v3374
    %3376 = vmatprep.subr.mxu0 0.0
    %3377 = vmatpush2.msra.mxu0 0.0
    %3378 = vmatprep.subr.mxu0 0.0
    %3379 = vmatpush2.msra.mxu0 0.0
    %3380 = vmatprep.subr.mxu0 0.0
    %3381 = vmatpush2.msra.mxu0 0.0
    %3382 = vmatprep.subr.mxu0 0.0
    %3383 = vmatpush2.msra.mxu0 0.0
    %3384 = vmatprep.subr.mxu0 0.0
    %3385 = vmatpush2.msra.mxu0 0.0
    %3386 = vmatprep.subr.mxu0 0.0
    %3387 = vmatpush2.msra.mxu0 0.0
    %3388 = vmatprep.subr.mxu0 0.0
    %3389 = vmatpush2.msra.mxu0 0.0
    %3390 = vmatprep.subr.mxu0 0.0
    %3391 = vmatpush2.msra.mxu0 0.0
    %3392 = vmatprep.subr.mxu0 0.0
    %3393 = vmatpush2.msra.mxu0 0.0
    %3394 = vmatprep.subr.mxu0 0.0
    %3395 = vmatpush2.msra.mxu0 0.0
    %3396 = vmatprep.subr.mxu0 0.0
    %3397 = vmatpush2.msra.mxu0 0.0
    %3398 = vmatprep.subr.mxu0 0.0
    %3399 = vmatpush2.msra.mxu0 0.0
    %3400 = vmatprep.subr.mxu0 0.0
    %3401 = vmatpush2.msra.mxu0 0.0
    %3402 = vmatprep.subr.mxu0 0.0
    %3403 = vmatpush2.msra.mxu0 0.0
    %3404 = vmatprep.subr.mxu0 0.0
    %3405 = vmatpush2.msra.mxu0 0.0
    %3406 = vmatprep.subr.mxu0 0.0
    %3407 = vmatpush2.msra.mxu0 0.0
    %3408 = vmatprep.mubr.f32.mxu0 0.0
    %v3409 = vand.u32 %v3130, 4294901760
    %v3410 = vsub.f32 %v3130, %v3409
    %3411 = vmatmul.mubr.f32.gmra.mxu0 %v3410
    %v3412 = vpop.f32.mrf.mxu0
    %v3413 = vadd.f32 %v3324, %v3412
    %v3414 = vpop.f32.mrf.mxu0
    %v3415 = vadd.f32 %v3326, %v3414
    %3416 = vdwg.mxu0
    %3417 = vmatprep.subr.mxu0 0.0
    %3418 = vmatpush1.msra.mxu0 0.0
    %3419 = vmatprep.subr.mxu0 0.0
    %3420 = vmatpush1.msra.mxu0 0.0
    %3421 = vmatprep.subr.mxu0 0.0
    %3422 = vmatpush1.msra.mxu0 0.0
    %3423 = vmatprep.subr.mxu0 0.0
    %3424 = vmatpush1.msra.mxu0 0.0
    %3425 = vmatprep.subr.mxu0 0.0
    %3426 = vmatpush1.msra.mxu0 0.0
    %3427 = vmatprep.subr.mxu0 0.0
    %3428 = vmatpush1.msra.mxu0 0.0
    %3429 = vmatprep.subr.mxu0 0.0
    %3430 = vmatpush1.msra.mxu0 0.0
    %3431 = vmatprep.subr.mxu0 0.0
    %3432 = vmatpush1.msra.mxu0 0.0
    %3433 = vmatprep.subr.mxu0 0.0
    %3434 = vmatpush1.msra.mxu0 0.0
    %3435 = vmatprep.subr.mxu0 0.0
    %3436 = vmatpush1.msra.mxu0 0.0
    %3437 = vmatprep.subr.mxu0 0.0
    %3438 = vmatpush1.msra.mxu0 0.0
    %3439 = vmatprep.subr.mxu0 0.0
    %3440 = vmatpush1.msra.mxu0 0.0
    %v3441 = vand.u32 %v3123, 4294901760
    %3442 = vmatprep.subr.mxu0 %v3441
    %v3443 = vand.u32 %v3122, 4294901760
    %3444 = vmatpush1.msra.mxu0 %v3443
    %v3445 = vand.u32 %v3121, 4294901760
    %3446 = vmatprep.subr.mxu0 %v3445
    %v3447 = vand.u32 %v3120, 4294901760
    %3448 = vmatpush1.msra.mxu0 %v3447
    %v3449 = vand.u32 %v3119, 4294901760
    %3450 = vmatprep.subr.mxu0 %v3449
    %v3451 = vand.u32 %v3118, 4294901760
    %3452 = vmatpush1.msra.mxu0 %v3451
    %v3453 = vand.u32 %v3117, 4294901760
    %3454 = vmatprep.subr.mxu0 %v3453
    %v3455 = vand.u32 %v3116, 4294901760
    %3456 = vmatpush1.msra.mxu0 %v3455
    %3457 = vmatprep.subr.mxu0 0.0
    %3458 = vmatpush2.msra.mxu0 0.0
    %3459 = vmatprep.subr.mxu0 0.0
    %3460 = vmatpush2.msra.mxu0 0.0
    %3461 = vmatprep.subr.mxu0 0.0
    %3462 = vmatpush2.msra.mxu0 0.0
    %3463 = vmatprep.subr.mxu0 0.0
    %3464 = vmatpush2.msra.mxu0 0.0
    %3465 = vmatprep.subr.mxu0 0.0
    %3466 = vmatpush2.msra.mxu0 0.0
    %3467 = vmatprep.subr.mxu0 0.0
    %3468 = vmatpush2.msra.mxu0 0.0
    %3469 = vmatprep.subr.mxu0 0.0
    %3470 = vmatpush2.msra.mxu0 0.0
    %3471 = vmatprep.subr.mxu0 0.0
    %3472 = vmatpush2.msra.mxu0 0.0
    %3473 = vmatprep.subr.mxu0 0.0
    %3474 = vmatpush2.msra.mxu0 0.0
    %3475 = vmatprep.subr.mxu0 0.0
    %3476 = vmatpush2.msra.mxu0 0.0
    %3477 = vmatprep.subr.mxu0 0.0
    %3478 = vmatpush2.msra.mxu0 0.0
    %3479 = vmatprep.subr.mxu0 0.0
    %3480 = vmatpush2.msra.mxu0 0.0
    %3481 = vmatprep.subr.mxu0 0.0
    %3482 = vmatpush2.msra.mxu0 0.0
    %3483 = vmatprep.subr.mxu0 0.0
    %3484 = vmatpush2.msra.mxu0 0.0
    %3485 = vmatprep.subr.mxu0 0.0
    %3486 = vmatpush2.msra.mxu0 0.0
    %3487 = vmatprep.subr.mxu0 0.0
    %3488 = vmatpush2.msra.mxu0 0.0
    %3489 = vmatprep.mubr.f32.mxu0 0.0
    %v3490 = vand.u32 %v3130, 4294901760
    %v3491 = vsub.f32 %v3130, %v3490
    %v3492 = vand.u32 %v3491, 4294901760
    %3493 = vmatmul.mubr.f32.gmra.mxu0 %v3492
    %v3494 = vpop.f32.mrf.mxu0
    %v3495 = vadd.f32 %v3413, %v3494
    %v3496 = vpop.f32.mrf.mxu0
    %v3497 = vadd.f32 %v3415, %v3496
    %3498 = vdwg.mxu0
    %3499 = vmatprep.subr.mxu0 0.0
    %3500 = vmatpush1.msra.mxu0 0.0
    %3501 = vmatprep.subr.mxu0 0.0
    %3502 = vmatpush1.msra.mxu0 0.0
    %3503 = vmatprep.subr.mxu0 0.0
    %3504 = vmatpush1.msra.mxu0 0.0
    %3505 = vmatprep.subr.mxu0 0.0
    %3506 = vmatpush1.msra.mxu0 0.0
    %3507 = vmatprep.subr.mxu0 0.0
    %3508 = vmatpush1.msra.mxu0 0.0
    %3509 = vmatprep.subr.mxu0 0.0
    %3510 = vmatpush1.msra.mxu0 0.0
    %3511 = vmatprep.subr.mxu0 0.0
    %3512 = vmatpush1.msra.mxu0 0.0
    %3513 = vmatprep.subr.mxu0 0.0
    %3514 = vmatpush1.msra.mxu0 0.0
    %3515 = vmatprep.subr.mxu0 0.0
    %3516 = vmatpush1.msra.mxu0 0.0
    %3517 = vmatprep.subr.mxu0 0.0
    %3518 = vmatpush1.msra.mxu0 0.0
    %3519 = vmatprep.subr.mxu0 0.0
    %3520 = vmatpush1.msra.mxu0 0.0
    %3521 = vmatprep.subr.mxu0 0.0
    %3522 = vmatpush1.msra.mxu0 0.0
    %v3523 = vand.u32 %v3123, 4294901760
    %v3524 = vsub.f32 %v3123, %v3523
    %v3525 = vand.u32 %v3524, 4294901760
    %3526 = vmatprep.subr.mxu0 %v3525
    %v3527 = vand.u32 %v3122, 4294901760
    %v3528 = vsub.f32 %v3122, %v3527
    %v3529 = vand.u32 %v3528, 4294901760
    %3530 = vmatpush1.msra.mxu0 %v3529
    %v3531 = vand.u32 %v3121, 4294901760
    %v3532 = vsub.f32 %v3121, %v3531
    %v3533 = vand.u32 %v3532, 4294901760
    %3534 = vmatprep.subr.mxu0 %v3533
    %v3535 = vand.u32 %v3120, 4294901760
    %v3536 = vsub.f32 %v3120, %v3535
    %v3537 = vand.u32 %v3536, 4294901760
    %3538 = vmatpush1.msra.mxu0 %v3537
    %v3539 = vand.u32 %v3119, 4294901760
    %v3540 = vsub.f32 %v3119, %v3539
    %v3541 = vand.u32 %v3540, 4294901760
    %3542 = vmatprep.subr.mxu0 %v3541
    %v3543 = vand.u32 %v3118, 4294901760
    %v3544 = vsub.f32 %v3118, %v3543
    %v3545 = vand.u32 %v3544, 4294901760
    %3546 = vmatpush1.msra.mxu0 %v3545
    %v3547 = vand.u32 %v3117, 4294901760
    %v3548 = vsub.f32 %v3117, %v3547
    %v3549 = vand.u32 %v3548, 4294901760
    %3550 = vmatprep.subr.mxu0 %v3549
    %v3551 = vand.u32 %v3116, 4294901760
    %v3552 = vsub.f32 %v3116, %v3551
    %v3553 = vand.u32 %v3552, 4294901760
    %3554 = vmatpush1.msra.mxu0 %v3553
    %3555 = vmatprep.subr.mxu0 0.0
    %3556 = vmatpush2.msra.mxu0 0.0
    %3557 = vmatprep.subr.mxu0 0.0
    %3558 = vmatpush2.msra.mxu0 0.0
    %3559 = vmatprep.subr.mxu0 0.0
    %3560 = vmatpush2.msra.mxu0 0.0
    %3561 = vmatprep.subr.mxu0 0.0
    %3562 = vmatpush2.msra.mxu0 0.0
    %3563 = vmatprep.subr.mxu0 0.0
    %3564 = vmatpush2.msra.mxu0 0.0
    %3565 = vmatprep.subr.mxu0 0.0
    %3566 = vmatpush2.msra.mxu0 0.0
    %3567 = vmatprep.subr.mxu0 0.0
    %3568 = vmatpush2.msra.mxu0 0.0
    %3569 = vmatprep.subr.mxu0 0.0
    %3570 = vmatpush2.msra.mxu0 0.0
    %3571 = vmatprep.subr.mxu0 0.0
    %3572 = vmatpush2.msra.mxu0 0.0
    %3573 = vmatprep.subr.mxu0 0.0
    %3574 = vmatpush2.msra.mxu0 0.0
    %3575 = vmatprep.subr.mxu0 0.0
    %3576 = vmatpush2.msra.mxu0 0.0
    %3577 = vmatprep.subr.mxu0 0.0
    %3578 = vmatpush2.msra.mxu0 0.0
    %3579 = vmatprep.subr.mxu0 0.0
    %3580 = vmatpush2.msra.mxu0 0.0
    %3581 = vmatprep.subr.mxu0 0.0
    %3582 = vmatpush2.msra.mxu0 0.0
    %3583 = vmatprep.subr.mxu0 0.0
    %3584 = vmatpush2.msra.mxu0 0.0
    %3585 = vmatprep.subr.mxu0 0.0
    %3586 = vmatpush2.msra.mxu0 0.0
    %3587 = vmatprep.mubr.f32.mxu0 0.0
    %v3588 = vand.u32 %v3130, 4294901760
    %3589 = vmatmul.mubr.f32.gmra.mxu0 %v3588
    %v3590 = vpop.f32.mrf.mxu0
    %v3591 = vadd.f32 %v3495, %v3590
    %v3592 = vpop.f32.mrf.mxu0
    %v3593 = vadd.f32 %v3497, %v3592
    %3594 = vdwg.mxu0
    %3595 = vmatprep.subr.mxu0 0.0
    %3596 = vmatpush1.msra.mxu0 0.0
    %3597 = vmatprep.subr.mxu0 0.0
    %3598 = vmatpush1.msra.mxu0 0.0
    %3599 = vmatprep.subr.mxu0 0.0
    %3600 = vmatpush1.msra.mxu0 0.0
    %3601 = vmatprep.subr.mxu0 0.0
    %3602 = vmatpush1.msra.mxu0 0.0
    %3603 = vmatprep.subr.mxu0 0.0
    %3604 = vmatpush1.msra.mxu0 0.0
    %3605 = vmatprep.subr.mxu0 0.0
    %3606 = vmatpush1.msra.mxu0 0.0
    %3607 = vmatprep.subr.mxu0 0.0
    %3608 = vmatpush1.msra.mxu0 0.0
    %3609 = vmatprep.subr.mxu0 0.0
    %3610 = vmatpush1.msra.mxu0 0.0
    %3611 = vmatprep.subr.mxu0 0.0
    %3612 = vmatpush1.msra.mxu0 0.0
    %3613 = vmatprep.subr.mxu0 0.0
    %3614 = vmatpush1.msra.mxu0 0.0
    %3615 = vmatprep.subr.mxu0 0.0
    %3616 = vmatpush1.msra.mxu0 0.0
    %3617 = vmatprep.subr.mxu0 0.0
    %3618 = vmatpush1.msra.mxu0 0.0
    %v3619 = vand.u32 %v3123, 4294901760
    %3620 = vmatprep.subr.mxu0 %v3619
    %v3621 = vand.u32 %v3122, 4294901760
    %3622 = vmatpush1.msra.mxu0 %v3621
    %v3623 = vand.u32 %v3121, 4294901760
    %3624 = vmatprep.subr.mxu0 %v3623
    %v3625 = vand.u32 %v3120, 4294901760
    %3626 = vmatpush1.msra.mxu0 %v3625
    %v3627 = vand.u32 %v3119, 4294901760
    %3628 = vmatprep.subr.mxu0 %v3627
    %v3629 = vand.u32 %v3118, 4294901760
    %3630 = vmatpush1.msra.mxu0 %v3629
    %v3631 = vand.u32 %v3117, 4294901760
    %3632 = vmatprep.subr.mxu0 %v3631
    %v3633 = vand.u32 %v3116, 4294901760
    %3634 = vmatpush1.msra.mxu0 %v3633
    %3635 = vmatprep.subr.mxu0 0.0
    %3636 = vmatpush2.msra.mxu0 0.0
    %3637 = vmatprep.subr.mxu0 0.0
    %3638 = vmatpush2.msra.mxu0 0.0
    %3639 = vmatprep.subr.mxu0 0.0
    %3640 = vmatpush2.msra.mxu0 0.0
    %3641 = vmatprep.subr.mxu0 0.0
    %3642 = vmatpush2.msra.mxu0 0.0
    %3643 = vmatprep.subr.mxu0 0.0
    %3644 = vmatpush2.msra.mxu0 0.0
    %3645 = vmatprep.subr.mxu0 0.0
    %3646 = vmatpush2.msra.mxu0 0.0
    %3647 = vmatprep.subr.mxu0 0.0
    %3648 = vmatpush2.msra.mxu0 0.0
    %3649 = vmatprep.subr.mxu0 0.0
    %3650 = vmatpush2.msra.mxu0 0.0
    %3651 = vmatprep.subr.mxu0 0.0
    %3652 = vmatpush2.msra.mxu0 0.0
    %3653 = vmatprep.subr.mxu0 0.0
    %3654 = vmatpush2.msra.mxu0 0.0
    %3655 = vmatprep.subr.mxu0 0.0
    %3656 = vmatpush2.msra.mxu0 0.0
    %3657 = vmatprep.subr.mxu0 0.0
    %3658 = vmatpush2.msra.mxu0 0.0
    %3659 = vmatprep.subr.mxu0 0.0
    %3660 = vmatpush2.msra.mxu0 0.0
    %3661 = vmatprep.subr.mxu0 0.0
    %3662 = vmatpush2.msra.mxu0 0.0
    %3663 = vmatprep.subr.mxu0 0.0
    %3664 = vmatpush2.msra.mxu0 0.0
    %3665 = vmatprep.subr.mxu0 0.0
    %3666 = vmatpush2.msra.mxu0 0.0
    %3667 = vmatprep.mubr.f32.mxu0 0.0
    %v3668 = vand.u32 %v3130, 4294901760
    %3669 = vmatmul.mubr.f32.gmra.mxu0 %v3668
    %v3670 = vpop.f32.mrf.mxu0
    %v3671 = vadd.f32 %v3591, %v3670
    %v3672 = vpop.f32.mrf.mxu0
    %v3673 = vadd.f32 %v3593, %v3672
    %3674 = vdwg.mxu0
    %v3677 = vcombine.low %v3671, %v3673
    %v3679 = vunpack.c.l.s4 1983009808
    %v3680 = vunpack.c.0.s8 %v3679
    %v3681 = vlaneseq
    %v3682 = vshrl.u32 %v3681, 7
    %v3683 = vsub.s32 %v3680, %v3682
    %v3684 = vrot.slane %v3677, %v3683
    %3686 = vst [vmem:[#allocation2] sm:$0xf] %v3684
    // Predicated region
    $region30: #{tpu_custom_call.1} parent=1 // pred_check
      _
    $region31: #{tpu_custom_call.1} parent=1 // pred_check_branch
      %3688 = sbr.rel (0) target = $region33
    $region32: #{tpu_custom_call.1} parent=1 // pred_region
      %s3690 = ssub.s32 64, 64
      %3691 = vsyncadd [#allocation3], %s3690
      %s3693 = sshll.u32 [#allocation2], 4
      %s3694 = int_to_ptr.vmem [resolvable:$true] %s3693
      %3696 = dma.vmem_to_hbm [thread:$0]  %s3694, 64, %s7, [#allocation3]
    $region33: #{tpu_custom_call.1} parent=1 // pred_fallthru
      _
    // Predicated region
    $region34: #{tpu_custom_call.1} parent=1 // pred_check
      _
    $region35: #{tpu_custom_call.1} parent=1 // pred_check_branch
      %3698 = sbr.rel (0) target = $region37
    $region36: #{tpu_custom_call.1} parent=1 // pred_region
      %3699 = dma.done [#allocation3], 64
    $region37: #{tpu_custom_call.1} parent=1 // pred_fallthru
      _
    %3700 = vsyncpa [#allocation3], 1

</llo_original>
